<compile_context>
chip_gen: v7x
topology: tpu7x:2x2x1
jax: 0.10.0
libtpu: 0.0.40
codegen_flags: <defaults>
</compile_context>

<pallas_src>
import math

import jax
import jax.numpy as jnp
from jax import lax
from jax.experimental import pallas as pl
from jax.experimental.pallas import tpu as pltpu

# --------------------------- model configuration ----------------------------
D_MODEL    = 32          # d_model
N_LAYER    = 2           # n_layer
D_MLP      = 128         # d_inner (MLP hidden width)
VOCAB      = 12          # vocab_size
BATCH      = 2
SEQ_LEN    = 16          # l_max
CENTER_LEN = 8           # config.center_len
RNA_DIM    = 9           # rna_feat_dim (useRNAFeat=True)
LN_EPS     = 1e-5

HYENA_ORDER  = 2                                  # -> in_proj width = (order+1)*d
D_IN_PROJ    = (HYENA_ORDER + 1) * D_MODEL        # 96
SHORT_K      = 3                                  # short_filter_order
FILTER_ORDER = 16                                 # implicit filter MLP width
EMB_DIM      = 3                                  # pos-emb dim: [t, cos, sin]
MOD_SHIFT    = 0.05                               # safari ExponentialModulation `shift`

BT           = BATCH * SEQ_LEN                    # fused batch*seq rows (32)
CENTER_START = (SEQ_LEN - CENTER_LEN) // 2
VOCAB_PAD    = 16                                 # embedding rows padded to 16
RNA_PAD      = 16                                 # rna features padded to 16 lanes
HEAD_IN_PAD  = D_MODEL + RNA_PAD                  # 48 (head Linear #1 input)
LOGIT_PAD    = 128                                # lane-dense padded logit slab

# ------------------- packed fp32 constant-slab row layout -------------------
# Every row is 32 lanes wide (== D_MODEL == BT).  fp32 GEMM weights
# (embedding, out_proj, head) also live here as stacked rows.
V_LN1_W, V_LN1_B = 0, 1
V_IN_B  = 2          # +s   (s = 0:x1, 1:x2, 2:v)
V_SC_W  = 5          # +s*SHORT_K + k   (k in causal-shift order)
V_SC_B  = 14         # +s
V_FBIAS = 17
V_OUT_B = 18
V_LN2_W, V_LN2_B = 19, 20
V_FC2_B = 21
VEC_PER_LAYER = 22

G_LNF_W, G_LNF_B, G_HB1, G_HB2, G_HW3, G_HB3 = 0, 1, 2, 3, 4, 5
N_GLOBAL_VEC = 6


def _build_const_layout():
    off, ptr = {}, 0

    def add(name, rows):
        nonlocal ptr
        ptr = ((ptr + 7) // 8) * 8            # keep every section sublane aligned
        off[name] = ptr
        ptr += rows

    add("bank", SEQ_LEN * BT)                 # block-diag causal 0/1 shift bank
    add("emb", VOCAB_PAD)                     # token embedding (fp32)
    add("kflt", N_LAYER * SEQ_LEN)            # implicit Hyena filters (precomputed)
    add("pool", BATCH)                        # center-crop mean-pool matrix
    add("out_w", N_LAYER * D_MODEL)           # out_proj weights (fp32)
    add("head_w1", HEAD_IN_PAD)               # head Linear #1 (fp32, rna-padded)
    add("head_w2", D_MODEL)                   # head Linear #2 (fp32)
    for i in range(N_LAYER):
        add(f"vec{i}", VEC_PER_LAYER)         # per-layer 1-D params
    add("gvec", N_GLOBAL_VEC)                 # final-LN + head vectors
    return off, ((ptr + 7) // 8) * 8


CONST_OFF, CONST_ROWS = _build_const_layout()


# ------------------------------ kernel helpers ------------------------------
def _layer_norm(x, w, b):
    mu = jnp.mean(x, axis=-1, keepdims=True)
    xc = x - mu
    var = jnp.mean(xc * xc, axis=-1, keepdims=True)
    return xc * lax.rsqrt(var + LN_EPS) * w + b


# ------------------------------ fused kernel --------------------------------
def gene_exp_hyena_kernel(seq_ref, rna_ref, cst_ref, fc1b_ref,
                          w_in_ref, w_fc1_ref, w_fc2_ref, out_ref):
    f32 = jnp.float32

    def vec(name, r=0):                       # one 32-wide fp32 parameter row
        return cst_ref[CONST_OFF[name] + r]

    def blk(name, r0, rows):                  # contiguous (rows, 32) fp32 block
        return cst_ref[pl.ds(CONST_OFF[name] + r0, rows), :]

    # ---- token embedding as one-hot x (VOCAB, D) matmul (no XLA gather) ----
    lanes = lax.broadcasted_iota(jnp.int32, (BT, VOCAB_PAD), 1)
    onehot = (lanes == seq_ref[...]).astype(f32)                  # (BT, 16)
    hidden = jnp.dot(onehot, blk("emb", 0, VOCAB_PAD),
                     preferred_element_type=f32)                  # (BT, D)
    residual = jnp.zeros_like(hidden)

    # causal shift bank (precomputed in the wrapper, block-diagonal over batch)
    bank_long = blk("bank", 0, SEQ_LEN * BT)      # all L shifts
    bank_short = blk("bank", 0, SHORT_K * BT)     # shifts 0..K-1

    for i in range(N_LAYER):
        lv = f"vec{i}"

        # ---------------- pre-norm residual + Hyena mixer --------------------
        residual = hidden + residual
        x = _layer_norm(residual, vec(lv, V_LN1_W), vec(lv, V_LN1_B))
        xb = x.astype(jnp.bfloat16)

        # in_proj as 3 lane-aligned D-wide streams; depthwise causal short conv
        # (K taps) via the 0/1 shift bank + weighted reduce (exact, fp32).
        streams = []
        for s in range(3):
            u = (jnp.dot(xb, w_in_ref[i, s], preferred_element_type=f32)
                 + vec(lv, V_IN_B + s))
            ush = jnp.dot(bank_short, u, preferred_element_type=f32)
            ush = ush.reshape(SHORT_K, BT, D_MODEL)
            c = vec(lv, V_SC_B + s)
            for k in range(SHORT_K):
                c = c + ush[k] * vec(lv, V_SC_W + s * SHORT_K + k)
            streams.append(c)
        x1, x2, v = streams

        # gate, long causal conv with implicit filter + bias skip (== fftconv)
        v = v * x2
        vsh = jnp.dot(bank_long, v, preferred_element_type=f32)
        vsh = vsh.reshape(SEQ_LEN, BT, D_MODEL)
        k_i = blk("kflt", i * SEQ_LEN, SEQ_LEN)                   # (L, D)
        v = jnp.sum(vsh * k_i[:, None, :], axis=0) + v * vec(lv, V_FBIAS)
        y = v * x1

        out_w = blk("out_w", i * D_MODEL, D_MODEL)                # fp32 out_proj
        hidden = jnp.dot(y, out_w, preferred_element_type=f32) + vec(lv, V_OUT_B)

        # ---------------- MLP sub-block (tanh-GELU, backbone default) --------
        residual = hidden + residual
        x = _layer_norm(residual, vec(lv, V_LN2_W), vec(lv, V_LN2_B))
        h = (jnp.dot(x.astype(jnp.bfloat16), w_fc1_ref[i],
                     preferred_element_type=f32) + fc1b_ref[i])
        h = jax.nn.gelu(h, approximate=True)
        hidden = (jnp.dot(h.astype(jnp.bfloat16), w_fc2_ref[i],
                          preferred_element_type=f32) + vec(lv, V_FC2_B))

    # -------- final LN, center-crop mean pool, fp32 MLP head -----------------
    residual = hidden + residual
    x = _layer_norm(residual, vec("gvec", G_LNF_W), vec("gvec", G_LNF_B))

    pooled = jnp.dot(blk("pool", 0, BATCH), x, preferred_element_type=f32)  # (B,D)
    pembed = jnp.concatenate([pooled, rna_ref[...]], axis=-1)               # (B,48)

    h1 = (jnp.dot(pembed, blk("head_w1", 0, HEAD_IN_PAD),
                  preferred_element_type=f32) + vec("gvec", G_HB1))
    h1 = jnp.maximum(h1, 0.0)
    h2 = (jnp.dot(h1, blk("head_w2", 0, D_MODEL),
                  preferred_element_type=f32) + vec("gvec", G_HB2))
    h2 = jnp.maximum(h2, 0.0)
    logit = (jnp.sum(h2 * vec("gvec", G_HW3), axis=-1, keepdims=True)
             + vec("gvec", G_HB3)[:1])

    # lane-dense padded output slab; wrapper keeps the first lane
    out_ref[...] = jnp.broadcast_to(logit, (BATCH, LOGIT_PAD))


# ------------------------------ wrapper --------------------------------------
def _full_spec(shape):
    nd = len(shape)
    return pl.BlockSpec(shape, lambda i, _nd=nd: (0,) * _nd)


def gene_exp_hyena_forward(seqs, rna_feat, packed):
    seq_col = seqs.reshape(BT, 1).astype(jnp.int32)
    rna_pad = jnp.zeros((BATCH, RNA_PAD), jnp.float32)
    rna_pad = rna_pad.at[:, :RNA_DIM].set(rna_feat.astype(jnp.float32))

    args = (seq_col, rna_pad, packed["cst"], packed["fc1_b"],
            packed["w_in"], packed["w_fc1"], packed["w_fc2"])

    out = pl.pallas_call(
        gene_exp_hyena_kernel,
        grid=(1,),                               # whole batch fused in one step
        out_shape=jax.ShapeDtypeStruct((BATCH, LOGIT_PAD), jnp.float32),
        in_specs=[_full_spec(a.shape) for a in args],
        out_specs=_full_spec((BATCH, LOGIT_PAD)),
        compiler_params=pltpu.CompilerParams(
            dimension_semantics=("arbitrary",)),
    )(*args)
    return out[:, :1]                            # strip lane padding -> (B, 1)


# ------------------ one-time packing of parameters into slabs ----------------
def pack_params(params):
    f32, bf16 = jnp.float32, jnp.bfloat16
    lp, hp = params["layers"], params["head"]
    D = D_MODEL

    # ---- implicit Hyena filters (input independent -> hoisted out of kernel)
    pos_z = params["pos_z"]
    pos_t = pos_z[:, :1]
    kflt = []
    for i in range(N_LAYER):
        freq = lp["f_freq"][i][None, :]
        h = pos_z @ lp["f_w0"][i] + lp["f_b0"][i][None, :]
        h = jnp.sin(freq * h)
        h = h @ lp["f_w1"][i] + lp["f_b1"][i][None, :]
        h = jnp.sin(freq * h)
        h = h @ lp["f_w2"][i] + lp["f_b2"][i][None, :]
        h = jnp.sin(freq * h)
        k = h @ lp["f_w3"][i]                                     # (L, D)
        decay = jnp.exp(-pos_t * jnp.abs(lp["f_decay"][i])[None, :])
        kflt.append(k * (decay + MOD_SHIFT))                      # ExponentialModulation
    kflt = jnp.concatenate(kflt, axis=0)                          # (N_LAYER*L, D)

    # ---- block-diagonal (per batch element) causal 0/1 shift bank ----
    s_idx = jnp.arange(SEQ_LEN)[:, None, None]
    t_idx = jnp.arange(BT)[None, :, None]
    l_idx = jnp.arange(BT)[None, None, :]
    bank = ((t_idx - l_idx == s_idx) & (t_idx // SEQ_LEN == l_idx // SEQ_LEN))
    bank = bank.astype(f32).reshape(SEQ_LEN * BT, BT)

    # ---- center-crop mean-pool matrix (B, BT) ----
    b_idx = jnp.arange(BATCH)[:, None]
    t2 = jnp.arange(BT)[None, :]
    pos = t2 - b_idx * SEQ_LEN
    in_ctr = (pos >= CENTER_START) & (pos < CENTER_START + CENTER_LEN)
    pool = jnp.where(in_ctr & (t2 // SEQ_LEN == b_idx),
                     1.0 / CENTER_LEN, 0.0).astype(f32)

    emb = jnp.zeros((VOCAB_PAD, D), f32).at[:VOCAB].set(params["embedding"])
    head_w1 = (jnp.zeros((HEAD_IN_PAD, D), f32)
               .at[:D].set(hp["w1a"])
               .at[D:D + RNA_DIM].set(hp["w1b"]))

    # ---- fp32 constant slab ----
    cst = jnp.zeros((CONST_ROWS, D), f32)

    def put(name, block, r=0):
        off = CONST_OFF[name] + r
        return cst.at[off:off + block.shape[0]].set(block.astype(f32))

    cst = put("bank", bank)
    cst = put("emb", emb)
    cst = put("kflt", kflt)
    cst = put("pool", pool)
    cst = put("out_w", jnp.concatenate([lp["out_w"][i] for i in range(N_LAYER)], 0))
    cst = put("head_w1", head_w1)
    cst = put("head_w2", hp["w2"])

    for i in range(N_LAYER):
        in_b, sc_w, sc_b = lp["in_b"][i], lp["sc_w"][i], lp["sc_b"][i]
        rows = [lp["ln1_w"][i], lp["ln1_b"][i],
                in_b[0:D], in_b[D:2 * D], in_b[2 * D:3 * D]]
        for s in range(3):
            for k in range(SHORT_K):
                rows.append(sc_w[k, s * D:(s + 1) * D])
        rows += [sc_b[0:D], sc_b[D:2 * D], sc_b[2 * D:3 * D],
                 lp["f_bias"][i], lp["out_b"][i],
                 lp["ln2_w"][i], lp["ln2_b"][i], lp["fc2_b"][i]]
        cst = put(f"vec{i}", jnp.stack(rows, 0))

    grows = jnp.stack([params["lnf_w"], params["lnf_b"],
                       hp["b1"], hp["b2"], hp["w3"],
                       jnp.broadcast_to(hp["b3"], (D,))], 0)
    cst = put("gvec", grows)

    # ---- bf16 GEMM weight slabs (pre-cast; activations cast in-kernel) ----
    w_in = jnp.stack(
        [jnp.stack([lp["in_w"][i][:, s * D:(s + 1) * D] for s in range(3)], 0)
         for i in range(N_LAYER)], 0).astype(bf16)                # (NL, 3, D, D)

    return dict(cst=cst,
                fc1_b=lp["fc1_b"].astype(f32),                    # (NL, 128)
                w_in=w_in,
                w_fc1=lp["fc1_w"].astype(bf16),                   # (NL, 32, 128)
                w_fc2=lp["fc2_w"].astype(bf16))                   # (NL, 128, 32)


# ------------------------- deterministic param init -------------------------
def init_params(key):
    def normal(k, shape, scale):
        return (scale * jax.random.normal(k, shape)).astype(jnp.float32)

    keys = iter(jax.random.split(key, 64))
    nk = lambda: next(keys)

    params = {"embedding": normal(nk(), (VOCAB, D_MODEL), 0.02)}

    # PositionalEmbedding buffer z = cat([t, Re e^{-i f w}, Im e^{-i f w}], -1)
    t01 = jnp.linspace(0.0, 1.0, SEQ_LEN)[:, None]
    t_resc = jnp.linspace(0.0, SEQ_LEN - 1.0, SEQ_LEN)[:, None]
    w_ang = 2.0 * math.pi * t_resc / SEQ_LEN
    f_band = 1e-4
    params["pos_z"] = jnp.concatenate(
        [t01, jnp.cos(f_band * w_ang), -jnp.sin(f_band * w_ang)],
        axis=-1).astype(jnp.float32)                              # (L, EMB_DIM)

    # ExponentialModulation deltas buffer
    fast, slow, target = 0.3, 1.5, 1e-2
    deltas = jnp.linspace(math.log(target) / slow, math.log(target) / fast,
                          D_MODEL).astype(jnp.float32)

    def make_layer():
        return dict(
            ln1_w=jnp.ones((D_MODEL,), jnp.float32),
            ln1_b=jnp.zeros((D_MODEL,), jnp.float32),
            # nn.Linear weights stored as (in, out) == torch weight.T
            in_w=normal(nk(), (D_MODEL, D_IN_PROJ), D_MODEL ** -0.5),
            in_b=jnp.zeros((D_IN_PROJ,), jnp.float32),
            # depthwise causal conv taps in shift order:
            #   sc_w[s, c] == torch short_filter.weight[c, 0, SHORT_K - 1 - s]
            sc_w=normal(nk(), (SHORT_K, D_IN_PROJ), SHORT_K ** -0.5),
            sc_b=jnp.zeros((D_IN_PROJ,), jnp.float32),
            f_w0=normal(nk(), (EMB_DIM, FILTER_ORDER), EMB_DIM ** -0.5),
            f_b0=jnp.zeros((FILTER_ORDER,), jnp.float32),
            f_w1=normal(nk(), (FILTER_ORDER, FILTER_ORDER), FILTER_ORDER ** -0.5),
            f_b1=jnp.zeros((FILTER_ORDER,), jnp.float32),
            f_w2=normal(nk(), (FILTER_ORDER, FILTER_ORDER), FILTER_ORDER ** -0.5),
            f_b2=jnp.zeros((FILTER_ORDER,), jnp.float32),
            f_w3=normal(nk(), (FILTER_ORDER, D_MODEL), FILTER_ORDER ** -0.5),
            f_freq=jnp.ones((FILTER_ORDER,), jnp.float32),        # Sin act (w=1)
            f_decay=deltas,
            f_bias=normal(nk(), (D_MODEL,), 1.0),                 # fftconv skip bias
            out_w=normal(nk(), (D_MODEL, D_MODEL), D_MODEL ** -0.5),
            out_b=jnp.zeros((D_MODEL,), jnp.float32),
            ln2_w=jnp.ones((D_MODEL,), jnp.float32),
            ln2_b=jnp.zeros((D_MODEL,), jnp.float32),
            fc1_w=normal(nk(), (D_MODEL, D_MLP), D_MODEL ** -0.5),
            fc1_b=jnp.zeros((D_MLP,), jnp.float32),
            fc2_w=normal(nk(), (D_MLP, D_MODEL), D_MLP ** -0.5),
            fc2_b=jnp.zeros((D_MODEL,), jnp.float32),
        )

    per_layer = [make_layer() for _ in range(N_LAYER)]
    params["layers"] = {k: jnp.stack([p[k] for p in per_layer], axis=0)
                        for k in per_layer[0]}

    params["lnf_w"] = jnp.ones((D_MODEL,), jnp.float32)
    params["lnf_b"] = jnp.zeros((D_MODEL,), jnp.float32)
    params["head"] = dict(
        # pToExpr[0].weight.T split into pooled-hidden block and rna block
        w1a=normal(nk(), (D_MODEL, D_MODEL), (D_MODEL + RNA_DIM) ** -0.5),
        w1b=normal(nk(), (RNA_DIM, D_MODEL), (D_MODEL + RNA_DIM) ** -0.5),
        b1=jnp.zeros((D_MODEL,), jnp.float32),
        w2=normal(nk(), (D_MODEL, D_MODEL), D_MODEL ** -0.5),
        b2=jnp.zeros((D_MODEL,), jnp.float32),
        w3=normal(nk(), (D_MODEL,), D_MODEL ** -0.5),             # pToExpr[-1].weight
        b3=jnp.zeros((), jnp.float32),
    )
    return params


# TODO(synk): torch.fft.rfft/irfft (Hyena fftconv) has no Pallas primitive; the
# long conv is computed exactly in the time domain via the precomputed causal
# shift bank, which is mathematically identical for the zero-padded FFT conv.

if __name__ == "__main__":
    key = jax.random.PRNGKey(0)
    k_param, k_seq, k_rna = jax.random.split(key, 3)
    params = init_params(k_param)
    packed = pack_params(params)      # one-time slab packing (outside hot path)

    seqs = jax.random.randint(k_seq, (BATCH, SEQ_LEN), 0, VOCAB, dtype=jnp.int32)
    rna_feat = jax.random.normal(k_rna, (BATCH, RNA_DIM), dtype=jnp.float32)

    fwd = jax.jit(gene_exp_hyena_forward)
    logits = jax.block_until_ready(fwd(seqs, rna_feat, packed))

    assert logits.shape == (BATCH, 1), logits.shape
    assert logits.dtype == jnp.float32, logits.dtype
    assert bool(jnp.all(jnp.isfinite(logits)))
    print("KERNEL_OK")
</pallas_src>

<mosaic_0001>
module attributes {stable_mosaic.version = 11 : i64} {
  func.func @gene_exp_hyena_kernel(%arg0: i32, %arg1: memref<32x1xi32, #tpu.memory_space<vmem>>, %arg2: memref<2x16xf32, #tpu.memory_space<vmem>>, %arg3: memref<768x32xf32, #tpu.memory_space<vmem>>, %arg4: memref<2x128xf32, #tpu.memory_space<vmem>>, %arg5: memref<2x3x32x32xbf16, #tpu.memory_space<vmem>>, %arg6: memref<2x32x128xbf16, #tpu.memory_space<vmem>>, %arg7: memref<2x128x32xbf16, #tpu.memory_space<vmem>>, %arg8: memref<2x128xf32, #tpu.memory_space<vmem>>) attributes {dimension_semantics = [#tpu.dimension_semantics<arbitrary>], iteration_bounds = array<i64: 1>, scalar_prefetch = 0 : i64, scratch_operands = 0 : i64, tpu.core_type = #tpu.core_type<tc>, window_params = [{pipeline_mode = #tpu.pipeline_mode<synchronous>, transform_indices = @transform_0, window_bounds = array<i64: 32, 1>}, {pipeline_mode = #tpu.pipeline_mode<synchronous>, transform_indices = @transform_1, window_bounds = array<i64: 2, 16>}, {pipeline_mode = #tpu.pipeline_mode<synchronous>, transform_indices = @transform_2, window_bounds = array<i64: 768, 32>}, {pipeline_mode = #tpu.pipeline_mode<synchronous>, transform_indices = @transform_3, window_bounds = array<i64: 2, 128>}, {pipeline_mode = #tpu.pipeline_mode<synchronous>, transform_indices = @transform_4, window_bounds = array<i64: 2, 3, 32, 32>}, {pipeline_mode = #tpu.pipeline_mode<synchronous>, transform_indices = @transform_5, window_bounds = array<i64: 2, 32, 128>}, {pipeline_mode = #tpu.pipeline_mode<synchronous>, transform_indices = @transform_6, window_bounds = array<i64: 2, 128, 32>}, {pipeline_mode = #tpu.pipeline_mode<synchronous>, transform_indices = @transform_7, window_bounds = array<i64: 2, 128>}]} {
    %0 = tpu.iota {dimensions = array<i32: 1>} : vector<32x16xi32>
    %c0 = arith.constant 0 : index
    %c0_0 = arith.constant 0 : index
    %1 = vector.load %arg1[%c0, %c0_0] : memref<32x1xi32, #tpu.memory_space<vmem>>, vector<32x1xi32>
    %2 = vector.broadcast %1 : vector<32x1xi32> to vector<32x16xi32>
    %3 = arith.cmpi eq, %0, %2 : vector<32x16xi32>
    %4 = arith.extui %3 : vector<32x16xi1> to vector<32x16xi32>
    %5 = arith.sitofp %4 : vector<32x16xi32> to vector<32x16xf32>
    %c512 = arith.constant 512 : index
    %c0_1 = arith.constant 0 : index
    %6 = vector.load %arg3[%c512, %c0_1] : memref<768x32xf32, #tpu.memory_space<vmem>>, vector<16x32xf32>
    %cst = arith.constant dense<0.000000e+00> : vector<32x32xf32>
    %7 = tpu.matmul %5, %6, %cst {dimension_numbers = #tpu.dot_dimension_numbers<[1], [0], [0], [1], [0, 0, 1, 1], [], []>} : vector<32x16xf32>, vector<16x32xf32>, vector<32x32xf32> -> vector<32x32xf32>
    %cst_2 = arith.constant 0.000000e+00 : f32
    %8 = vector.broadcast %cst_2 : f32 to vector<32x32xf32>
    %c0_3 = arith.constant 0 : index
    %c0_4 = arith.constant 0 : index
    %9 = vector.load %arg3[%c0_3, %c0_4] : memref<768x32xf32, #tpu.memory_space<vmem>>, vector<512x32xf32>
    %c0_5 = arith.constant 0 : index
    %c0_6 = arith.constant 0 : index
    %10 = vector.load %arg3[%c0_5, %c0_6] : memref<768x32xf32, #tpu.memory_space<vmem>>, vector<96x32xf32>
    %11 = arith.addf %7, %8 : vector<32x32xf32>
    %c712 = arith.constant 712 : index
    %c0_7 = arith.constant 0 : index
    %12 = vector.load %arg3[%c712, %c0_7] : memref<768x32xf32, #tpu.memory_space<vmem>>, vector<1x32xf32>
    %13 = vector.shape_cast %12 : vector<1x32xf32> to vector<32xf32>
    %c713 = arith.constant 713 : index
    %c0_8 = arith.constant 0 : index
    %14 = vector.load %arg3[%c713, %c0_8] : memref<768x32xf32, #tpu.memory_space<vmem>>, vector<1x32xf32>
    %15 = vector.shape_cast %14 : vector<1x32xf32> to vector<32xf32>
    %cst_9 = arith.constant dense<0.000000e+00> : vector<32xf32>
    %16 = vector.multi_reduction <add>, %11, %cst_9 [1] : vector<32x32xf32> to vector<32xf32>
    %17 = vector.shape_cast %16 : vector<32xf32> to vector<32x1xf32>
    %cst_10 = arith.constant 3.200000e+01 : f32
    %18 = vector.broadcast %cst_10 : f32 to vector<32x1xf32>
    %19 = arith.divf %17, %18 : vector<32x1xf32>
    %20 = vector.broadcast %19 : vector<32x1xf32> to vector<32x32xf32>
    %21 = arith.subf %11, %20 : vector<32x32xf32>
    %22 = arith.mulf %21, %21 : vector<32x32xf32>
    %cst_11 = arith.constant dense<0.000000e+00> : vector<32xf32>
    %23 = vector.multi_reduction <add>, %22, %cst_11 [1] : vector<32x32xf32> to vector<32xf32>
    %24 = vector.shape_cast %23 : vector<32xf32> to vector<32x1xf32>
    %cst_12 = arith.constant 3.200000e+01 : f32
    %25 = vector.broadcast %cst_12 : f32 to vector<32x1xf32>
    %26 = arith.divf %24, %25 : vector<32x1xf32>
    %cst_13 = arith.constant 9.99999974E-6 : f32
    %27 = vector.broadcast %cst_13 : f32 to vector<32x1xf32>
    %28 = arith.addf %26, %27 : vector<32x1xf32>
    %29 = math.rsqrt %28 : vector<32x1xf32>
    %30 = vector.broadcast %29 : vector<32x1xf32> to vector<32x32xf32>
    %31 = arith.mulf %21, %30 : vector<32x32xf32>
    %32 = vector.shape_cast %13 : vector<32xf32> to vector<1x32xf32>
    %33 = vector.broadcast %32 : vector<1x32xf32> to vector<32x32xf32>
    %34 = arith.mulf %31, %33 : vector<32x32xf32>
    %35 = vector.shape_cast %15 : vector<32xf32> to vector<1x32xf32>
    %36 = vector.broadcast %35 : vector<1x32xf32> to vector<32x32xf32>
    %37 = arith.addf %34, %36 : vector<32x32xf32>
    %38 = arith.truncf %37 : vector<32x32xf32> to vector<32x32xbf16>
    %c0_14 = arith.constant 0 : index
    %c0_15 = arith.constant 0 : index
    %c0_16 = arith.constant 0 : index
    %c0_17 = arith.constant 0 : index
    %39 = vector.load %arg5[%c0_14, %c0_15, %c0_16, %c0_17] : memref<2x3x32x32xbf16, #tpu.memory_space<vmem>>, vector<1x1x32x32xbf16>
    %40 = vector.shape_cast %39 : vector<1x1x32x32xbf16> to vector<32x32xbf16>
    %cst_18 = arith.constant dense<0.000000e+00> : vector<32x32xf32>
    %41 = tpu.matmul %38, %40, %cst_18 {dimension_numbers = #tpu.dot_dimension_numbers<[1], [0], [0], [1], [0, 0, 1, 1], [], []>} : vector<32x32xbf16>, vector<32x32xbf16>, vector<32x32xf32> -> vector<32x32xf32>
    %c714 = arith.constant 714 : index
    %c0_19 = arith.constant 0 : index
    %42 = vector.load %arg3[%c714, %c0_19] : memref<768x32xf32, #tpu.memory_space<vmem>>, vector<1x32xf32>
    %43 = vector.shape_cast %42 : vector<1x32xf32> to vector<32xf32>
    %44 = vector.shape_cast %43 : vector<32xf32> to vector<1x32xf32>
    %45 = vector.broadcast %44 : vector<1x32xf32> to vector<32x32xf32>
    %46 = arith.addf %41, %45 : vector<32x32xf32>
    %cst_20 = arith.constant dense<0.000000e+00> : vector<96x32xf32>
    %47 = tpu.matmul %10, %46, %cst_20 {dimension_numbers = #tpu.dot_dimension_numbers<[1], [0], [0], [1], [0, 0, 1, 1], [], []>} : vector<96x32xf32>, vector<32x32xf32>, vector<96x32xf32> -> vector<96x32xf32>
    %48 = vector.shape_cast %47 : vector<96x32xf32> to vector<3x32x32xf32>
    %c726 = arith.constant 726 : index
    %c0_21 = arith.constant 0 : index
    %49 = vector.load %arg3[%c726, %c0_21] : memref<768x32xf32, #tpu.memory_space<vmem>>, vector<1x32xf32>
    %50 = vector.shape_cast %49 : vector<1x32xf32> to vector<32xf32>
    %51 = vector.extract_strided_slice %48 {offsets = [0, 0, 0], sizes = [1, 32, 32], strides = [1, 1, 1]} : vector<3x32x32xf32> to vector<1x32x32xf32>
    %52 = vector.shape_cast %51 : vector<1x32x32xf32> to vector<32x32xf32>
    %c717 = arith.constant 717 : index
    %c0_22 = arith.constant 0 : index
    %53 = vector.load %arg3[%c717, %c0_22] : memref<768x32xf32, #tpu.memory_space<vmem>>, vector<1x32xf32>
    %54 = vector.shape_cast %53 : vector<1x32xf32> to vector<32xf32>
    %55 = vector.shape_cast %54 : vector<32xf32> to vector<1x32xf32>
    %56 = vector.broadcast %55 : vector<1x32xf32> to vector<32x32xf32>
    %57 = arith.mulf %52, %56 : vector<32x32xf32>
    %58 = vector.shape_cast %50 : vector<32xf32> to vector<1x32xf32>
    %59 = vector.broadcast %58 : vector<1x32xf32> to vector<32x32xf32>
    %60 = arith.addf %59, %57 : vector<32x32xf32>
    %61 = vector.extract_strided_slice %48 {offsets = [1, 0, 0], sizes = [1, 32, 32], strides = [1, 1, 1]} : vector<3x32x32xf32> to vector<1x32x32xf32>
    %62 = vector.shape_cast %61 : vector<1x32x32xf32> to vector<32x32xf32>
    %c718 = arith.constant 718 : index
    %c0_23 = arith.constant 0 : index
    %63 = vector.load %arg3[%c718, %c0_23] : memref<768x32xf32, #tpu.memory_space<vmem>>, vector<1x32xf32>
    %64 = vector.shape_cast %63 : vector<1x32xf32> to vector<32xf32>
    %65 = vector.shape_cast %64 : vector<32xf32> to vector<1x32xf32>
    %66 = vector.broadcast %65 : vector<1x32xf32> to vector<32x32xf32>
    %67 = arith.mulf %62, %66 : vector<32x32xf32>
    %68 = arith.addf %60, %67 : vector<32x32xf32>
    %69 = vector.extract_strided_slice %48 {offsets = [2, 0, 0], sizes = [1, 32, 32], strides = [1, 1, 1]} : vector<3x32x32xf32> to vector<1x32x32xf32>
    %70 = vector.shape_cast %69 : vector<1x32x32xf32> to vector<32x32xf32>
    %c719 = arith.constant 719 : index
    %c0_24 = arith.constant 0 : index
    %71 = vector.load %arg3[%c719, %c0_24] : memref<768x32xf32, #tpu.memory_space<vmem>>, vector<1x32xf32>
    %72 = vector.shape_cast %71 : vector<1x32xf32> to vector<32xf32>
    %73 = vector.shape_cast %72 : vector<32xf32> to vector<1x32xf32>
    %74 = vector.broadcast %73 : vector<1x32xf32> to vector<32x32xf32>
    %75 = arith.mulf %70, %74 : vector<32x32xf32>
    %76 = arith.addf %68, %75 : vector<32x32xf32>
    %c0_25 = arith.constant 0 : index
    %c1 = arith.constant 1 : index
    %c0_26 = arith.constant 0 : index
    %c0_27 = arith.constant 0 : index
    %77 = vector.load %arg5[%c0_25, %c1, %c0_26, %c0_27] : memref<2x3x32x32xbf16, #tpu.memory_space<vmem>>, vector<1x1x32x32xbf16>
    %78 = vector.shape_cast %77 : vector<1x1x32x32xbf16> to vector<32x32xbf16>
    %cst_28 = arith.constant dense<0.000000e+00> : vector<32x32xf32>
    %79 = tpu.matmul %38, %78, %cst_28 {dimension_numbers = #tpu.dot_dimension_numbers<[1], [0], [0], [1], [0, 0, 1, 1], [], []>} : vector<32x32xbf16>, vector<32x32xbf16>, vector<32x32xf32> -> vector<32x32xf32>
    %c715 = arith.constant 715 : index
    %c0_29 = arith.constant 0 : index
    %80 = vector.load %arg3[%c715, %c0_29] : memref<768x32xf32, #tpu.memory_space<vmem>>, vector<1x32xf32>
    %81 = vector.shape_cast %80 : vector<1x32xf32> to vector<32xf32>
    %82 = vector.shape_cast %81 : vector<32xf32> to vector<1x32xf32>
    %83 = vector.broadcast %82 : vector<1x32xf32> to vector<32x32xf32>
    %84 = arith.addf %79, %83 : vector<32x32xf32>
    %cst_30 = arith.constant dense<0.000000e+00> : vector<96x32xf32>
    %85 = tpu.matmul %10, %84, %cst_30 {dimension_numbers = #tpu.dot_dimension_numbers<[1], [0], [0], [1], [0, 0, 1, 1], [], []>} : vector<96x32xf32>, vector<32x32xf32>, vector<96x32xf32> -> vector<96x32xf32>
    %86 = vector.shape_cast %85 : vector<96x32xf32> to vector<3x32x32xf32>
    %c727 = arith.constant 727 : index
    %c0_31 = arith.constant 0 : index
    %87 = vector.load %arg3[%c727, %c0_31] : memref<768x32xf32, #tpu.memory_space<vmem>>, vector<1x32xf32>
    %88 = vector.shape_cast %87 : vector<1x32xf32> to vector<32xf32>
    %89 = vector.extract_strided_slice %86 {offsets = [0, 0, 0], sizes = [1, 32, 32], strides = [1, 1, 1]} : vector<3x32x32xf32> to vector<1x32x32xf32>
    %90 = vector.shape_cast %89 : vector<1x32x32xf32> to vector<32x32xf32>
    %c720 = arith.constant 720 : index
    %c0_32 = arith.constant 0 : index
    %91 = vector.load %arg3[%c720, %c0_32] : memref<768x32xf32, #tpu.memory_space<vmem>>, vector<1x32xf32>
    %92 = vector.shape_cast %91 : vector<1x32xf32> to vector<32xf32>
    %93 = vector.shape_cast %92 : vector<32xf32> to vector<1x32xf32>
    %94 = vector.broadcast %93 : vector<1x32xf32> to vector<32x32xf32>
    %95 = arith.mulf %90, %94 : vector<32x32xf32>
    %96 = vector.shape_cast %88 : vector<32xf32> to vector<1x32xf32>
    %97 = vector.broadcast %96 : vector<1x32xf32> to vector<32x32xf32>
    %98 = arith.addf %97, %95 : vector<32x32xf32>
    %99 = vector.extract_strided_slice %86 {offsets = [1, 0, 0], sizes = [1, 32, 32], strides = [1, 1, 1]} : vector<3x32x32xf32> to vector<1x32x32xf32>
    %100 = vector.shape_cast %99 : vector<1x32x32xf32> to vector<32x32xf32>
    %c721 = arith.constant 721 : index
    %c0_33 = arith.constant 0 : index
    %101 = vector.load %arg3[%c721, %c0_33] : memref<768x32xf32, #tpu.memory_space<vmem>>, vector<1x32xf32>
    %102 = vector.shape_cast %101 : vector<1x32xf32> to vector<32xf32>
    %103 = vector.shape_cast %102 : vector<32xf32> to vector<1x32xf32>
    %104 = vector.broadcast %103 : vector<1x32xf32> to vector<32x32xf32>
    %105 = arith.mulf %100, %104 : vector<32x32xf32>
    %106 = arith.addf %98, %105 : vector<32x32xf32>
    %107 = vector.extract_strided_slice %86 {offsets = [2, 0, 0], sizes = [1, 32, 32], strides = [1, 1, 1]} : vector<3x32x32xf32> to vector<1x32x32xf32>
    %108 = vector.shape_cast %107 : vector<1x32x32xf32> to vector<32x32xf32>
    %c722 = arith.constant 722 : index
    %c0_34 = arith.constant 0 : index
    %109 = vector.load %arg3[%c722, %c0_34] : memref<768x32xf32, #tpu.memory_space<vmem>>, vector<1x32xf32>
    %110 = vector.shape_cast %109 : vector<1x32xf32> to vector<32xf32>
    %111 = vector.shape_cast %110 : vector<32xf32> to vector<1x32xf32>
    %112 = vector.broadcast %111 : vector<1x32xf32> to vector<32x32xf32>
    %113 = arith.mulf %108, %112 : vector<32x32xf32>
    %114 = arith.addf %106, %113 : vector<32x32xf32>
    %c0_35 = arith.constant 0 : index
    %c2 = arith.constant 2 : index
    %c0_36 = arith.constant 0 : index
    %c0_37 = arith.constant 0 : index
    %115 = vector.load %arg5[%c0_35, %c2, %c0_36, %c0_37] : memref<2x3x32x32xbf16, #tpu.memory_space<vmem>>, vector<1x1x32x32xbf16>
    %116 = vector.shape_cast %115 : vector<1x1x32x32xbf16> to vector<32x32xbf16>
    %cst_38 = arith.constant dense<0.000000e+00> : vector<32x32xf32>
    %117 = tpu.matmul %38, %116, %cst_38 {dimension_numbers = #tpu.dot_dimension_numbers<[1], [0], [0], [1], [0, 0, 1, 1], [], []>} : vector<32x32xbf16>, vector<32x32xbf16>, vector<32x32xf32> -> vector<32x32xf32>
    %c716 = arith.constant 716 : index
    %c0_39 = arith.constant 0 : index
    %118 = vector.load %arg3[%c716, %c0_39] : memref<768x32xf32, #tpu.memory_space<vmem>>, vector<1x32xf32>
    %119 = vector.shape_cast %118 : vector<1x32xf32> to vector<32xf32>
    %120 = vector.shape_cast %119 : vector<32xf32> to vector<1x32xf32>
    %121 = vector.broadcast %120 : vector<1x32xf32> to vector<32x32xf32>
    %122 = arith.addf %117, %121 : vector<32x32xf32>
    %cst_40 = arith.constant dense<0.000000e+00> : vector<96x32xf32>
    %123 = tpu.matmul %10, %122, %cst_40 {dimension_numbers = #tpu.dot_dimension_numbers<[1], [0], [0], [1], [0, 0, 1, 1], [], []>} : vector<96x32xf32>, vector<32x32xf32>, vector<96x32xf32> -> vector<96x32xf32>
    %124 = vector.shape_cast %123 : vector<96x32xf32> to vector<3x32x32xf32>
    %c728 = arith.constant 728 : index
    %c0_41 = arith.constant 0 : index
    %125 = vector.load %arg3[%c728, %c0_41] : memref<768x32xf32, #tpu.memory_space<vmem>>, vector<1x32xf32>
    %126 = vector.shape_cast %125 : vector<1x32xf32> to vector<32xf32>
    %127 = vector.extract_strided_slice %124 {offsets = [0, 0, 0], sizes = [1, 32, 32], strides = [1, 1, 1]} : vector<3x32x32xf32> to vector<1x32x32xf32>
    %128 = vector.shape_cast %127 : vector<1x32x32xf32> to vector<32x32xf32>
    %c723 = arith.constant 723 : index
    %c0_42 = arith.constant 0 : index
    %129 = vector.load %arg3[%c723, %c0_42] : memref<768x32xf32, #tpu.memory_space<vmem>>, vector<1x32xf32>
    %130 = vector.shape_cast %129 : vector<1x32xf32> to vector<32xf32>
    %131 = vector.shape_cast %130 : vector<32xf32> to vector<1x32xf32>
    %132 = vector.broadcast %131 : vector<1x32xf32> to vector<32x32xf32>
    %133 = arith.mulf %128, %132 : vector<32x32xf32>
    %134 = vector.shape_cast %126 : vector<32xf32> to vector<1x32xf32>
    %135 = vector.broadcast %134 : vector<1x32xf32> to vector<32x32xf32>
    %136 = arith.addf %135, %133 : vector<32x32xf32>
    %137 = vector.extract_strided_slice %124 {offsets = [1, 0, 0], sizes = [1, 32, 32], strides = [1, 1, 1]} : vector<3x32x32xf32> to vector<1x32x32xf32>
    %138 = vector.shape_cast %137 : vector<1x32x32xf32> to vector<32x32xf32>
    %c724 = arith.constant 724 : index
    %c0_43 = arith.constant 0 : index
    %139 = vector.load %arg3[%c724, %c0_43] : memref<768x32xf32, #tpu.memory_space<vmem>>, vector<1x32xf32>
    %140 = vector.shape_cast %139 : vector<1x32xf32> to vector<32xf32>
    %141 = vector.shape_cast %140 : vector<32xf32> to vector<1x32xf32>
    %142 = vector.broadcast %141 : vector<1x32xf32> to vector<32x32xf32>
    %143 = arith.mulf %138, %142 : vector<32x32xf32>
    %144 = arith.addf %136, %143 : vector<32x32xf32>
    %145 = vector.extract_strided_slice %124 {offsets = [2, 0, 0], sizes = [1, 32, 32], strides = [1, 1, 1]} : vector<3x32x32xf32> to vector<1x32x32xf32>
    %146 = vector.shape_cast %145 : vector<1x32x32xf32> to vector<32x32xf32>
    %c725 = arith.constant 725 : index
    %c0_44 = arith.constant 0 : index
    %147 = vector.load %arg3[%c725, %c0_44] : memref<768x32xf32, #tpu.memory_space<vmem>>, vector<1x32xf32>
    %148 = vector.shape_cast %147 : vector<1x32xf32> to vector<32xf32>
    %149 = vector.shape_cast %148 : vector<32xf32> to vector<1x32xf32>
    %150 = vector.broadcast %149 : vector<1x32xf32> to vector<32x32xf32>
    %151 = arith.mulf %146, %150 : vector<32x32xf32>
    %152 = arith.addf %144, %151 : vector<32x32xf32>
    %153 = arith.mulf %152, %114 : vector<32x32xf32>
    %cst_45 = arith.constant dense<0.000000e+00> : vector<512x32xf32>
    %154 = tpu.matmul %9, %153, %cst_45 {dimension_numbers = #tpu.dot_dimension_numbers<[1], [0], [0], [1], [0, 0, 1, 1], [], []>} : vector<512x32xf32>, vector<32x32xf32>, vector<512x32xf32> -> vector<512x32xf32>
    %155 = vector.shape_cast %154 : vector<512x32xf32> to vector<16x32x32xf32>
    %c528 = arith.constant 528 : index
    %c0_46 = arith.constant 0 : index
    %156 = vector.load %arg3[%c528, %c0_46] : memref<768x32xf32, #tpu.memory_space<vmem>>, vector<16x32xf32>
    %157 = vector.shape_cast %156 : vector<16x32xf32> to vector<16x1x32xf32>
    %158 = vector.broadcast %157 : vector<16x1x32xf32> to vector<16x32x32xf32>
    %159 = arith.mulf %155, %158 : vector<16x32x32xf32>
    %cst_47 = arith.constant dense<0.000000e+00> : vector<32x32xf32>
    %160 = vector.multi_reduction <add>, %159, %cst_47 [0] : vector<16x32x32xf32> to vector<32x32xf32>
    %c729 = arith.constant 729 : index
    %c0_48 = arith.constant 0 : index
    %161 = vector.load %arg3[%c729, %c0_48] : memref<768x32xf32, #tpu.memory_space<vmem>>, vector<1x32xf32>
    %162 = vector.shape_cast %161 : vector<1x32xf32> to vector<32xf32>
    %163 = vector.shape_cast %162 : vector<32xf32> to vector<1x32xf32>
    %164 = vector.broadcast %163 : vector<1x32xf32> to vector<32x32xf32>
    %165 = arith.mulf %153, %164 : vector<32x32xf32>
    %166 = arith.addf %160, %165 : vector<32x32xf32>
    %167 = arith.mulf %166, %76 : vector<32x32xf32>
    %c568 = arith.constant 568 : index
    %c0_49 = arith.constant 0 : index
    %168 = vector.load %arg3[%c568, %c0_49] : memref<768x32xf32, #tpu.memory_space<vmem>>, vector<32x32xf32>
    %cst_50 = arith.constant dense<0.000000e+00> : vector<32x32xf32>
    %169 = tpu.matmul %167, %168, %cst_50 {dimension_numbers = #tpu.dot_dimension_numbers<[1], [0], [0], [1], [0, 0, 1, 1], [], []>} : vector<32x32xf32>, vector<32x32xf32>, vector<32x32xf32> -> vector<32x32xf32>
    %c730 = arith.constant 730 : index
    %c0_51 = arith.constant 0 : index
    %170 = vector.load %arg3[%c730, %c0_51] : memref<768x32xf32, #tpu.memory_space<vmem>>, vector<1x32xf32>
    %171 = vector.shape_cast %170 : vector<1x32xf32> to vector<32xf32>
    %172 = vector.shape_cast %171 : vector<32xf32> to vector<1x32xf32>
    %173 = vector.broadcast %172 : vector<1x32xf32> to vector<32x32xf32>
    %174 = arith.addf %169, %173 : vector<32x32xf32>
    %175 = arith.addf %174, %11 : vector<32x32xf32>
    %c731 = arith.constant 731 : index
    %c0_52 = arith.constant 0 : index
    %176 = vector.load %arg3[%c731, %c0_52] : memref<768x32xf32, #tpu.memory_space<vmem>>, vector<1x32xf32>
    %177 = vector.shape_cast %176 : vector<1x32xf32> to vector<32xf32>
    %c732 = arith.constant 732 : index
    %c0_53 = arith.constant 0 : index
    %178 = vector.load %arg3[%c732, %c0_53] : memref<768x32xf32, #tpu.memory_space<vmem>>, vector<1x32xf32>
    %179 = vector.shape_cast %178 : vector<1x32xf32> to vector<32xf32>
    %cst_54 = arith.constant dense<0.000000e+00> : vector<32xf32>
    %180 = vector.multi_reduction <add>, %175, %cst_54 [1] : vector<32x32xf32> to vector<32xf32>
    %181 = vector.shape_cast %180 : vector<32xf32> to vector<32x1xf32>
    %cst_55 = arith.constant 3.200000e+01 : f32
    %182 = vector.broadcast %cst_55 : f32 to vector<32x1xf32>
    %183 = arith.divf %181, %182 : vector<32x1xf32>
    %184 = vector.broadcast %183 : vector<32x1xf32> to vector<32x32xf32>
    %185 = arith.subf %175, %184 : vector<32x32xf32>
    %186 = arith.mulf %185, %185 : vector<32x32xf32>
    %cst_56 = arith.constant dense<0.000000e+00> : vector<32xf32>
    %187 = vector.multi_reduction <add>, %186, %cst_56 [1] : vector<32x32xf32> to vector<32xf32>
    %188 = vector.shape_cast %187 : vector<32xf32> to vector<32x1xf32>
    %cst_57 = arith.constant 3.200000e+01 : f32
    %189 = vector.broadcast %cst_57 : f32 to vector<32x1xf32>
    %190 = arith.divf %188, %189 : vector<32x1xf32>
    %cst_58 = arith.constant 9.99999974E-6 : f32
    %191 = vector.broadcast %cst_58 : f32 to vector<32x1xf32>
    %192 = arith.addf %190, %191 : vector<32x1xf32>
    %193 = math.rsqrt %192 : vector<32x1xf32>
    %194 = vector.broadcast %193 : vector<32x1xf32> to vector<32x32xf32>
    %195 = arith.mulf %185, %194 : vector<32x32xf32>
    %196 = vector.shape_cast %177 : vector<32xf32> to vector<1x32xf32>
    %197 = vector.broadcast %196 : vector<1x32xf32> to vector<32x32xf32>
    %198 = arith.mulf %195, %197 : vector<32x32xf32>
    %199 = vector.shape_cast %179 : vector<32xf32> to vector<1x32xf32>
    %200 = vector.broadcast %199 : vector<1x32xf32> to vector<32x32xf32>
    %201 = arith.addf %198, %200 : vector<32x32xf32>
    %202 = arith.truncf %201 : vector<32x32xf32> to vector<32x32xbf16>
    %c0_59 = arith.constant 0 : index
    %c0_60 = arith.constant 0 : index
    %c0_61 = arith.constant 0 : index
    %203 = vector.load %arg6[%c0_59, %c0_60, %c0_61] : memref<2x32x128xbf16, #tpu.memory_space<vmem>>, vector<1x32x128xbf16>
    %204 = vector.shape_cast %203 : vector<1x32x128xbf16> to vector<32x128xbf16>
    %cst_62 = arith.constant dense<0.000000e+00> : vector<32x128xf32>
    %205 = tpu.matmul %202, %204, %cst_62 {dimension_numbers = #tpu.dot_dimension_numbers<[1], [0], [0], [1], [0, 0, 1, 1], [], []>} : vector<32x32xbf16>, vector<32x128xbf16>, vector<32x128xf32> -> vector<32x128xf32>
    %c0_63 = arith.constant 0 : index
    %c0_64 = arith.constant 0 : index
    %206 = vector.load %arg4[%c0_63, %c0_64] : memref<2x128xf32, #tpu.memory_space<vmem>>, vector<1x128xf32>
    %207 = vector.shape_cast %206 : vector<1x128xf32> to vector<128xf32>
    %208 = vector.shape_cast %207 : vector<128xf32> to vector<1x128xf32>
    %209 = vector.broadcast %208 : vector<1x128xf32> to vector<32x128xf32>
    %210 = arith.addf %205, %209 : vector<32x128xf32>
    %211 = arith.mulf %210, %210 : vector<32x128xf32>
    %212 = arith.mulf %210, %211 : vector<32x128xf32>
    %cst_65 = arith.constant 4.471500e-02 : f32
    %213 = vector.broadcast %cst_65 : f32 to vector<32x128xf32>
    %214 = arith.mulf %213, %212 : vector<32x128xf32>
    %215 = arith.addf %210, %214 : vector<32x128xf32>
    %cst_66 = arith.constant 0.797884583 : f32
    %216 = vector.broadcast %cst_66 : f32 to vector<32x128xf32>
    %217 = arith.mulf %216, %215 : vector<32x128xf32>
    %218 = math.tanh %217 : vector<32x128xf32>
    %cst_67 = arith.constant 1.000000e+00 : f32
    %219 = vector.broadcast %cst_67 : f32 to vector<32x128xf32>
    %220 = arith.addf %219, %218 : vector<32x128xf32>
    %cst_68 = arith.constant 5.000000e-01 : f32
    %221 = vector.broadcast %cst_68 : f32 to vector<32x128xf32>
    %222 = arith.mulf %221, %220 : vector<32x128xf32>
    %223 = arith.mulf %210, %222 : vector<32x128xf32>
    %224 = arith.truncf %223 : vector<32x128xf32> to vector<32x128xbf16>
    %c0_69 = arith.constant 0 : index
    %c0_70 = arith.constant 0 : index
    %c0_71 = arith.constant 0 : index
    %225 = vector.load %arg7[%c0_69, %c0_70, %c0_71] : memref<2x128x32xbf16, #tpu.memory_space<vmem>>, vector<1x128x32xbf16>
    %226 = vector.shape_cast %225 : vector<1x128x32xbf16> to vector<128x32xbf16>
    %cst_72 = arith.constant dense<0.000000e+00> : vector<32x32xf32>
    %227 = tpu.matmul %224, %226, %cst_72 {dimension_numbers = #tpu.dot_dimension_numbers<[1], [0], [0], [1], [0, 0, 1, 1], [], []>} : vector<32x128xbf16>, vector<128x32xbf16>, vector<32x32xf32> -> vector<32x32xf32>
    %c733 = arith.constant 733 : index
    %c0_73 = arith.constant 0 : index
    %228 = vector.load %arg3[%c733, %c0_73] : memref<768x32xf32, #tpu.memory_space<vmem>>, vector<1x32xf32>
    %229 = vector.shape_cast %228 : vector<1x32xf32> to vector<32xf32>
    %230 = vector.shape_cast %229 : vector<32xf32> to vector<1x32xf32>
    %231 = vector.broadcast %230 : vector<1x32xf32> to vector<32x32xf32>
    %232 = arith.addf %227, %231 : vector<32x32xf32>
    %233 = arith.addf %232, %175 : vector<32x32xf32>
    %c736 = arith.constant 736 : index
    %c0_74 = arith.constant 0 : index
    %234 = vector.load %arg3[%c736, %c0_74] : memref<768x32xf32, #tpu.memory_space<vmem>>, vector<1x32xf32>
    %235 = vector.shape_cast %234 : vector<1x32xf32> to vector<32xf32>
    %c737 = arith.constant 737 : index
    %c0_75 = arith.constant 0 : index
    %236 = vector.load %arg3[%c737, %c0_75] : memref<768x32xf32, #tpu.memory_space<vmem>>, vector<1x32xf32>
    %237 = vector.shape_cast %236 : vector<1x32xf32> to vector<32xf32>
    %cst_76 = arith.constant dense<0.000000e+00> : vector<32xf32>
    %238 = vector.multi_reduction <add>, %233, %cst_76 [1] : vector<32x32xf32> to vector<32xf32>
    %239 = vector.shape_cast %238 : vector<32xf32> to vector<32x1xf32>
    %cst_77 = arith.constant 3.200000e+01 : f32
    %240 = vector.broadcast %cst_77 : f32 to vector<32x1xf32>
    %241 = arith.divf %239, %240 : vector<32x1xf32>
    %242 = vector.broadcast %241 : vector<32x1xf32> to vector<32x32xf32>
    %243 = arith.subf %233, %242 : vector<32x32xf32>
    %244 = arith.mulf %243, %243 : vector<32x32xf32>
    %cst_78 = arith.constant dense<0.000000e+00> : vector<32xf32>
    %245 = vector.multi_reduction <add>, %244, %cst_78 [1] : vector<32x32xf32> to vector<32xf32>
    %246 = vector.shape_cast %245 : vector<32xf32> to vector<32x1xf32>
    %cst_79 = arith.constant 3.200000e+01 : f32
    %247 = vector.broadcast %cst_79 : f32 to vector<32x1xf32>
    %248 = arith.divf %246, %247 : vector<32x1xf32>
    %cst_80 = arith.constant 9.99999974E-6 : f32
    %249 = vector.broadcast %cst_80 : f32 to vector<32x1xf32>
    %250 = arith.addf %248, %249 : vector<32x1xf32>
    %251 = math.rsqrt %250 : vector<32x1xf32>
    %252 = vector.broadcast %251 : vector<32x1xf32> to vector<32x32xf32>
    %253 = arith.mulf %243, %252 : vector<32x32xf32>
    %254 = vector.shape_cast %235 : vector<32xf32> to vector<1x32xf32>
    %255 = vector.broadcast %254 : vector<1x32xf32> to vector<32x32xf32>
    %256 = arith.mulf %253, %255 : vector<32x32xf32>
    %257 = vector.shape_cast %237 : vector<32xf32> to vector<1x32xf32>
    %258 = vector.broadcast %257 : vector<1x32xf32> to vector<32x32xf32>
    %259 = arith.addf %256, %258 : vector<32x32xf32>
    %260 = arith.truncf %259 : vector<32x32xf32> to vector<32x32xbf16>
    %c1_81 = arith.constant 1 : index
    %c0_82 = arith.constant 0 : index
    %c0_83 = arith.constant 0 : index
    %c0_84 = arith.constant 0 : index
    %261 = vector.load %arg5[%c1_81, %c0_82, %c0_83, %c0_84] : memref<2x3x32x32xbf16, #tpu.memory_space<vmem>>, vector<1x1x32x32xbf16>
    %262 = vector.shape_cast %261 : vector<1x1x32x32xbf16> to vector<32x32xbf16>
    %cst_85 = arith.constant dense<0.000000e+00> : vector<32x32xf32>
    %263 = tpu.matmul %260, %262, %cst_85 {dimension_numbers = #tpu.dot_dimension_numbers<[1], [0], [0], [1], [0, 0, 1, 1], [], []>} : vector<32x32xbf16>, vector<32x32xbf16>, vector<32x32xf32> -> vector<32x32xf32>
    %c738 = arith.constant 738 : index
    %c0_86 = arith.constant 0 : index
    %264 = vector.load %arg3[%c738, %c0_86] : memref<768x32xf32, #tpu.memory_space<vmem>>, vector<1x32xf32>
    %265 = vector.shape_cast %264 : vector<1x32xf32> to vector<32xf32>
    %266 = vector.shape_cast %265 : vector<32xf32> to vector<1x32xf32>
    %267 = vector.broadcast %266 : vector<1x32xf32> to vector<32x32xf32>
    %268 = arith.addf %263, %267 : vector<32x32xf32>
    %cst_87 = arith.constant dense<0.000000e+00> : vector<96x32xf32>
    %269 = tpu.matmul %10, %268, %cst_87 {dimension_numbers = #tpu.dot_dimension_numbers<[1], [0], [0], [1], [0, 0, 1, 1], [], []>} : vector<96x32xf32>, vector<32x32xf32>, vector<96x32xf32> -> vector<96x32xf32>
    %270 = vector.shape_cast %269 : vector<96x32xf32> to vector<3x32x32xf32>
    %c750 = arith.constant 750 : index
    %c0_88 = arith.constant 0 : index
    %271 = vector.load %arg3[%c750, %c0_88] : memref<768x32xf32, #tpu.memory_space<vmem>>, vector<1x32xf32>
    %272 = vector.shape_cast %271 : vector<1x32xf32> to vector<32xf32>
    %273 = vector.extract_strided_slice %270 {offsets = [0, 0, 0], sizes = [1, 32, 32], strides = [1, 1, 1]} : vector<3x32x32xf32> to vector<1x32x32xf32>
    %274 = vector.shape_cast %273 : vector<1x32x32xf32> to vector<32x32xf32>
    %c741 = arith.constant 741 : index
    %c0_89 = arith.constant 0 : index
    %275 = vector.load %arg3[%c741, %c0_89] : memref<768x32xf32, #tpu.memory_space<vmem>>, vector<1x32xf32>
    %276 = vector.shape_cast %275 : vector<1x32xf32> to vector<32xf32>
    %277 = vector.shape_cast %276 : vector<32xf32> to vector<1x32xf32>
    %278 = vector.broadcast %277 : vector<1x32xf32> to vector<32x32xf32>
    %279 = arith.mulf %274, %278 : vector<32x32xf32>
    %280 = vector.shape_cast %272 : vector<32xf32> to vector<1x32xf32>
    %281 = vector.broadcast %280 : vector<1x32xf32> to vector<32x32xf32>
    %282 = arith.addf %281, %279 : vector<32x32xf32>
    %283 = vector.extract_strided_slice %270 {offsets = [1, 0, 0], sizes = [1, 32, 32], strides = [1, 1, 1]} : vector<3x32x32xf32> to vector<1x32x32xf32>
    %284 = vector.shape_cast %283 : vector<1x32x32xf32> to vector<32x32xf32>
    %c742 = arith.constant 742 : index
    %c0_90 = arith.constant 0 : index
    %285 = vector.load %arg3[%c742, %c0_90] : memref<768x32xf32, #tpu.memory_space<vmem>>, vector<1x32xf32>
    %286 = vector.shape_cast %285 : vector<1x32xf32> to vector<32xf32>
    %287 = vector.shape_cast %286 : vector<32xf32> to vector<1x32xf32>
    %288 = vector.broadcast %287 : vector<1x32xf32> to vector<32x32xf32>
    %289 = arith.mulf %284, %288 : vector<32x32xf32>
    %290 = arith.addf %282, %289 : vector<32x32xf32>
    %291 = vector.extract_strided_slice %270 {offsets = [2, 0, 0], sizes = [1, 32, 32], strides = [1, 1, 1]} : vector<3x32x32xf32> to vector<1x32x32xf32>
    %292 = vector.shape_cast %291 : vector<1x32x32xf32> to vector<32x32xf32>
    %c743 = arith.constant 743 : index
    %c0_91 = arith.constant 0 : index
    %293 = vector.load %arg3[%c743, %c0_91] : memref<768x32xf32, #tpu.memory_space<vmem>>, vector<1x32xf32>
    %294 = vector.shape_cast %293 : vector<1x32xf32> to vector<32xf32>
    %295 = vector.shape_cast %294 : vector<32xf32> to vector<1x32xf32>
    %296 = vector.broadcast %295 : vector<1x32xf32> to vector<32x32xf32>
    %297 = arith.mulf %292, %296 : vector<32x32xf32>
    %298 = arith.addf %290, %297 : vector<32x32xf32>
    %c1_92 = arith.constant 1 : index
    %c1_93 = arith.constant 1 : index
    %c0_94 = arith.constant 0 : index
    %c0_95 = arith.constant 0 : index
    %299 = vector.load %arg5[%c1_92, %c1_93, %c0_94, %c0_95] : memref<2x3x32x32xbf16, #tpu.memory_space<vmem>>, vector<1x1x32x32xbf16>
    %300 = vector.shape_cast %299 : vector<1x1x32x32xbf16> to vector<32x32xbf16>
    %cst_96 = arith.constant dense<0.000000e+00> : vector<32x32xf32>
    %301 = tpu.matmul %260, %300, %cst_96 {dimension_numbers = #tpu.dot_dimension_numbers<[1], [0], [0], [1], [0, 0, 1, 1], [], []>} : vector<32x32xbf16>, vector<32x32xbf16>, vector<32x32xf32> -> vector<32x32xf32>
    %c739 = arith.constant 739 : index
    %c0_97 = arith.constant 0 : index
    %302 = vector.load %arg3[%c739, %c0_97] : memref<768x32xf32, #tpu.memory_space<vmem>>, vector<1x32xf32>
    %303 = vector.shape_cast %302 : vector<1x32xf32> to vector<32xf32>
    %304 = vector.shape_cast %303 : vector<32xf32> to vector<1x32xf32>
    %305 = vector.broadcast %304 : vector<1x32xf32> to vector<32x32xf32>
    %306 = arith.addf %301, %305 : vector<32x32xf32>
    %cst_98 = arith.constant dense<0.000000e+00> : vector<96x32xf32>
    %307 = tpu.matmul %10, %306, %cst_98 {dimension_numbers = #tpu.dot_dimension_numbers<[1], [0], [0], [1], [0, 0, 1, 1], [], []>} : vector<96x32xf32>, vector<32x32xf32>, vector<96x32xf32> -> vector<96x32xf32>
    %308 = vector.shape_cast %307 : vector<96x32xf32> to vector<3x32x32xf32>
    %c751 = arith.constant 751 : index
    %c0_99 = arith.constant 0 : index
    %309 = vector.load %arg3[%c751, %c0_99] : memref<768x32xf32, #tpu.memory_space<vmem>>, vector<1x32xf32>
    %310 = vector.shape_cast %309 : vector<1x32xf32> to vector<32xf32>
    %311 = vector.extract_strided_slice %308 {offsets = [0, 0, 0], sizes = [1, 32, 32], strides = [1, 1, 1]} : vector<3x32x32xf32> to vector<1x32x32xf32>
    %312 = vector.shape_cast %311 : vector<1x32x32xf32> to vector<32x32xf32>
    %c744 = arith.constant 744 : index
    %c0_100 = arith.constant 0 : index
    %313 = vector.load %arg3[%c744, %c0_100] : memref<768x32xf32, #tpu.memory_space<vmem>>, vector<1x32xf32>
    %314 = vector.shape_cast %313 : vector<1x32xf32> to vector<32xf32>
    %315 = vector.shape_cast %314 : vector<32xf32> to vector<1x32xf32>
    %316 = vector.broadcast %315 : vector<1x32xf32> to vector<32x32xf32>
    %317 = arith.mulf %312, %316 : vector<32x32xf32>
    %318 = vector.shape_cast %310 : vector<32xf32> to vector<1x32xf32>
    %319 = vector.broadcast %318 : vector<1x32xf32> to vector<32x32xf32>
    %320 = arith.addf %319, %317 : vector<32x32xf32>
    %321 = vector.extract_strided_slice %308 {offsets = [1, 0, 0], sizes = [1, 32, 32], strides = [1, 1, 1]} : vector<3x32x32xf32> to vector<1x32x32xf32>
    %322 = vector.shape_cast %321 : vector<1x32x32xf32> to vector<32x32xf32>
    %c745 = arith.constant 745 : index
    %c0_101 = arith.constant 0 : index
    %323 = vector.load %arg3[%c745, %c0_101] : memref<768x32xf32, #tpu.memory_space<vmem>>, vector<1x32xf32>
    %324 = vector.shape_cast %323 : vector<1x32xf32> to vector<32xf32>
    %325 = vector.shape_cast %324 : vector<32xf32> to vector<1x32xf32>
    %326 = vector.broadcast %325 : vector<1x32xf32> to vector<32x32xf32>
    %327 = arith.mulf %322, %326 : vector<32x32xf32>
    %328 = arith.addf %320, %327 : vector<32x32xf32>
    %329 = vector.extract_strided_slice %308 {offsets = [2, 0, 0], sizes = [1, 32, 32], strides = [1, 1, 1]} : vector<3x32x32xf32> to vector<1x32x32xf32>
    %330 = vector.shape_cast %329 : vector<1x32x32xf32> to vector<32x32xf32>
    %c746 = arith.constant 746 : index
    %c0_102 = arith.constant 0 : index
    %331 = vector.load %arg3[%c746, %c0_102] : memref<768x32xf32, #tpu.memory_space<vmem>>, vector<1x32xf32>
    %332 = vector.shape_cast %331 : vector<1x32xf32> to vector<32xf32>
    %333 = vector.shape_cast %332 : vector<32xf32> to vector<1x32xf32>
    %334 = vector.broadcast %333 : vector<1x32xf32> to vector<32x32xf32>
    %335 = arith.mulf %330, %334 : vector<32x32xf32>
    %336 = arith.addf %328, %335 : vector<32x32xf32>
    %c1_103 = arith.constant 1 : index
    %c2_104 = arith.constant 2 : index
    %c0_105 = arith.constant 0 : index
    %c0_106 = arith.constant 0 : index
    %337 = vector.load %arg5[%c1_103, %c2_104, %c0_105, %c0_106] : memref<2x3x32x32xbf16, #tpu.memory_space<vmem>>, vector<1x1x32x32xbf16>
    %338 = vector.shape_cast %337 : vector<1x1x32x32xbf16> to vector<32x32xbf16>
    %cst_107 = arith.constant dense<0.000000e+00> : vector<32x32xf32>
    %339 = tpu.matmul %260, %338, %cst_107 {dimension_numbers = #tpu.dot_dimension_numbers<[1], [0], [0], [1], [0, 0, 1, 1], [], []>} : vector<32x32xbf16>, vector<32x32xbf16>, vector<32x32xf32> -> vector<32x32xf32>
    %c740 = arith.constant 740 : index
    %c0_108 = arith.constant 0 : index
    %340 = vector.load %arg3[%c740, %c0_108] : memref<768x32xf32, #tpu.memory_space<vmem>>, vector<1x32xf32>
    %341 = vector.shape_cast %340 : vector<1x32xf32> to vector<32xf32>
    %342 = vector.shape_cast %341 : vector<32xf32> to vector<1x32xf32>
    %343 = vector.broadcast %342 : vector<1x32xf32> to vector<32x32xf32>
    %344 = arith.addf %339, %343 : vector<32x32xf32>
    %cst_109 = arith.constant dense<0.000000e+00> : vector<96x32xf32>
    %345 = tpu.matmul %10, %344, %cst_109 {dimension_numbers = #tpu.dot_dimension_numbers<[1], [0], [0], [1], [0, 0, 1, 1], [], []>} : vector<96x32xf32>, vector<32x32xf32>, vector<96x32xf32> -> vector<96x32xf32>
    %346 = vector.shape_cast %345 : vector<96x32xf32> to vector<3x32x32xf32>
    %c752 = arith.constant 752 : index
    %c0_110 = arith.constant 0 : index
    %347 = vector.load %arg3[%c752, %c0_110] : memref<768x32xf32, #tpu.memory_space<vmem>>, vector<1x32xf32>
    %348 = vector.shape_cast %347 : vector<1x32xf32> to vector<32xf32>
    %349 = vector.extract_strided_slice %346 {offsets = [0, 0, 0], sizes = [1, 32, 32], strides = [1, 1, 1]} : vector<3x32x32xf32> to vector<1x32x32xf32>
    %350 = vector.shape_cast %349 : vector<1x32x32xf32> to vector<32x32xf32>
    %c747 = arith.constant 747 : index
    %c0_111 = arith.constant 0 : index
    %351 = vector.load %arg3[%c747, %c0_111] : memref<768x32xf32, #tpu.memory_space<vmem>>, vector<1x32xf32>
    %352 = vector.shape_cast %351 : vector<1x32xf32> to vector<32xf32>
    %353 = vector.shape_cast %352 : vector<32xf32> to vector<1x32xf32>
    %354 = vector.broadcast %353 : vector<1x32xf32> to vector<32x32xf32>
    %355 = arith.mulf %350, %354 : vector<32x32xf32>
    %356 = vector.shape_cast %348 : vector<32xf32> to vector<1x32xf32>
    %357 = vector.broadcast %356 : vector<1x32xf32> to vector<32x32xf32>
    %358 = arith.addf %357, %355 : vector<32x32xf32>
    %359 = vector.extract_strided_slice %346 {offsets = [1, 0, 0], sizes = [1, 32, 32], strides = [1, 1, 1]} : vector<3x32x32xf32> to vector<1x32x32xf32>
    %360 = vector.shape_cast %359 : vector<1x32x32xf32> to vector<32x32xf32>
    %c748 = arith.constant 748 : index
    %c0_112 = arith.constant 0 : index
    %361 = vector.load %arg3[%c748, %c0_112] : memref<768x32xf32, #tpu.memory_space<vmem>>, vector<1x32xf32>
    %362 = vector.shape_cast %361 : vector<1x32xf32> to vector<32xf32>
    %363 = vector.shape_cast %362 : vector<32xf32> to vector<1x32xf32>
    %364 = vector.broadcast %363 : vector<1x32xf32> to vector<32x32xf32>
    %365 = arith.mulf %360, %364 : vector<32x32xf32>
    %366 = arith.addf %358, %365 : vector<32x32xf32>
    %367 = vector.extract_strided_slice %346 {offsets = [2, 0, 0], sizes = [1, 32, 32], strides = [1, 1, 1]} : vector<3x32x32xf32> to vector<1x32x32xf32>
    %368 = vector.shape_cast %367 : vector<1x32x32xf32> to vector<32x32xf32>
    %c749 = arith.constant 749 : index
    %c0_113 = arith.constant 0 : index
    %369 = vector.load %arg3[%c749, %c0_113] : memref<768x32xf32, #tpu.memory_space<vmem>>, vector<1x32xf32>
    %370 = vector.shape_cast %369 : vector<1x32xf32> to vector<32xf32>
    %371 = vector.shape_cast %370 : vector<32xf32> to vector<1x32xf32>
    %372 = vector.broadcast %371 : vector<1x32xf32> to vector<32x32xf32>
    %373 = arith.mulf %368, %372 : vector<32x32xf32>
    %374 = arith.addf %366, %373 : vector<32x32xf32>
    %375 = arith.mulf %374, %336 : vector<32x32xf32>
    %cst_114 = arith.constant dense<0.000000e+00> : vector<512x32xf32>
    %376 = tpu.matmul %9, %375, %cst_114 {dimension_numbers = #tpu.dot_dimension_numbers<[1], [0], [0], [1], [0, 0, 1, 1], [], []>} : vector<512x32xf32>, vector<32x32xf32>, vector<512x32xf32> -> vector<512x32xf32>
    %377 = vector.shape_cast %376 : vector<512x32xf32> to vector<16x32x32xf32>
    %c544 = arith.constant 544 : index
    %c0_115 = arith.constant 0 : index
    %378 = vector.load %arg3[%c544, %c0_115] : memref<768x32xf32, #tpu.memory_space<vmem>>, vector<16x32xf32>
    %379 = vector.shape_cast %378 : vector<16x32xf32> to vector<16x1x32xf32>
    %380 = vector.broadcast %379 : vector<16x1x32xf32> to vector<16x32x32xf32>
    %381 = arith.mulf %377, %380 : vector<16x32x32xf32>
    %cst_116 = arith.constant dense<0.000000e+00> : vector<32x32xf32>
    %382 = vector.multi_reduction <add>, %381, %cst_116 [0] : vector<16x32x32xf32> to vector<32x32xf32>
    %c753 = arith.constant 753 : index
    %c0_117 = arith.constant 0 : index
    %383 = vector.load %arg3[%c753, %c0_117] : memref<768x32xf32, #tpu.memory_space<vmem>>, vector<1x32xf32>
    %384 = vector.shape_cast %383 : vector<1x32xf32> to vector<32xf32>
    %385 = vector.shape_cast %384 : vector<32xf32> to vector<1x32xf32>
    %386 = vector.broadcast %385 : vector<1x32xf32> to vector<32x32xf32>
    %387 = arith.mulf %375, %386 : vector<32x32xf32>
    %388 = arith.addf %382, %387 : vector<32x32xf32>
    %389 = arith.mulf %388, %298 : vector<32x32xf32>
    %c600 = arith.constant 600 : index
    %c0_118 = arith.constant 0 : index
    %390 = vector.load %arg3[%c600, %c0_118] : memref<768x32xf32, #tpu.memory_space<vmem>>, vector<32x32xf32>
    %cst_119 = arith.constant dense<0.000000e+00> : vector<32x32xf32>
    %391 = tpu.matmul %389, %390, %cst_119 {dimension_numbers = #tpu.dot_dimension_numbers<[1], [0], [0], [1], [0, 0, 1, 1], [], []>} : vector<32x32xf32>, vector<32x32xf32>, vector<32x32xf32> -> vector<32x32xf32>
    %c754 = arith.constant 754 : index
    %c0_120 = arith.constant 0 : index
    %392 = vector.load %arg3[%c754, %c0_120] : memref<768x32xf32, #tpu.memory_space<vmem>>, vector<1x32xf32>
    %393 = vector.shape_cast %392 : vector<1x32xf32> to vector<32xf32>
    %394 = vector.shape_cast %393 : vector<32xf32> to vector<1x32xf32>
    %395 = vector.broadcast %394 : vector<1x32xf32> to vector<32x32xf32>
    %396 = arith.addf %391, %395 : vector<32x32xf32>
    %397 = arith.addf %396, %233 : vector<32x32xf32>
    %c755 = arith.constant 755 : index
    %c0_121 = arith.constant 0 : index
    %398 = vector.load %arg3[%c755, %c0_121] : memref<768x32xf32, #tpu.memory_space<vmem>>, vector<1x32xf32>
    %399 = vector.shape_cast %398 : vector<1x32xf32> to vector<32xf32>
    %c756 = arith.constant 756 : index
    %c0_122 = arith.constant 0 : index
    %400 = vector.load %arg3[%c756, %c0_122] : memref<768x32xf32, #tpu.memory_space<vmem>>, vector<1x32xf32>
    %401 = vector.shape_cast %400 : vector<1x32xf32> to vector<32xf32>
    %cst_123 = arith.constant dense<0.000000e+00> : vector<32xf32>
    %402 = vector.multi_reduction <add>, %397, %cst_123 [1] : vector<32x32xf32> to vector<32xf32>
    %403 = vector.shape_cast %402 : vector<32xf32> to vector<32x1xf32>
    %cst_124 = arith.constant 3.200000e+01 : f32
    %404 = vector.broadcast %cst_124 : f32 to vector<32x1xf32>
    %405 = arith.divf %403, %404 : vector<32x1xf32>
    %406 = vector.broadcast %405 : vector<32x1xf32> to vector<32x32xf32>
    %407 = arith.subf %397, %406 : vector<32x32xf32>
    %408 = arith.mulf %407, %407 : vector<32x32xf32>
    %cst_125 = arith.constant dense<0.000000e+00> : vector<32xf32>
    %409 = vector.multi_reduction <add>, %408, %cst_125 [1] : vector<32x32xf32> to vector<32xf32>
    %410 = vector.shape_cast %409 : vector<32xf32> to vector<32x1xf32>
    %cst_126 = arith.constant 3.200000e+01 : f32
    %411 = vector.broadcast %cst_126 : f32 to vector<32x1xf32>
    %412 = arith.divf %410, %411 : vector<32x1xf32>
    %cst_127 = arith.constant 9.99999974E-6 : f32
    %413 = vector.broadcast %cst_127 : f32 to vector<32x1xf32>
    %414 = arith.addf %412, %413 : vector<32x1xf32>
    %415 = math.rsqrt %414 : vector<32x1xf32>
    %416 = vector.broadcast %415 : vector<32x1xf32> to vector<32x32xf32>
    %417 = arith.mulf %407, %416 : vector<32x32xf32>
    %418 = vector.shape_cast %399 : vector<32xf32> to vector<1x32xf32>
    %419 = vector.broadcast %418 : vector<1x32xf32> to vector<32x32xf32>
    %420 = arith.mulf %417, %419 : vector<32x32xf32>
    %421 = vector.shape_cast %401 : vector<32xf32> to vector<1x32xf32>
    %422 = vector.broadcast %421 : vector<1x32xf32> to vector<32x32xf32>
    %423 = arith.addf %420, %422 : vector<32x32xf32>
    %424 = arith.truncf %423 : vector<32x32xf32> to vector<32x32xbf16>
    %c1_128 = arith.constant 1 : index
    %c0_129 = arith.constant 0 : index
    %c0_130 = arith.constant 0 : index
    %425 = vector.load %arg6[%c1_128, %c0_129, %c0_130] : memref<2x32x128xbf16, #tpu.memory_space<vmem>>, vector<1x32x128xbf16>
    %426 = vector.shape_cast %425 : vector<1x32x128xbf16> to vector<32x128xbf16>
    %cst_131 = arith.constant dense<0.000000e+00> : vector<32x128xf32>
    %427 = tpu.matmul %424, %426, %cst_131 {dimension_numbers = #tpu.dot_dimension_numbers<[1], [0], [0], [1], [0, 0, 1, 1], [], []>} : vector<32x32xbf16>, vector<32x128xbf16>, vector<32x128xf32> -> vector<32x128xf32>
    %c1_132 = arith.constant 1 : index
    %c0_133 = arith.constant 0 : index
    %428 = vector.load %arg4[%c1_132, %c0_133] : memref<2x128xf32, #tpu.memory_space<vmem>>, vector<1x128xf32>
    %429 = vector.shape_cast %428 : vector<1x128xf32> to vector<128xf32>
    %430 = vector.shape_cast %429 : vector<128xf32> to vector<1x128xf32>
    %431 = vector.broadcast %430 : vector<1x128xf32> to vector<32x128xf32>
    %432 = arith.addf %427, %431 : vector<32x128xf32>
    %433 = arith.mulf %432, %432 : vector<32x128xf32>
    %434 = arith.mulf %432, %433 : vector<32x128xf32>
    %cst_134 = arith.constant 4.471500e-02 : f32
    %435 = vector.broadcast %cst_134 : f32 to vector<32x128xf32>
    %436 = arith.mulf %435, %434 : vector<32x128xf32>
    %437 = arith.addf %432, %436 : vector<32x128xf32>
    %cst_135 = arith.constant 0.797884583 : f32
    %438 = vector.broadcast %cst_135 : f32 to vector<32x128xf32>
    %439 = arith.mulf %438, %437 : vector<32x128xf32>
    %440 = math.tanh %439 : vector<32x128xf32>
    %cst_136 = arith.constant 1.000000e+00 : f32
    %441 = vector.broadcast %cst_136 : f32 to vector<32x128xf32>
    %442 = arith.addf %441, %440 : vector<32x128xf32>
    %cst_137 = arith.constant 5.000000e-01 : f32
    %443 = vector.broadcast %cst_137 : f32 to vector<32x128xf32>
    %444 = arith.mulf %443, %442 : vector<32x128xf32>
    %445 = arith.mulf %432, %444 : vector<32x128xf32>
    %446 = arith.truncf %445 : vector<32x128xf32> to vector<32x128xbf16>
    %c1_138 = arith.constant 1 : index
    %c0_139 = arith.constant 0 : index
    %c0_140 = arith.constant 0 : index
    %447 = vector.load %arg7[%c1_138, %c0_139, %c0_140] : memref<2x128x32xbf16, #tpu.memory_space<vmem>>, vector<1x128x32xbf16>
    %448 = vector.shape_cast %447 : vector<1x128x32xbf16> to vector<128x32xbf16>
    %cst_141 = arith.constant dense<0.000000e+00> : vector<32x32xf32>
    %449 = tpu.matmul %446, %448, %cst_141 {dimension_numbers = #tpu.dot_dimension_numbers<[1], [0], [0], [1], [0, 0, 1, 1], [], []>} : vector<32x128xbf16>, vector<128x32xbf16>, vector<32x32xf32> -> vector<32x32xf32>
    %c757 = arith.constant 757 : index
    %c0_142 = arith.constant 0 : index
    %450 = vector.load %arg3[%c757, %c0_142] : memref<768x32xf32, #tpu.memory_space<vmem>>, vector<1x32xf32>
    %451 = vector.shape_cast %450 : vector<1x32xf32> to vector<32xf32>
    %452 = vector.shape_cast %451 : vector<32xf32> to vector<1x32xf32>
    %453 = vector.broadcast %452 : vector<1x32xf32> to vector<32x32xf32>
    %454 = arith.addf %449, %453 : vector<32x32xf32>
    %455 = arith.addf %454, %397 : vector<32x32xf32>
    %c760 = arith.constant 760 : index
    %c0_143 = arith.constant 0 : index
    %456 = vector.load %arg3[%c760, %c0_143] : memref<768x32xf32, #tpu.memory_space<vmem>>, vector<1x32xf32>
    %457 = vector.shape_cast %456 : vector<1x32xf32> to vector<32xf32>
    %c761 = arith.constant 761 : index
    %c0_144 = arith.constant 0 : index
    %458 = vector.load %arg3[%c761, %c0_144] : memref<768x32xf32, #tpu.memory_space<vmem>>, vector<1x32xf32>
    %459 = vector.shape_cast %458 : vector<1x32xf32> to vector<32xf32>
    %cst_145 = arith.constant dense<0.000000e+00> : vector<32xf32>
    %460 = vector.multi_reduction <add>, %455, %cst_145 [1] : vector<32x32xf32> to vector<32xf32>
    %461 = vector.shape_cast %460 : vector<32xf32> to vector<32x1xf32>
    %cst_146 = arith.constant 3.200000e+01 : f32
    %462 = vector.broadcast %cst_146 : f32 to vector<32x1xf32>
    %463 = arith.divf %461, %462 : vector<32x1xf32>
    %464 = vector.broadcast %463 : vector<32x1xf32> to vector<32x32xf32>
    %465 = arith.subf %455, %464 : vector<32x32xf32>
    %466 = arith.mulf %465, %465 : vector<32x32xf32>
    %cst_147 = arith.constant dense<0.000000e+00> : vector<32xf32>
    %467 = vector.multi_reduction <add>, %466, %cst_147 [1] : vector<32x32xf32> to vector<32xf32>
    %468 = vector.shape_cast %467 : vector<32xf32> to vector<32x1xf32>
    %cst_148 = arith.constant 3.200000e+01 : f32
    %469 = vector.broadcast %cst_148 : f32 to vector<32x1xf32>
    %470 = arith.divf %468, %469 : vector<32x1xf32>
    %cst_149 = arith.constant 9.99999974E-6 : f32
    %471 = vector.broadcast %cst_149 : f32 to vector<32x1xf32>
    %472 = arith.addf %470, %471 : vector<32x1xf32>
    %473 = math.rsqrt %472 : vector<32x1xf32>
    %474 = vector.broadcast %473 : vector<32x1xf32> to vector<32x32xf32>
    %475 = arith.mulf %465, %474 : vector<32x32xf32>
    %476 = vector.shape_cast %457 : vector<32xf32> to vector<1x32xf32>
    %477 = vector.broadcast %476 : vector<1x32xf32> to vector<32x32xf32>
    %478 = arith.mulf %475, %477 : vector<32x32xf32>
    %479 = vector.shape_cast %459 : vector<32xf32> to vector<1x32xf32>
    %480 = vector.broadcast %479 : vector<1x32xf32> to vector<32x32xf32>
    %481 = arith.addf %478, %480 : vector<32x32xf32>
    %c560 = arith.constant 560 : index
    %c0_150 = arith.constant 0 : index
    %482 = vector.load %arg3[%c560, %c0_150] : memref<768x32xf32, #tpu.memory_space<vmem>>, vector<2x32xf32>
    %cst_151 = arith.constant dense<0.000000e+00> : vector<2x32xf32>
    %483 = tpu.matmul %482, %481, %cst_151 {dimension_numbers = #tpu.dot_dimension_numbers<[1], [0], [0], [1], [0, 0, 1, 1], [], []>} : vector<2x32xf32>, vector<32x32xf32>, vector<2x32xf32> -> vector<2x32xf32>
    %c0_152 = arith.constant 0 : index
    %c0_153 = arith.constant 0 : index
    %484 = vector.load %arg2[%c0_152, %c0_153] : memref<2x16xf32, #tpu.memory_space<vmem>>, vector<2x16xf32>
    %485 = tpu.concatenate %483, %484 in 1 : vector<2x32xf32>, vector<2x16xf32> -> vector<2x48xf32>
    %c632 = arith.constant 632 : index
    %c0_154 = arith.constant 0 : index
    %486 = vector.load %arg3[%c632, %c0_154] : memref<768x32xf32, #tpu.memory_space<vmem>>, vector<48x32xf32>
    %cst_155 = arith.constant dense<0.000000e+00> : vector<2x32xf32>
    %487 = tpu.matmul %485, %486, %cst_155 {dimension_numbers = #tpu.dot_dimension_numbers<[1], [0], [0], [1], [0, 0, 1, 1], [], []>} : vector<2x48xf32>, vector<48x32xf32>, vector<2x32xf32> -> vector<2x32xf32>
    %c762 = arith.constant 762 : index
    %c0_156 = arith.constant 0 : index
    %488 = vector.load %arg3[%c762, %c0_156] : memref<768x32xf32, #tpu.memory_space<vmem>>, vector<1x32xf32>
    %489 = vector.shape_cast %488 : vector<1x32xf32> to vector<32xf32>
    %490 = vector.shape_cast %489 : vector<32xf32> to vector<1x32xf32>
    %491 = vector.broadcast %490 : vector<1x32xf32> to vector<2x32xf32>
    %492 = arith.addf %487, %491 : vector<2x32xf32>
    %cst_157 = arith.constant 0.000000e+00 : f32
    %493 = vector.broadcast %cst_157 : f32 to vector<2x32xf32>
    %494 = arith.maximumf %492, %493 : vector<2x32xf32>
    %c680 = arith.constant 680 : index
    %c0_158 = arith.constant 0 : index
    %495 = vector.load %arg3[%c680, %c0_158] : memref<768x32xf32, #tpu.memory_space<vmem>>, vector<32x32xf32>
    %cst_159 = arith.constant dense<0.000000e+00> : vector<2x32xf32>
    %496 = tpu.matmul %494, %495, %cst_159 {dimension_numbers = #tpu.dot_dimension_numbers<[1], [0], [0], [1], [0, 0, 1, 1], [], []>} : vector<2x32xf32>, vector<32x32xf32>, vector<2x32xf32> -> vector<2x32xf32>
    %c763 = arith.constant 763 : index
    %c0_160 = arith.constant 0 : index
    %497 = vector.load %arg3[%c763, %c0_160] : memref<768x32xf32, #tpu.memory_space<vmem>>, vector<1x32xf32>
    %498 = vector.shape_cast %497 : vector<1x32xf32> to vector<32xf32>
    %499 = vector.shape_cast %498 : vector<32xf32> to vector<1x32xf32>
    %500 = vector.broadcast %499 : vector<1x32xf32> to vector<2x32xf32>
    %501 = arith.addf %496, %500 : vector<2x32xf32>
    %cst_161 = arith.constant 0.000000e+00 : f32
    %502 = vector.broadcast %cst_161 : f32 to vector<2x32xf32>
    %503 = arith.maximumf %501, %502 : vector<2x32xf32>
    %c764 = arith.constant 764 : index
    %c0_162 = arith.constant 0 : index
    %504 = vector.load %arg3[%c764, %c0_162] : memref<768x32xf32, #tpu.memory_space<vmem>>, vector<1x32xf32>
    %505 = vector.shape_cast %504 : vector<1x32xf32> to vector<32xf32>
    %506 = vector.shape_cast %505 : vector<32xf32> to vector<1x32xf32>
    %507 = vector.broadcast %506 : vector<1x32xf32> to vector<2x32xf32>
    %508 = arith.mulf %503, %507 : vector<2x32xf32>
    %cst_163 = arith.constant dense<0.000000e+00> : vector<2xf32>
    %509 = vector.multi_reduction <add>, %508, %cst_163 [1] : vector<2x32xf32> to vector<2xf32>
    %510 = vector.shape_cast %509 : vector<2xf32> to vector<2x1xf32>
    %c765 = arith.constant 765 : index
    %c0_164 = arith.constant 0 : index
    %511 = vector.load %arg3[%c765, %c0_164] : memref<768x32xf32, #tpu.memory_space<vmem>>, vector<1x32xf32>
    %512 = vector.shape_cast %511 : vector<1x32xf32> to vector<32xf32>
    %513 = vector.extract_strided_slice %512 {offsets = [0], sizes = [1], strides = [1]} : vector<32xf32> to vector<1xf32>
    %514 = vector.shape_cast %513 : vector<1xf32> to vector<1x1xf32>
    %515 = vector.broadcast %514 : vector<1x1xf32> to vector<2x1xf32>
    %516 = arith.addf %510, %515 : vector<2x1xf32>
    %517 = vector.shape_cast %516 : vector<2x1xf32> to vector<2x1xf32>
    %518 = vector.broadcast %517 : vector<2x1xf32> to vector<2x128xf32>
    %c0_165 = arith.constant 0 : index
    %c0_166 = arith.constant 0 : index
    %519 = vector.load %arg8[%c0_165, %c0_166] : memref<2x128xf32, #tpu.memory_space<vmem>>, vector<2x128xf32>
    tpu.vector_store %arg8[%c0_165, %c0_166], %518 {strides = array<i32>} : memref<2x128xf32, #tpu.memory_space<vmem>>, vector<2x128xf32>,
    return
  }
  func.func @transform_0(%arg0: i32) -> (i32, i32) {
    %c0_i32 = arith.constant 0 : i32
    %c0_i32_0 = arith.constant 0 : i32
    %c0_i32_1 = arith.constant 0 : i32
    return %c0_i32, %c0_i32_0 : i32, i32
  }
  func.func @transform_1(%arg0: i32) -> (i32, i32) {
    %c0_i32 = arith.constant 0 : i32
    %c0_i32_0 = arith.constant 0 : i32
    %c0_i32_1 = arith.constant 0 : i32
    return %c0_i32, %c0_i32_0 : i32, i32
  }
  func.func @transform_2(%arg0: i32) -> (i32, i32) {
    %c0_i32 = arith.constant 0 : i32
    %c0_i32_0 = arith.constant 0 : i32
    %c0_i32_1 = arith.constant 0 : i32
    return %c0_i32, %c0_i32_0 : i32, i32
  }
  func.func @transform_3(%arg0: i32) -> (i32, i32) {
    %c0_i32 = arith.constant 0 : i32
    %c0_i32_0 = arith.constant 0 : i32
    %c0_i32_1 = arith.constant 0 : i32
    return %c0_i32, %c0_i32_0 : i32, i32
  }
  func.func @transform_4(%arg0: i32) -> (i32, i32, i32, i32) {
    %c0_i32 = arith.constant 0 : i32
    %c0_i32_0 = arith.constant 0 : i32
    %c0_i32_1 = arith.constant 0 : i32
    %c0_i32_2 = arith.constant 0 : i32
    %c0_i32_3 = arith.constant 0 : i32
    return %c0_i32, %c0_i32_0, %c0_i32_1, %c0_i32_2 : i32, i32, i32, i32
  }
  func.func @transform_5(%arg0: i32) -> (i32, i32, i32) {
    %c0_i32 = arith.constant 0 : i32
    %c0_i32_0 = arith.constant 0 : i32
    %c0_i32_1 = arith.constant 0 : i32
    %c0_i32_2 = arith.constant 0 : i32
    return %c0_i32, %c0_i32_0, %c0_i32_1 : i32, i32, i32
  }
  func.func @transform_6(%arg0: i32) -> (i32, i32, i32) {
    %c0_i32 = arith.constant 0 : i32
    %c0_i32_0 = arith.constant 0 : i32
    %c0_i32_1 = arith.constant 0 : i32
    %c0_i32_2 = arith.constant 0 : i32
    return %c0_i32, %c0_i32_0, %c0_i32_1 : i32, i32, i32
  }
  func.func @transform_7(%arg0: i32) -> (i32, i32) {
    %c0_i32 = arith.constant 0 : i32
    %c0_i32_0 = arith.constant 0 : i32
    %c0_i32_1 = arith.constant 0 : i32
    return %c0_i32, %c0_i32_0 : i32, i32
  }
}

</mosaic_0001>

<llo_original>
// kernel: gene_exp_hyena_forward.1
$region0: #{gene_exp_hyena_forward.1}
  #allocation0 [shape = 'u32[]', space=smem, size = 0x4, offset = 0x4, fixed_abs, tag = 'smem constant byte address 0x4 - core index']
  #allocation1 [shape = 'u32[144,128]{1,0:T(1,128)}', space=vmem, size = 0x12000, scoped, tag = 'internal scratch']
  %s0 = inlined_call_operand.vmem [shape: s32[32,1], index: 0, kind: input, shape index: {}]
  %s1 = inlined_call_operand.vmem [shape: f32[2,16], index: 1, kind: input, shape index: {}]
  %s2 = inlined_call_operand.vmem [shape: f32[768,32], index: 2, kind: input, shape index: {}]
  %s3 = inlined_call_operand.vmem [shape: f32[2,128], index: 3, kind: input, shape index: {}]
  %s4 = inlined_call_operand.vmem [shape: bf16[2,3,32,32], index: 4, kind: input, shape index: {}]
  %s5 = inlined_call_operand.vmem [shape: bf16[2,32,128], index: 5, kind: input, shape index: {}]
  %s6 = inlined_call_operand.vmem [shape: bf16[2,128,32], index: 6, kind: input, shape index: {}]
  %s7 = inlined_call_operand.vmem [shape: f32[2,128], index: 7, kind: output, shape index: {}]
  %s8 = sld [smem:[#allocation0]]
  $region38: #{gene_exp_hyena_forward.1} parent=0
    _
  %s10 = ssub.s32 1, %s8
  %s11 = scalar_select 0, %s10, %s8
  // Predicated region
  $region2: #{gene_exp_hyena_forward.1} parent=0 // pred_check
    _
  $region3: #{gene_exp_hyena_forward.1} parent=0 // pred_check_branch
    %13 = sbr.rel (0) target = $region5
  $region4: #{gene_exp_hyena_forward.1} parent=0 // pred_region
    _
  $region5: #{gene_exp_hyena_forward.1} parent=0 // pred_fallthru
    _
  // Predicated region
  $region6: #{gene_exp_hyena_forward.1} parent=0 // pred_check
    _
  $region7: #{gene_exp_hyena_forward.1} parent=0 // pred_check_branch
    %15 = sbr.rel (0) target = $region9
  $region8: #{gene_exp_hyena_forward.1} parent=0 // pred_region
    _
  $region9: #{gene_exp_hyena_forward.1} parent=0 // pred_fallthru
    _
  // Predicated region
  $region10: #{gene_exp_hyena_forward.1} parent=0 // pred_check
    _
  $region11: #{gene_exp_hyena_forward.1} parent=0 // pred_check_branch
    %17 = sbr.rel (0) target = $region13
  $region12: #{gene_exp_hyena_forward.1} parent=0 // pred_region
    _
  $region13: #{gene_exp_hyena_forward.1} parent=0 // pred_fallthru
    _
  // Predicated region
  $region14: #{gene_exp_hyena_forward.1} parent=0 // pred_check
    _
  $region15: #{gene_exp_hyena_forward.1} parent=0 // pred_check_branch
    %19 = sbr.rel (0) target = $region17
  $region16: #{gene_exp_hyena_forward.1} parent=0 // pred_region
    _
  $region17: #{gene_exp_hyena_forward.1} parent=0 // pred_fallthru
    _
  // Predicated region
  $region18: #{gene_exp_hyena_forward.1} parent=0 // pred_check
    _
  $region19: #{gene_exp_hyena_forward.1} parent=0 // pred_check_branch
    %21 = sbr.rel (0) target = $region21
  $region20: #{gene_exp_hyena_forward.1} parent=0 // pred_region
    _
  $region21: #{gene_exp_hyena_forward.1} parent=0 // pred_fallthru
    _
  // Predicated region
  $region22: #{gene_exp_hyena_forward.1} parent=0 // pred_check
    _
  $region23: #{gene_exp_hyena_forward.1} parent=0 // pred_check_branch
    %23 = sbr.rel (0) target = $region25
  $region24: #{gene_exp_hyena_forward.1} parent=0 // pred_region
    _
  $region25: #{gene_exp_hyena_forward.1} parent=0 // pred_fallthru
    _
  // Predicated region
  $region26: #{gene_exp_hyena_forward.1} parent=0 // pred_check
    _
  $region27: #{gene_exp_hyena_forward.1} parent=0 // pred_check_branch
    %25 = sbr.rel (0) target = $region29
  $region28: #{gene_exp_hyena_forward.1} parent=0 // pred_region
    _
  $region29: #{gene_exp_hyena_forward.1} parent=0 // pred_fallthru
    _
  %v27 = vlaneseq
  %v28 = vand.u32 %v27, 127
  %v29 = vld [vmem:[%s0] sm:$0xff]
  %v30 = vld [vmem:[%s0 + $0x8] sm:$0xff]
  %v31 = vld [vmem:[%s0 + $0x10] sm:$0xff]
  %v32 = vld [vmem:[%s0 + $0x18] sm:$0xff]
  %33 = vset.pattern.permute.xlu0 0
  %34 = vperm.xlu0 %33, %v29
  %v35 = vpop.permute.xlu0 %34
  %36 = vset.pattern.permute.xlu0 0
  %37 = vperm.xlu0 %36, %v30
  %v38 = vpop.permute.xlu0 %37
  %39 = vset.pattern.permute.xlu0 0
  %40 = vperm.xlu0 %39, %v31
  %v41 = vpop.permute.xlu0 %40
  %42 = vset.pattern.permute.xlu0 0
  %43 = vperm.xlu0 %42, %v32
  %v44 = vpop.permute.xlu0 %43
  %vm45 = vcmp.eq.s32.totalorder %v28, %v35
  %vm46 = vcmp.eq.s32.totalorder %v28, %v38
  %vm47 = vcmp.eq.s32.totalorder %v28, %v41
  %vm48 = vcmp.eq.s32.totalorder %v28, %v44
  %v49 = vsel %vm45, 1, 0
  %v50 = vsel %vm46, 1, 0
  %v51 = vsel %vm47, 1, 0
  %v52 = vsel %vm48, 1, 0
  %v53 = vcvt.s32.f32 %v49
  %v54 = vcvt.s32.f32 %v50
  %v55 = vcvt.s32.f32 %v51
  %v56 = vcvt.s32.f32 %v52
  %v57 = vld [vmem:[%s2 + $0x200] sm:$0xff]
  %v58 = vld [vmem:[%s2 + $0x208] sm:$0xff]
  %v59 = vld [vmem:[%s2] sm:$0xff]
  %v60 = vld [vmem:[%s2 + $0x8] sm:$0xff]
  %v61 = vld [vmem:[%s2 + $0x10] sm:$0xff]
  %v62 = vld [vmem:[%s2 + $0x18] sm:$0xff]
  %v63 = vld [vmem:[%s2 + $0x20] sm:$0xff]
  %v64 = vld [vmem:[%s2 + $0x28] sm:$0xff]
  %v65 = vld [vmem:[%s2 + $0x30] sm:$0xff]
  %v66 = vld [vmem:[%s2 + $0x38] sm:$0xff]
  %v67 = vld [vmem:[%s2 + $0x40] sm:$0xff]
  %v68 = vld [vmem:[%s2 + $0x48] sm:$0xff]
  %v69 = vld [vmem:[%s2 + $0x50] sm:$0xff]
  %v70 = vld [vmem:[%s2 + $0x58] sm:$0xff]
  %v71 = vld [vmem:[%s2 + $0x60] sm:$0xff]
  %v72 = vld [vmem:[%s2 + $0x68] sm:$0xff]
  %v73 = vld [vmem:[%s2 + $0x70] sm:$0xff]
  %v74 = vld [vmem:[%s2 + $0x78] sm:$0xff]
  %v75 = vld [vmem:[%s2 + $0x80] sm:$0xff]
  %v76 = vld [vmem:[%s2 + $0x88] sm:$0xff]
  %v77 = vld [vmem:[%s2 + $0x90] sm:$0xff]
  %v78 = vld [vmem:[%s2 + $0x98] sm:$0xff]
  %v79 = vld [vmem:[%s2 + $0xa0] sm:$0xff]
  %v80 = vld [vmem:[%s2 + $0xa8] sm:$0xff]
  %v81 = vld [vmem:[%s2 + $0xb0] sm:$0xff]
  %v82 = vld [vmem:[%s2 + $0xb8] sm:$0xff]
  %v83 = vld [vmem:[%s2 + $0xc0] sm:$0xff]
  %v84 = vld [vmem:[%s2 + $0xc8] sm:$0xff]
  %v85 = vld [vmem:[%s2 + $0xd0] sm:$0xff]
  %v86 = vld [vmem:[%s2 + $0xd8] sm:$0xff]
  %v87 = vld [vmem:[%s2 + $0xe0] sm:$0xff]
  %v88 = vld [vmem:[%s2 + $0xe8] sm:$0xff]
  %v89 = vld [vmem:[%s2 + $0xf0] sm:$0xff]
  %v90 = vld [vmem:[%s2 + $0xf8] sm:$0xff]
  %v91 = vld [vmem:[%s2 + $0x100] sm:$0xff]
  %v92 = vld [vmem:[%s2 + $0x108] sm:$0xff]
  %v93 = vld [vmem:[%s2 + $0x110] sm:$0xff]
  %v94 = vld [vmem:[%s2 + $0x118] sm:$0xff]
  %v95 = vld [vmem:[%s2 + $0x120] sm:$0xff]
  %v96 = vld [vmem:[%s2 + $0x128] sm:$0xff]
  %v97 = vld [vmem:[%s2 + $0x130] sm:$0xff]
  %v98 = vld [vmem:[%s2 + $0x138] sm:$0xff]
  %v99 = vld [vmem:[%s2 + $0x140] sm:$0xff]
  %v100 = vld [vmem:[%s2 + $0x148] sm:$0xff]
  %v101 = vld [vmem:[%s2 + $0x150] sm:$0xff]
  %v102 = vld [vmem:[%s2 + $0x158] sm:$0xff]
  %v103 = vld [vmem:[%s2 + $0x160] sm:$0xff]
  %v104 = vld [vmem:[%s2 + $0x168] sm:$0xff]
  %v105 = vld [vmem:[%s2 + $0x170] sm:$0xff]
  %v106 = vld [vmem:[%s2 + $0x178] sm:$0xff]
  %v107 = vld [vmem:[%s2 + $0x180] sm:$0xff]
  %v108 = vld [vmem:[%s2 + $0x188] sm:$0xff]
  %v109 = vld [vmem:[%s2 + $0x190] sm:$0xff]
  %v110 = vld [vmem:[%s2 + $0x198] sm:$0xff]
  %v111 = vld [vmem:[%s2 + $0x1a0] sm:$0xff]
  %v112 = vld [vmem:[%s2 + $0x1a8] sm:$0xff]
  %v113 = vld [vmem:[%s2 + $0x1b0] sm:$0xff]
  %v114 = vld [vmem:[%s2 + $0x1b8] sm:$0xff]
  %v115 = vld [vmem:[%s2 + $0x1c0] sm:$0xff]
  %v116 = vld [vmem:[%s2 + $0x1c8] sm:$0xff]
  %v117 = vld [vmem:[%s2 + $0x1d0] sm:$0xff]
  %v118 = vld [vmem:[%s2 + $0x1d8] sm:$0xff]
  %v119 = vld [vmem:[%s2 + $0x1e0] sm:$0xff]
  %v120 = vld [vmem:[%s2 + $0x1e8] sm:$0xff]
  %v121 = vld [vmem:[%s2 + $0x1f0] sm:$0xff]
  %v122 = vld [vmem:[%s2 + $0x1f8] sm:$0xff]
  %vm123 = vcmask 130048
  %v125 = vsel %vm123, %v53, 0
  %v128 = vsel %vm123, %v54, 0
  %v131 = vsel %vm123, %v55, 0
  %v134 = vsel %vm123, %v56, 0
  %136 = vmatprep.subr.mxu0 0.0
  %137 = vmatpush1.msra.mxu0 %v57
  %138 = vmatprep.subr.mxu0 0.0
  %139 = vmatpush1.msra.mxu0 %v58
  %140 = vmatprep.subr.mxu0 0.0
  %141 = vmatpush1.msra.mxu0 0.0
  %142 = vmatprep.subr.mxu0 0.0
  %143 = vmatpush1.msra.mxu0 0.0
  %144 = vmatprep.subr.mxu0 0.0
  %145 = vmatpush1.msra.mxu0 0.0
  %146 = vmatprep.subr.mxu0 0.0
  %147 = vmatpush1.msra.mxu0 0.0
  %148 = vmatprep.subr.mxu0 0.0
  %149 = vmatpush1.msra.mxu0 0.0
  %150 = vmatprep.subr.mxu0 0.0
  %151 = vmatpush1.msra.mxu0 0.0
  %152 = vmatprep.subr.mxu0 0.0
  %153 = vmatpush1.msra.mxu0 0.0
  %154 = vmatprep.subr.mxu0 0.0
  %155 = vmatpush1.msra.mxu0 0.0
  %156 = vmatprep.subr.mxu0 0.0
  %157 = vmatpush1.msra.mxu0 0.0
  %158 = vmatprep.subr.mxu0 0.0
  %159 = vmatpush1.msra.mxu0 0.0
  %160 = vmatprep.subr.mxu0 0.0
  %161 = vmatpush1.msra.mxu0 0.0
  %162 = vmatprep.subr.mxu0 0.0
  %163 = vmatpush1.msra.mxu0 0.0
  %164 = vmatprep.subr.mxu0 0.0
  %165 = vmatpush1.msra.mxu0 0.0
  %166 = vmatprep.subr.mxu0 0.0
  %167 = vmatpush1.msra.mxu0 0.0
  %168 = vmatprep.subr.mxu0 0.0
  %169 = vmatpush1.msra.mxu0 0.0
  %170 = vmatprep.subr.mxu0 0.0
  %171 = vmatpush1.msra.mxu0 0.0
  %172 = vmatprep.subr.mxu0 0.0
  %173 = vmatpush1.msra.mxu0 0.0
  %174 = vmatprep.subr.mxu0 0.0
  %175 = vmatpush1.msra.mxu0 0.0
  %176 = vmatprep.subr.mxu0 0.0
  %177 = vmatpush1.msra.mxu0 0.0
  %178 = vmatprep.subr.mxu0 0.0
  %179 = vmatpush1.msra.mxu0 0.0
  %180 = vmatprep.subr.mxu0 0.0
  %181 = vmatpush1.msra.mxu0 0.0
  %182 = vmatprep.subr.mxu0 0.0
  %183 = vmatpush1.msra.mxu0 0.0
  %184 = vmatprep.subr.mxu0 0.0
  %185 = vmatpush1.msra.mxu0 0.0
  %186 = vmatprep.subr.mxu0 0.0
  %187 = vmatpush1.msra.mxu0 0.0
  %188 = vmatprep.subr.mxu0 0.0
  %189 = vmatpush1.msra.mxu0 0.0
  %190 = vmatprep.subr.mxu0 0.0
  %191 = vmatpush1.msra.mxu0 0.0
  %192 = vmatprep.subr.mxu0 0.0
  %193 = vmatpush1.msra.mxu0 0.0
  %194 = vmatprep.subr.mxu0 0.0
  %195 = vmatpush1.msra.mxu0 0.0
  %196 = vmatprep.subr.mxu0 0.0
  %197 = vmatpush1.msra.mxu0 0.0
  %198 = vmatprep.subr.mxu0 0.0
  %199 = vmatpush1.msra.mxu0 0.0
  %200 = vmatprep.mubr.f32.mxu0 0.0
  %201 = vmatmul.mubr.f32.gmra.mrb[0].mxu0 %v125
  %v202 = vpop.f32.mrb[0].mxu0
  %v203 = vadd.f32 0.0, %v202
  %v204 = vpop.f32.mrb[0].mxu0
  %205 = vmatprep.mubr.f32.mxu0 0.0
  %206 = vmatmul.mubr.f32.gmra.mrb[0].mxu0 %v128
  %v207 = vpop.f32.mrb[0].mxu0
  %v208 = vadd.f32 0.0, %v207
  %v209 = vpop.f32.mrb[0].mxu0
  %210 = vmatprep.mubr.f32.mxu0 0.0
  %211 = vmatmul.mubr.f32.gmra.mrb[0].mxu0 %v131
  %v212 = vpop.f32.mrb[0].mxu0
  %v213 = vadd.f32 0.0, %v212
  %v214 = vpop.f32.mrb[0].mxu0
  %215 = vmatprep.mubr.f32.mxu0 0.0
  %216 = vmatmul.mubr.f32.gmra.mrb[0].mxu0 %v134
  %v217 = vpop.f32.mrb[0].mxu0
  %v218 = vadd.f32 0.0, %v217
  %v219 = vpop.f32.mrb[0].mxu0
  %220 = vdwg.mxu0
  %v221 = vld [vmem:[%s2 + $0x2c8] sm:$0x1]
  %v222 = vld [vmem:[%s2 + $0x2c9] sm:$0x1]
  %vm223 = vcmask 261120
  %v224 = vsel %vm223, %v203, 0.0
  %225 = vadd.xlane.f32.xlu0 %v224
  %v226 = vpop.xlane.xlu0 %225
  %v227 = vsel %vm223, %v208, 0.0
  %228 = vadd.xlane.f32.xlu0 %v227
  %v229 = vpop.xlane.xlu0 %228
  %v230 = vsel %vm223, %v213, 0.0
  %231 = vadd.xlane.f32.xlu0 %v230
  %v232 = vpop.xlane.xlu0 %231
  %v233 = vsel %vm223, %v218, 0.0
  %234 = vadd.xlane.f32.xlu0 %v233
  %v235 = vpop.xlane.xlu0 %234
  %v236 = vrcp.pop 32.0
  %v237 = vmul.f32 %v226, %v236
  %v238 = vmul.f32 %v229, %v236
  %v239 = vmul.f32 %v232, %v236
  %v240 = vmul.f32 %v235, %v236
  %v241 = vsub.f32 %v203, %v237
  %v242 = vsub.f32 %v208, %v238
  %v243 = vsub.f32 %v213, %v239
  %v244 = vsub.f32 %v218, %v240
  %v245 = vmul.f32 %v241, %v241
  %v246 = vmul.f32 %v242, %v242
  %v247 = vmul.f32 %v243, %v243
  %v248 = vmul.f32 %v244, %v244
  %v249 = vsel %vm223, %v245, 0.0
  %250 = vadd.xlane.f32.xlu0 %v249
  %v251 = vpop.xlane.xlu0 %250
  %v252 = vsel %vm223, %v246, 0.0
  %253 = vadd.xlane.f32.xlu0 %v252
  %v254 = vpop.xlane.xlu0 %253
  %v255 = vsel %vm223, %v247, 0.0
  %256 = vadd.xlane.f32.xlu0 %v255
  %v257 = vpop.xlane.xlu0 %256
  %v258 = vsel %vm223, %v248, 0.0
  %259 = vadd.xlane.f32.xlu0 %v258
  %v260 = vpop.xlane.xlu0 %259
  %v261 = vmul.f32 %v251, %v236
  %v262 = vmul.f32 %v254, %v236
  %v263 = vmul.f32 %v257, %v236
  %v264 = vmul.f32 %v260, %v236
  %v265 = vadd.f32 %v261, 1e-05
  %v266 = vadd.f32 %v262, 1e-05
  %v267 = vadd.f32 %v263, 1e-05
  %v268 = vadd.f32 %v264, 1e-05
  %v269 = vrsqrt.pop %v265
  %v270 = vrsqrt.pop %v266
  %v271 = vrsqrt.pop %v267
  %v272 = vrsqrt.pop %v268
  %v273 = vmul.f32 %v241, %v269
  %v274 = vmul.f32 %v242, %v270
  %v275 = vmul.f32 %v243, %v271
  %v276 = vmul.f32 %v244, %v272
  %v277 = vlaneseq
  %v278 = vshrl.u32 %v277, 7
  %v279 = vsub.s32 0, %v278
  %v280 = vrot.slane %v221, %v279
  %v281 = vmul.f32 %v273, %v280
  %v282 = vmul.f32 %v274, %v280
  %v283 = vmul.f32 %v275, %v280
  %v284 = vmul.f32 %v276, %v280
  %v285 = vlaneseq
  %v286 = vshrl.u32 %v285, 7
  %v287 = vsub.s32 0, %v286
  %v288 = vrot.slane %v222, %v287
  %v289 = vadd.f32 %v281, %v288
  %v290 = vadd.f32 %v282, %v288
  %v291 = vadd.f32 %v283, %v288
  %v292 = vadd.f32 %v284, %v288
  %v293 = vpack.c.bf16 %v290, %v289
  %v294 = vpack.c.bf16 %v292, %v291
  %v295 = vld [vmem:[%s4] sm:$0xf]
  %v296 = vld [vmem:[%s4 + $0x4] sm:$0xf]
  %v297 = vld [vmem:[%s4 + $0x8] sm:$0xf]
  %v298 = vld [vmem:[%s4 + $0xc] sm:$0xf]
  %v299 = vld [vmem:[%s2 + $0x2ca] sm:$0x1]
  %v300 = vlaneseq
  %v301 = vshrl.u32 %v300, 7
  %v302 = vsub.s32 0, %v301
  %v303 = vrot.slane %v299, %v302
  %v308 = vunpack.c.l.b16 %v295
  %v309 = vunpack.c.l.b16 %v296
  %v310 = vunpack.c.l.b16 %v297
  %v311 = vunpack.c.l.b16 %v298
  %v312 = vpack.c.b16 %v309, %v308
  %v313 = vpack.c.b16 %v311, %v310
  %v317 = vsel %vm223, %v293, 0
  %v320 = vsel %vm223, %v294, 0
  %322 = vmatprep.subr.bf16.mxu0 0
  %323 = vmatpush1.bf16.msra.mxu0 %v312
  %324 = vmatprep.subr.bf16.mxu0 0
  %325 = vmatpush1.bf16.msra.mxu0 %v313
  %326 = vmatprep.subr.bf16.mxu0 0
  %327 = vmatpush1.bf16.msra.mxu0 0
  %328 = vmatprep.subr.bf16.mxu0 0
  %329 = vmatpush1.bf16.msra.mxu0 0
  %330 = vmatprep.subr.bf16.mxu0 0
  %331 = vmatpush1.bf16.msra.mxu0 0
  %332 = vmatprep.subr.bf16.mxu0 0
  %333 = vmatpush1.bf16.msra.mxu0 0
  %334 = vmatprep.subr.bf16.mxu0 0
  %335 = vmatpush1.bf16.msra.mxu0 0
  %336 = vmatprep.subr.bf16.mxu0 0
  %337 = vmatpush1.bf16.msra.mxu0 0
  %338 = vmatprep.subr.bf16.mxu0 0
  %339 = vmatpush1.bf16.msra.mxu0 0
  %340 = vmatprep.subr.bf16.mxu0 0
  %341 = vmatpush1.bf16.msra.mxu0 0
  %342 = vmatprep.subr.bf16.mxu0 0
  %343 = vmatpush1.bf16.msra.mxu0 0
  %344 = vmatprep.subr.bf16.mxu0 0
  %345 = vmatpush1.bf16.msra.mxu0 0
  %346 = vmatprep.subr.bf16.mxu0 0
  %347 = vmatpush1.bf16.msra.mxu0 0
  %348 = vmatprep.subr.bf16.mxu0 0
  %349 = vmatpush1.bf16.msra.mxu0 0
  %350 = vmatprep.subr.bf16.mxu0 0
  %351 = vmatpush1.bf16.msra.mxu0 0
  %352 = vmatprep.subr.bf16.mxu0 0
  %353 = vmatpush1.bf16.msra.mxu0 0
  %354 = vmatprep.mubr.bf16.mxu0 0
  %355 = vmatmul.mubr.bf16.gmra.mrb[0].mxu0 %v317
  %v356 = vpop.f32.mrb[0].mxu0
  %v357 = vadd.f32 %v303, %v356
  %v358 = vpop.f32.mrb[0].mxu0
  %v359 = vpop.f32.mrb[0].mxu0
  %v360 = vadd.f32 %v303, %v359
  %v361 = vpop.f32.mrb[0].mxu0
  %362 = vmatprep.mubr.bf16.mxu0 0
  %363 = vmatmul.mubr.bf16.gmra.mrb[0].mxu0 %v320
  %v364 = vpop.f32.mrb[0].mxu0
  %v365 = vadd.f32 %v303, %v364
  %v366 = vpop.f32.mrb[0].mxu0
  %v367 = vpop.f32.mrb[0].mxu0
  %v368 = vadd.f32 %v303, %v367
  %v369 = vpop.f32.mrb[0].mxu0
  %370 = vdwg.mxu0
  %v372 = vsel %vm223, %v59, 0
  %v375 = vsel %vm223, %v60, 0
  %v378 = vsel %vm223, %v61, 0
  %v381 = vsel %vm223, %v62, 0
  %v384 = vsel %vm223, %v63, 0
  %v387 = vsel %vm223, %v64, 0
  %v390 = vsel %vm223, %v65, 0
  %v393 = vsel %vm223, %v66, 0
  %v396 = vsel %vm223, %v67, 0
  %v399 = vsel %vm223, %v68, 0
  %v402 = vsel %vm223, %v69, 0
  %v405 = vsel %vm223, %v70, 0
  %407 = vmatprep.subr.mxu0 0.0
  %408 = vmatpush1.msra.mxu0 %v357
  %409 = vmatprep.subr.mxu0 0.0
  %410 = vmatpush1.msra.mxu0 %v360
  %411 = vmatprep.subr.mxu0 0.0
  %412 = vmatpush1.msra.mxu0 %v365
  %413 = vmatprep.subr.mxu0 0.0
  %414 = vmatpush1.msra.mxu0 %v368
  %415 = vmatprep.subr.mxu0 0.0
  %416 = vmatpush1.msra.mxu0 0.0
  %417 = vmatprep.subr.mxu0 0.0
  %418 = vmatpush1.msra.mxu0 0.0
  %419 = vmatprep.subr.mxu0 0.0
  %420 = vmatpush1.msra.mxu0 0.0
  %421 = vmatprep.subr.mxu0 0.0
  %422 = vmatpush1.msra.mxu0 0.0
  %423 = vmatprep.subr.mxu0 0.0
  %424 = vmatpush1.msra.mxu0 0.0
  %425 = vmatprep.subr.mxu0 0.0
  %426 = vmatpush1.msra.mxu0 0.0
  %427 = vmatprep.subr.mxu0 0.0
  %428 = vmatpush1.msra.mxu0 0.0
  %429 = vmatprep.subr.mxu0 0.0
  %430 = vmatpush1.msra.mxu0 0.0
  %431 = vmatprep.subr.mxu0 0.0
  %432 = vmatpush1.msra.mxu0 0.0
  %433 = vmatprep.subr.mxu0 0.0
  %434 = vmatpush1.msra.mxu0 0.0
  %435 = vmatprep.subr.mxu0 0.0
  %436 = vmatpush1.msra.mxu0 0.0
  %437 = vmatprep.subr.mxu0 0.0
  %438 = vmatpush1.msra.mxu0 0.0
  %439 = vmatprep.subr.mxu0 0.0
  %440 = vmatpush1.msra.mxu0 0.0
  %441 = vmatprep.subr.mxu0 0.0
  %442 = vmatpush1.msra.mxu0 0.0
  %443 = vmatprep.subr.mxu0 0.0
  %444 = vmatpush1.msra.mxu0 0.0
  %445 = vmatprep.subr.mxu0 0.0
  %446 = vmatpush1.msra.mxu0 0.0
  %447 = vmatprep.subr.mxu0 0.0
  %448 = vmatpush1.msra.mxu0 0.0
  %449 = vmatprep.subr.mxu0 0.0
  %450 = vmatpush1.msra.mxu0 0.0
  %451 = vmatprep.subr.mxu0 0.0
  %452 = vmatpush1.msra.mxu0 0.0
  %453 = vmatprep.subr.mxu0 0.0
  %454 = vmatpush1.msra.mxu0 0.0
  %455 = vmatprep.subr.mxu0 0.0
  %456 = vmatpush1.msra.mxu0 0.0
  %457 = vmatprep.subr.mxu0 0.0
  %458 = vmatpush1.msra.mxu0 0.0
  %459 = vmatprep.subr.mxu0 0.0
  %460 = vmatpush1.msra.mxu0 0.0
  %461 = vmatprep.subr.mxu0 0.0
  %462 = vmatpush1.msra.mxu0 0.0
  %463 = vmatprep.subr.mxu0 0.0
  %464 = vmatpush1.msra.mxu0 0.0
  %465 = vmatprep.subr.mxu0 0.0
  %466 = vmatpush1.msra.mxu0 0.0
  %467 = vmatprep.subr.mxu0 0.0
  %468 = vmatpush1.msra.mxu0 0.0
  %469 = vmatprep.subr.mxu0 0.0
  %470 = vmatpush1.msra.mxu0 0.0
  %471 = vmatprep.mubr.f32.mxu0 0.0
  %472 = vmatmul.mubr.f32.gmra.mrb[0].mxu0 %v372
  %v473 = vpop.f32.mrb[0].mxu0
  %v474 = vadd.f32 0.0, %v473
  %v475 = vpop.f32.mrb[0].mxu0
  %476 = vmatprep.mubr.f32.mxu0 0.0
  %477 = vmatmul.mubr.f32.gmra.mrb[0].mxu0 %v375
  %v478 = vpop.f32.mrb[0].mxu0
  %v479 = vadd.f32 0.0, %v478
  %v480 = vpop.f32.mrb[0].mxu0
  %481 = vmatprep.mubr.f32.mxu0 0.0
  %482 = vmatmul.mubr.f32.gmra.mrb[0].mxu0 %v378
  %v483 = vpop.f32.mrb[0].mxu0
  %v484 = vadd.f32 0.0, %v483
  %v485 = vpop.f32.mrb[0].mxu0
  %486 = vmatprep.mubr.f32.mxu0 0.0
  %487 = vmatmul.mubr.f32.gmra.mrb[0].mxu0 %v381
  %v488 = vpop.f32.mrb[0].mxu0
  %v489 = vadd.f32 0.0, %v488
  %v490 = vpop.f32.mrb[0].mxu0
  %491 = vmatprep.mubr.f32.mxu0 0.0
  %492 = vmatmul.mubr.f32.gmra.mrb[0].mxu0 %v384
  %v493 = vpop.f32.mrb[0].mxu0
  %v494 = vadd.f32 0.0, %v493
  %v495 = vpop.f32.mrb[0].mxu0
  %496 = vmatprep.mubr.f32.mxu0 0.0
  %497 = vmatmul.mubr.f32.gmra.mrb[0].mxu0 %v387
  %v498 = vpop.f32.mrb[0].mxu0
  %v499 = vadd.f32 0.0, %v498
  %v500 = vpop.f32.mrb[0].mxu0
  %501 = vmatprep.mubr.f32.mxu0 0.0
  %502 = vmatmul.mubr.f32.gmra.mrb[0].mxu0 %v390
  %v503 = vpop.f32.mrb[0].mxu0
  %v504 = vadd.f32 0.0, %v503
  %v505 = vpop.f32.mrb[0].mxu0
  %506 = vmatprep.mubr.f32.mxu0 0.0
  %507 = vmatmul.mubr.f32.gmra.mrb[0].mxu0 %v393
  %v508 = vpop.f32.mrb[0].mxu0
  %v509 = vadd.f32 0.0, %v508
  %v510 = vpop.f32.mrb[0].mxu0
  %511 = vmatprep.mubr.f32.mxu0 0.0
  %512 = vmatmul.mubr.f32.gmra.mrb[0].mxu0 %v396
  %v513 = vpop.f32.mrb[0].mxu0
  %v514 = vadd.f32 0.0, %v513
  %v515 = vpop.f32.mrb[0].mxu0
  %516 = vmatprep.mubr.f32.mxu0 0.0
  %517 = vmatmul.mubr.f32.gmra.mrb[0].mxu0 %v399
  %v518 = vpop.f32.mrb[0].mxu0
  %v519 = vadd.f32 0.0, %v518
  %v520 = vpop.f32.mrb[0].mxu0
  %521 = vmatprep.mubr.f32.mxu0 0.0
  %522 = vmatmul.mubr.f32.gmra.mrb[0].mxu0 %v402
  %v523 = vpop.f32.mrb[0].mxu0
  %v524 = vadd.f32 0.0, %v523
  %v525 = vpop.f32.mrb[0].mxu0
  %526 = vmatprep.mubr.f32.mxu0 0.0
  %527 = vmatmul.mubr.f32.gmra.mrb[0].mxu0 %v405
  %v528 = vpop.f32.mrb[0].mxu0
  %v529 = vadd.f32 0.0, %v528
  %v530 = vpop.f32.mrb[0].mxu0
  %531 = vdwg.mxu0
  %v532 = vld [vmem:[%s2 + $0x2d6] sm:$0x1]
  %v533 = vld [vmem:[%s2 + $0x2cd] sm:$0x1]
  %v534 = vlaneseq
  %v535 = vshrl.u32 %v534, 7
  %v536 = vsub.s32 0, %v535
  %v537 = vrot.slane %v533, %v536
  %v538 = vmul.f32 %v474, %v537
  %v539 = vmul.f32 %v479, %v537
  %v540 = vmul.f32 %v484, %v537
  %v541 = vmul.f32 %v489, %v537
  %v542 = vlaneseq
  %v543 = vshrl.u32 %v542, 7
  %v544 = vsub.s32 0, %v543
  %v545 = vrot.slane %v532, %v544
  %v546 = vadd.f32 %v545, %v538
  %v547 = vadd.f32 %v545, %v539
  %v548 = vadd.f32 %v545, %v540
  %v549 = vadd.f32 %v545, %v541
  %v550 = vld [vmem:[%s2 + $0x2ce] sm:$0x1]
  %v551 = vlaneseq
  %v552 = vshrl.u32 %v551, 7
  %v553 = vsub.s32 0, %v552
  %v554 = vrot.slane %v550, %v553
  %v555 = vmul.f32 %v494, %v554
  %v556 = vmul.f32 %v499, %v554
  %v557 = vmul.f32 %v504, %v554
  %v558 = vmul.f32 %v509, %v554
  %v559 = vadd.f32 %v546, %v555
  %v560 = vadd.f32 %v547, %v556
  %v561 = vadd.f32 %v548, %v557
  %v562 = vadd.f32 %v549, %v558
  %v563 = vld [vmem:[%s2 + $0x2cf] sm:$0x1]
  %v564 = vlaneseq
  %v565 = vshrl.u32 %v564, 7
  %v566 = vsub.s32 0, %v565
  %v567 = vrot.slane %v563, %v566
  %v568 = vmul.f32 %v514, %v567
  %v569 = vmul.f32 %v519, %v567
  %v570 = vmul.f32 %v524, %v567
  %v571 = vmul.f32 %v529, %v567
  %v572 = vadd.f32 %v559, %v568
  %v573 = vadd.f32 %v560, %v569
  %v574 = vadd.f32 %v561, %v570
  %v575 = vadd.f32 %v562, %v571
  %s576 = scalar_lea.vmem %s4, 16
  %v577 = vld [vmem:[%s576] sm:$0xf]
  %v578 = vld [vmem:[%s576 + $0x4] sm:$0xf]
  %v579 = vld [vmem:[%s576 + $0x8] sm:$0xf]
  %v580 = vld [vmem:[%s576 + $0xc] sm:$0xf]
  %v581 = vld [vmem:[%s2 + $0x2cb] sm:$0x1]
  %v582 = vlaneseq
  %v583 = vshrl.u32 %v582, 7
  %v584 = vsub.s32 0, %v583
  %v585 = vrot.slane %v581, %v584
  %v590 = vunpack.c.l.b16 %v577
  %v591 = vunpack.c.l.b16 %v578
  %v592 = vunpack.c.l.b16 %v579
  %v593 = vunpack.c.l.b16 %v580
  %v594 = vpack.c.b16 %v591, %v590
  %v595 = vpack.c.b16 %v593, %v592
  %598 = vmatprep.subr.bf16.mxu0 0
  %599 = vmatpush1.bf16.msra.mxu0 %v594
  %600 = vmatprep.subr.bf16.mxu0 0
  %601 = vmatpush1.bf16.msra.mxu0 %v595
  %602 = vmatprep.subr.bf16.mxu0 0
  %603 = vmatpush1.bf16.msra.mxu0 0
  %604 = vmatprep.subr.bf16.mxu0 0
  %605 = vmatpush1.bf16.msra.mxu0 0
  %606 = vmatprep.subr.bf16.mxu0 0
  %607 = vmatpush1.bf16.msra.mxu0 0
  %608 = vmatprep.subr.bf16.mxu0 0
  %609 = vmatpush1.bf16.msra.mxu0 0
  %610 = vmatprep.subr.bf16.mxu0 0
  %611 = vmatpush1.bf16.msra.mxu0 0
  %612 = vmatprep.subr.bf16.mxu0 0
  %613 = vmatpush1.bf16.msra.mxu0 0
  %614 = vmatprep.subr.bf16.mxu0 0
  %615 = vmatpush1.bf16.msra.mxu0 0
  %616 = vmatprep.subr.bf16.mxu0 0
  %617 = vmatpush1.bf16.msra.mxu0 0
  %618 = vmatprep.subr.bf16.mxu0 0
  %619 = vmatpush1.bf16.msra.mxu0 0
  %620 = vmatprep.subr.bf16.mxu0 0
  %621 = vmatpush1.bf16.msra.mxu0 0
  %622 = vmatprep.subr.bf16.mxu0 0
  %623 = vmatpush1.bf16.msra.mxu0 0
  %624 = vmatprep.subr.bf16.mxu0 0
  %625 = vmatpush1.bf16.msra.mxu0 0
  %626 = vmatprep.subr.bf16.mxu0 0
  %627 = vmatpush1.bf16.msra.mxu0 0
  %628 = vmatprep.subr.bf16.mxu0 0
  %629 = vmatpush1.bf16.msra.mxu0 0
  %630 = vmatprep.mubr.bf16.mxu0 0
  %631 = vmatmul.mubr.bf16.gmra.mrb[0].mxu0 %v317
  %v632 = vpop.f32.mrb[0].mxu0
  %v633 = vadd.f32 %v585, %v632
  %v634 = vpop.f32.mrb[0].mxu0
  %v635 = vpop.f32.mrb[0].mxu0
  %v636 = vadd.f32 %v585, %v635
  %v637 = vpop.f32.mrb[0].mxu0
  %638 = vmatprep.mubr.bf16.mxu0 0
  %639 = vmatmul.mubr.bf16.gmra.mrb[0].mxu0 %v320
  %v640 = vpop.f32.mrb[0].mxu0
  %v641 = vadd.f32 %v585, %v640
  %v642 = vpop.f32.mrb[0].mxu0
  %v643 = vpop.f32.mrb[0].mxu0
  %v644 = vadd.f32 %v585, %v643
  %v645 = vpop.f32.mrb[0].mxu0
  %646 = vdwg.mxu0
  %647 = vmatprep.subr.mxu0 0.0
  %648 = vmatpush1.msra.mxu0 %v633
  %649 = vmatprep.subr.mxu0 0.0
  %650 = vmatpush1.msra.mxu0 %v636
  %651 = vmatprep.subr.mxu0 0.0
  %652 = vmatpush1.msra.mxu0 %v641
  %653 = vmatprep.subr.mxu0 0.0
  %654 = vmatpush1.msra.mxu0 %v644
  %655 = vmatprep.subr.mxu0 0.0
  %656 = vmatpush1.msra.mxu0 0.0
  %657 = vmatprep.subr.mxu0 0.0
  %658 = vmatpush1.msra.mxu0 0.0
  %659 = vmatprep.subr.mxu0 0.0
  %660 = vmatpush1.msra.mxu0 0.0
  %661 = vmatprep.subr.mxu0 0.0
  %662 = vmatpush1.msra.mxu0 0.0
  %663 = vmatprep.subr.mxu0 0.0
  %664 = vmatpush1.msra.mxu0 0.0
  %665 = vmatprep.subr.mxu0 0.0
  %666 = vmatpush1.msra.mxu0 0.0
  %667 = vmatprep.subr.mxu0 0.0
  %668 = vmatpush1.msra.mxu0 0.0
  %669 = vmatprep.subr.mxu0 0.0
  %670 = vmatpush1.msra.mxu0 0.0
  %671 = vmatprep.subr.mxu0 0.0
  %672 = vmatpush1.msra.mxu0 0.0
  %673 = vmatprep.subr.mxu0 0.0
  %674 = vmatpush1.msra.mxu0 0.0
  %675 = vmatprep.subr.mxu0 0.0
  %676 = vmatpush1.msra.mxu0 0.0
  %677 = vmatprep.subr.mxu0 0.0
  %678 = vmatpush1.msra.mxu0 0.0
  %679 = vmatprep.subr.mxu0 0.0
  %680 = vmatpush1.msra.mxu0 0.0
  %681 = vmatprep.subr.mxu0 0.0
  %682 = vmatpush1.msra.mxu0 0.0
  %683 = vmatprep.subr.mxu0 0.0
  %684 = vmatpush1.msra.mxu0 0.0
  %685 = vmatprep.subr.mxu0 0.0
  %686 = vmatpush1.msra.mxu0 0.0
  %687 = vmatprep.subr.mxu0 0.0
  %688 = vmatpush1.msra.mxu0 0.0
  %689 = vmatprep.subr.mxu0 0.0
  %690 = vmatpush1.msra.mxu0 0.0
  %691 = vmatprep.subr.mxu0 0.0
  %692 = vmatpush1.msra.mxu0 0.0
  %693 = vmatprep.subr.mxu0 0.0
  %694 = vmatpush1.msra.mxu0 0.0
  %695 = vmatprep.subr.mxu0 0.0
  %696 = vmatpush1.msra.mxu0 0.0
  %697 = vmatprep.subr.mxu0 0.0
  %698 = vmatpush1.msra.mxu0 0.0
  %699 = vmatprep.subr.mxu0 0.0
  %700 = vmatpush1.msra.mxu0 0.0
  %701 = vmatprep.subr.mxu0 0.0
  %702 = vmatpush1.msra.mxu0 0.0
  %703 = vmatprep.subr.mxu0 0.0
  %704 = vmatpush1.msra.mxu0 0.0
  %705 = vmatprep.subr.mxu0 0.0
  %706 = vmatpush1.msra.mxu0 0.0
  %707 = vmatprep.subr.mxu0 0.0
  %708 = vmatpush1.msra.mxu0 0.0
  %709 = vmatprep.subr.mxu0 0.0
  %710 = vmatpush1.msra.mxu0 0.0
  %711 = vmatprep.mubr.f32.mxu0 0.0
  %712 = vmatmul.mubr.f32.gmra.mrb[0].mxu0 %v372
  %v713 = vpop.f32.mrb[0].mxu0
  %v714 = vadd.f32 0.0, %v713
  %v715 = vpop.f32.mrb[0].mxu0
  %716 = vmatprep.mubr.f32.mxu0 0.0
  %717 = vmatmul.mubr.f32.gmra.mrb[0].mxu0 %v375
  %v718 = vpop.f32.mrb[0].mxu0
  %v719 = vadd.f32 0.0, %v718
  %v720 = vpop.f32.mrb[0].mxu0
  %721 = vmatprep.mubr.f32.mxu0 0.0
  %722 = vmatmul.mubr.f32.gmra.mrb[0].mxu0 %v378
  %v723 = vpop.f32.mrb[0].mxu0
  %v724 = vadd.f32 0.0, %v723
  %v725 = vpop.f32.mrb[0].mxu0
  %726 = vmatprep.mubr.f32.mxu0 0.0
  %727 = vmatmul.mubr.f32.gmra.mrb[0].mxu0 %v381
  %v728 = vpop.f32.mrb[0].mxu0
  %v729 = vadd.f32 0.0, %v728
  %v730 = vpop.f32.mrb[0].mxu0
  %731 = vmatprep.mubr.f32.mxu0 0.0
  %732 = vmatmul.mubr.f32.gmra.mrb[0].mxu0 %v384
  %v733 = vpop.f32.mrb[0].mxu0
  %v734 = vadd.f32 0.0, %v733
  %v735 = vpop.f32.mrb[0].mxu0
  %736 = vmatprep.mubr.f32.mxu0 0.0
  %737 = vmatmul.mubr.f32.gmra.mrb[0].mxu0 %v387
  %v738 = vpop.f32.mrb[0].mxu0
  %v739 = vadd.f32 0.0, %v738
  %v740 = vpop.f32.mrb[0].mxu0
  %741 = vmatprep.mubr.f32.mxu0 0.0
  %742 = vmatmul.mubr.f32.gmra.mrb[0].mxu0 %v390
  %v743 = vpop.f32.mrb[0].mxu0
  %v744 = vadd.f32 0.0, %v743
  %v745 = vpop.f32.mrb[0].mxu0
  %746 = vmatprep.mubr.f32.mxu0 0.0
  %747 = vmatmul.mubr.f32.gmra.mrb[0].mxu0 %v393
  %v748 = vpop.f32.mrb[0].mxu0
  %v749 = vadd.f32 0.0, %v748
  %v750 = vpop.f32.mrb[0].mxu0
  %751 = vmatprep.mubr.f32.mxu0 0.0
  %752 = vmatmul.mubr.f32.gmra.mrb[0].mxu0 %v396
  %v753 = vpop.f32.mrb[0].mxu0
  %v754 = vadd.f32 0.0, %v753
  %v755 = vpop.f32.mrb[0].mxu0
  %756 = vmatprep.mubr.f32.mxu0 0.0
  %757 = vmatmul.mubr.f32.gmra.mrb[0].mxu0 %v399
  %v758 = vpop.f32.mrb[0].mxu0
  %v759 = vadd.f32 0.0, %v758
  %v760 = vpop.f32.mrb[0].mxu0
  %761 = vmatprep.mubr.f32.mxu0 0.0
  %762 = vmatmul.mubr.f32.gmra.mrb[0].mxu0 %v402
  %v763 = vpop.f32.mrb[0].mxu0
  %v764 = vadd.f32 0.0, %v763
  %v765 = vpop.f32.mrb[0].mxu0
  %766 = vmatprep.mubr.f32.mxu0 0.0
  %767 = vmatmul.mubr.f32.gmra.mrb[0].mxu0 %v405
  %v768 = vpop.f32.mrb[0].mxu0
  %v769 = vadd.f32 0.0, %v768
  %v770 = vpop.f32.mrb[0].mxu0
  %771 = vdwg.mxu0
  %v772 = vld [vmem:[%s2 + $0x2d7] sm:$0x1]
  %v773 = vld [vmem:[%s2 + $0x2d0] sm:$0x1]
  %v774 = vlaneseq
  %v775 = vshrl.u32 %v774, 7
  %v776 = vsub.s32 0, %v775
  %v777 = vrot.slane %v773, %v776
  %v778 = vmul.f32 %v714, %v777
  %v779 = vmul.f32 %v719, %v777
  %v780 = vmul.f32 %v724, %v777
  %v781 = vmul.f32 %v729, %v777
  %v782 = vlaneseq
  %v783 = vshrl.u32 %v782, 7
  %v784 = vsub.s32 0, %v783
  %v785 = vrot.slane %v772, %v784
  %v786 = vadd.f32 %v785, %v778
  %v787 = vadd.f32 %v785, %v779
  %v788 = vadd.f32 %v785, %v780
  %v789 = vadd.f32 %v785, %v781
  %v790 = vld [vmem:[%s2 + $0x2d1] sm:$0x1]
  %v791 = vlaneseq
  %v792 = vshrl.u32 %v791, 7
  %v793 = vsub.s32 0, %v792
  %v794 = vrot.slane %v790, %v793
  %v795 = vmul.f32 %v734, %v794
  %v796 = vmul.f32 %v739, %v794
  %v797 = vmul.f32 %v744, %v794
  %v798 = vmul.f32 %v749, %v794
  %v799 = vadd.f32 %v786, %v795
  %v800 = vadd.f32 %v787, %v796
  %v801 = vadd.f32 %v788, %v797
  %v802 = vadd.f32 %v789, %v798
  %v803 = vld [vmem:[%s2 + $0x2d2] sm:$0x1]
  %v804 = vlaneseq
  %v805 = vshrl.u32 %v804, 7
  %v806 = vsub.s32 0, %v805
  %v807 = vrot.slane %v803, %v806
  %v808 = vmul.f32 %v754, %v807
  %v809 = vmul.f32 %v759, %v807
  %v810 = vmul.f32 %v764, %v807
  %v811 = vmul.f32 %v769, %v807
  %v812 = vadd.f32 %v799, %v808
  %v813 = vadd.f32 %v800, %v809
  %v814 = vadd.f32 %v801, %v810
  %v815 = vadd.f32 %v802, %v811
  %s816 = scalar_lea.vmem %s4, 32
  %v817 = vld [vmem:[%s816] sm:$0xf]
  %v818 = vld [vmem:[%s816 + $0x4] sm:$0xf]
  %v819 = vld [vmem:[%s816 + $0x8] sm:$0xf]
  %v820 = vld [vmem:[%s816 + $0xc] sm:$0xf]
  %v821 = vld [vmem:[%s2 + $0x2cc] sm:$0x1]
  %v822 = vlaneseq
  %v823 = vshrl.u32 %v822, 7
  %v824 = vsub.s32 0, %v823
  %v825 = vrot.slane %v821, %v824
  %v830 = vunpack.c.l.b16 %v817
  %v831 = vunpack.c.l.b16 %v818
  %v832 = vunpack.c.l.b16 %v819
  %v833 = vunpack.c.l.b16 %v820
  %v834 = vpack.c.b16 %v831, %v830
  %v835 = vpack.c.b16 %v833, %v832
  %838 = vmatprep.subr.bf16.mxu0 0
  %839 = vmatpush1.bf16.msra.mxu0 %v834
  %840 = vmatprep.subr.bf16.mxu0 0
  %841 = vmatpush1.bf16.msra.mxu0 %v835
  %842 = vmatprep.subr.bf16.mxu0 0
  %843 = vmatpush1.bf16.msra.mxu0 0
  %844 = vmatprep.subr.bf16.mxu0 0
  %845 = vmatpush1.bf16.msra.mxu0 0
  %846 = vmatprep.subr.bf16.mxu0 0
  %847 = vmatpush1.bf16.msra.mxu0 0
  %848 = vmatprep.subr.bf16.mxu0 0
  %849 = vmatpush1.bf16.msra.mxu0 0
  %850 = vmatprep.subr.bf16.mxu0 0
  %851 = vmatpush1.bf16.msra.mxu0 0
  %852 = vmatprep.subr.bf16.mxu0 0
  %853 = vmatpush1.bf16.msra.mxu0 0
  %854 = vmatprep.subr.bf16.mxu0 0
  %855 = vmatpush1.bf16.msra.mxu0 0
  %856 = vmatprep.subr.bf16.mxu0 0
  %857 = vmatpush1.bf16.msra.mxu0 0
  %858 = vmatprep.subr.bf16.mxu0 0
  %859 = vmatpush1.bf16.msra.mxu0 0
  %860 = vmatprep.subr.bf16.mxu0 0
  %861 = vmatpush1.bf16.msra.mxu0 0
  %862 = vmatprep.subr.bf16.mxu0 0
  %863 = vmatpush1.bf16.msra.mxu0 0
  %864 = vmatprep.subr.bf16.mxu0 0
  %865 = vmatpush1.bf16.msra.mxu0 0
  %866 = vmatprep.subr.bf16.mxu0 0
  %867 = vmatpush1.bf16.msra.mxu0 0
  %868 = vmatprep.subr.bf16.mxu0 0
  %869 = vmatpush1.bf16.msra.mxu0 0
  %870 = vmatprep.mubr.bf16.mxu0 0
  %871 = vmatmul.mubr.bf16.gmra.mrb[0].mxu0 %v317
  %v872 = vpop.f32.mrb[0].mxu0
  %v873 = vadd.f32 %v825, %v872
  %v874 = vpop.f32.mrb[0].mxu0
  %v875 = vpop.f32.mrb[0].mxu0
  %v876 = vadd.f32 %v825, %v875
  %v877 = vpop.f32.mrb[0].mxu0
  %878 = vmatprep.mubr.bf16.mxu0 0
  %879 = vmatmul.mubr.bf16.gmra.mrb[0].mxu0 %v320
  %v880 = vpop.f32.mrb[0].mxu0
  %v881 = vadd.f32 %v825, %v880
  %v882 = vpop.f32.mrb[0].mxu0
  %v883 = vpop.f32.mrb[0].mxu0
  %v884 = vadd.f32 %v825, %v883
  %v885 = vpop.f32.mrb[0].mxu0
  %886 = vdwg.mxu0
  %887 = vmatprep.subr.mxu0 0.0
  %888 = vmatpush1.msra.mxu0 %v873
  %889 = vmatprep.subr.mxu0 0.0
  %890 = vmatpush1.msra.mxu0 %v876
  %891 = vmatprep.subr.mxu0 0.0
  %892 = vmatpush1.msra.mxu0 %v881
  %893 = vmatprep.subr.mxu0 0.0
  %894 = vmatpush1.msra.mxu0 %v884
  %895 = vmatprep.subr.mxu0 0.0
  %896 = vmatpush1.msra.mxu0 0.0
  %897 = vmatprep.subr.mxu0 0.0
  %898 = vmatpush1.msra.mxu0 0.0
  %899 = vmatprep.subr.mxu0 0.0
  %900 = vmatpush1.msra.mxu0 0.0
  %901 = vmatprep.subr.mxu0 0.0
  %902 = vmatpush1.msra.mxu0 0.0
  %903 = vmatprep.subr.mxu0 0.0
  %904 = vmatpush1.msra.mxu0 0.0
  %905 = vmatprep.subr.mxu0 0.0
  %906 = vmatpush1.msra.mxu0 0.0
  %907 = vmatprep.subr.mxu0 0.0
  %908 = vmatpush1.msra.mxu0 0.0
  %909 = vmatprep.subr.mxu0 0.0
  %910 = vmatpush1.msra.mxu0 0.0
  %911 = vmatprep.subr.mxu0 0.0
  %912 = vmatpush1.msra.mxu0 0.0
  %913 = vmatprep.subr.mxu0 0.0
  %914 = vmatpush1.msra.mxu0 0.0
  %915 = vmatprep.subr.mxu0 0.0
  %916 = vmatpush1.msra.mxu0 0.0
  %917 = vmatprep.subr.mxu0 0.0
  %918 = vmatpush1.msra.mxu0 0.0
  %919 = vmatprep.subr.mxu0 0.0
  %920 = vmatpush1.msra.mxu0 0.0
  %921 = vmatprep.subr.mxu0 0.0
  %922 = vmatpush1.msra.mxu0 0.0
  %923 = vmatprep.subr.mxu0 0.0
  %924 = vmatpush1.msra.mxu0 0.0
  %925 = vmatprep.subr.mxu0 0.0
  %926 = vmatpush1.msra.mxu0 0.0
  %927 = vmatprep.subr.mxu0 0.0
  %928 = vmatpush1.msra.mxu0 0.0
  %929 = vmatprep.subr.mxu0 0.0
  %930 = vmatpush1.msra.mxu0 0.0
  %931 = vmatprep.subr.mxu0 0.0
  %932 = vmatpush1.msra.mxu0 0.0
  %933 = vmatprep.subr.mxu0 0.0
  %934 = vmatpush1.msra.mxu0 0.0
  %935 = vmatprep.subr.mxu0 0.0
  %936 = vmatpush1.msra.mxu0 0.0
  %937 = vmatprep.subr.mxu0 0.0
  %938 = vmatpush1.msra.mxu0 0.0
  %939 = vmatprep.subr.mxu0 0.0
  %940 = vmatpush1.msra.mxu0 0.0
  %941 = vmatprep.subr.mxu0 0.0
  %942 = vmatpush1.msra.mxu0 0.0
  %943 = vmatprep.subr.mxu0 0.0
  %944 = vmatpush1.msra.mxu0 0.0
  %945 = vmatprep.subr.mxu0 0.0
  %946 = vmatpush1.msra.mxu0 0.0
  %947 = vmatprep.subr.mxu0 0.0
  %948 = vmatpush1.msra.mxu0 0.0
  %949 = vmatprep.subr.mxu0 0.0
  %950 = vmatpush1.msra.mxu0 0.0
  %951 = vmatprep.mubr.f32.mxu0 0.0
  %952 = vmatmul.mubr.f32.gmra.mrb[0].mxu0 %v372
  %v953 = vpop.f32.mrb[0].mxu0
  %v954 = vadd.f32 0.0, %v953
  %v955 = vpop.f32.mrb[0].mxu0
  %956 = vmatprep.mubr.f32.mxu0 0.0
  %957 = vmatmul.mubr.f32.gmra.mrb[0].mxu0 %v375
  %v958 = vpop.f32.mrb[0].mxu0
  %v959 = vadd.f32 0.0, %v958
  %v960 = vpop.f32.mrb[0].mxu0
  %961 = vmatprep.mubr.f32.mxu0 0.0
  %962 = vmatmul.mubr.f32.gmra.mrb[0].mxu0 %v378
  %v963 = vpop.f32.mrb[0].mxu0
  %v964 = vadd.f32 0.0, %v963
  %v965 = vpop.f32.mrb[0].mxu0
  %966 = vmatprep.mubr.f32.mxu0 0.0
  %967 = vmatmul.mubr.f32.gmra.mrb[0].mxu0 %v381
  %v968 = vpop.f32.mrb[0].mxu0
  %v969 = vadd.f32 0.0, %v968
  %v970 = vpop.f32.mrb[0].mxu0
  %971 = vmatprep.mubr.f32.mxu0 0.0
  %972 = vmatmul.mubr.f32.gmra.mrb[0].mxu0 %v384
  %v973 = vpop.f32.mrb[0].mxu0
  %v974 = vadd.f32 0.0, %v973
  %v975 = vpop.f32.mrb[0].mxu0
  %976 = vmatprep.mubr.f32.mxu0 0.0
  %977 = vmatmul.mubr.f32.gmra.mrb[0].mxu0 %v387
  %v978 = vpop.f32.mrb[0].mxu0
  %v979 = vadd.f32 0.0, %v978
  %v980 = vpop.f32.mrb[0].mxu0
  %981 = vmatprep.mubr.f32.mxu0 0.0
  %982 = vmatmul.mubr.f32.gmra.mrb[0].mxu0 %v390
  %v983 = vpop.f32.mrb[0].mxu0
  %v984 = vadd.f32 0.0, %v983
  %v985 = vpop.f32.mrb[0].mxu0
  %986 = vmatprep.mubr.f32.mxu0 0.0
  %987 = vmatmul.mubr.f32.gmra.mrb[0].mxu0 %v393
  %v988 = vpop.f32.mrb[0].mxu0
  %v989 = vadd.f32 0.0, %v988
  %v990 = vpop.f32.mrb[0].mxu0
  %991 = vmatprep.mubr.f32.mxu0 0.0
  %992 = vmatmul.mubr.f32.gmra.mrb[0].mxu0 %v396
  %v993 = vpop.f32.mrb[0].mxu0
  %v994 = vadd.f32 0.0, %v993
  %v995 = vpop.f32.mrb[0].mxu0
  %996 = vmatprep.mubr.f32.mxu0 0.0
  %997 = vmatmul.mubr.f32.gmra.mrb[0].mxu0 %v399
  %v998 = vpop.f32.mrb[0].mxu0
  %v999 = vadd.f32 0.0, %v998
  %v1000 = vpop.f32.mrb[0].mxu0
  %1001 = vmatprep.mubr.f32.mxu0 0.0
  %1002 = vmatmul.mubr.f32.gmra.mrb[0].mxu0 %v402
  %v1003 = vpop.f32.mrb[0].mxu0
  %v1004 = vadd.f32 0.0, %v1003
  %v1005 = vpop.f32.mrb[0].mxu0
  %1006 = vmatprep.mubr.f32.mxu0 0.0
  %1007 = vmatmul.mubr.f32.gmra.mrb[0].mxu0 %v405
  %v1008 = vpop.f32.mrb[0].mxu0
  %v1009 = vadd.f32 0.0, %v1008
  %v1010 = vpop.f32.mrb[0].mxu0
  %1011 = vdwg.mxu0
  %v1012 = vld [vmem:[%s2 + $0x2d8] sm:$0x1]
  %v1013 = vld [vmem:[%s2 + $0x2d3] sm:$0x1]
  %v1014 = vlaneseq
  %v1015 = vshrl.u32 %v1014, 7
  %v1016 = vsub.s32 0, %v1015
  %v1017 = vrot.slane %v1013, %v1016
  %v1018 = vmul.f32 %v954, %v1017
  %v1019 = vmul.f32 %v959, %v1017
  %v1020 = vmul.f32 %v964, %v1017
  %v1021 = vmul.f32 %v969, %v1017
  %v1022 = vlaneseq
  %v1023 = vshrl.u32 %v1022, 7
  %v1024 = vsub.s32 0, %v1023
  %v1025 = vrot.slane %v1012, %v1024
  %v1026 = vadd.f32 %v1025, %v1018
  %v1027 = vadd.f32 %v1025, %v1019
  %v1028 = vadd.f32 %v1025, %v1020
  %v1029 = vadd.f32 %v1025, %v1021
  %v1030 = vld [vmem:[%s2 + $0x2d4] sm:$0x1]
  %v1031 = vlaneseq
  %v1032 = vshrl.u32 %v1031, 7
  %v1033 = vsub.s32 0, %v1032
  %v1034 = vrot.slane %v1030, %v1033
  %v1035 = vmul.f32 %v974, %v1034
  %v1036 = vmul.f32 %v979, %v1034
  %v1037 = vmul.f32 %v984, %v1034
  %v1038 = vmul.f32 %v989, %v1034
  %v1039 = vadd.f32 %v1026, %v1035
  %v1040 = vadd.f32 %v1027, %v1036
  %v1041 = vadd.f32 %v1028, %v1037
  %v1042 = vadd.f32 %v1029, %v1038
  %v1043 = vld [vmem:[%s2 + $0x2d5] sm:$0x1]
  %v1044 = vlaneseq
  %v1045 = vshrl.u32 %v1044, 7
  %v1046 = vsub.s32 0, %v1045
  %v1047 = vrot.slane %v1043, %v1046
  %v1048 = vmul.f32 %v994, %v1047
  %v1049 = vmul.f32 %v999, %v1047
  %v1050 = vmul.f32 %v1004, %v1047
  %v1051 = vmul.f32 %v1009, %v1047
  %v1052 = vadd.f32 %v1039, %v1048
  %v1053 = vadd.f32 %v1040, %v1049
  %v1054 = vadd.f32 %v1041, %v1050
  %v1055 = vadd.f32 %v1042, %v1051
  %v1056 = vmul.f32 %v1052, %v812
  %v1057 = vmul.f32 %v1053, %v813
  %v1058 = vmul.f32 %v1054, %v814
  %v1059 = vmul.f32 %v1055, %v815
  %v1061 = vsel %vm223, %v71, 0
  %v1064 = vsel %vm223, %v72, 0
  %v1067 = vsel %vm223, %v73, 0
  %v1070 = vsel %vm223, %v74, 0
  %v1073 = vsel %vm223, %v75, 0
  %v1076 = vsel %vm223, %v76, 0
  %v1079 = vsel %vm223, %v77, 0
  %v1082 = vsel %vm223, %v78, 0
  %v1085 = vsel %vm223, %v79, 0
  %v1088 = vsel %vm223, %v80, 0
  %v1091 = vsel %vm223, %v81, 0
  %v1094 = vsel %vm223, %v82, 0
  %v1097 = vsel %vm223, %v83, 0
  %v1100 = vsel %vm223, %v84, 0
  %v1103 = vsel %vm223, %v85, 0
  %v1106 = vsel %vm223, %v86, 0
  %v1109 = vsel %vm223, %v87, 0
  %v1112 = vsel %vm223, %v88, 0
  %v1115 = vsel %vm223, %v89, 0
  %v1118 = vsel %vm223, %v90, 0
  %v1121 = vsel %vm223, %v91, 0
  %v1124 = vsel %vm223, %v92, 0
  %v1127 = vsel %vm223, %v93, 0
  %v1130 = vsel %vm223, %v94, 0
  %v1133 = vsel %vm223, %v95, 0
  %v1136 = vsel %vm223, %v96, 0
  %v1139 = vsel %vm223, %v97, 0
  %v1142 = vsel %vm223, %v98, 0
  %v1145 = vsel %vm223, %v99, 0
  %v1148 = vsel %vm223, %v100, 0
  %v1151 = vsel %vm223, %v101, 0
  %v1154 = vsel %vm223, %v102, 0
  %v1157 = vsel %vm223, %v103, 0
  %v1160 = vsel %vm223, %v104, 0
  %v1163 = vsel %vm223, %v105, 0
  %v1166 = vsel %vm223, %v106, 0
  %v1169 = vsel %vm223, %v107, 0
  %v1172 = vsel %vm223, %v108, 0
  %v1175 = vsel %vm223, %v109, 0
  %v1178 = vsel %vm223, %v110, 0
  %v1181 = vsel %vm223, %v111, 0
  %v1184 = vsel %vm223, %v112, 0
  %v1187 = vsel %vm223, %v113, 0
  %v1190 = vsel %vm223, %v114, 0
  %v1193 = vsel %vm223, %v115, 0
  %v1196 = vsel %vm223, %v116, 0
  %v1199 = vsel %vm223, %v117, 0
  %v1202 = vsel %vm223, %v118, 0
  %v1205 = vsel %vm223, %v119, 0
  %v1208 = vsel %vm223, %v120, 0
  %v1211 = vsel %vm223, %v121, 0
  %v1214 = vsel %vm223, %v122, 0
  %1216 = vmatprep.subr.mxu0 0.0
  %1217 = vmatpush1.msra.mxu0 %v1056
  %1218 = vmatprep.subr.mxu0 0.0
  %1219 = vmatpush1.msra.mxu0 %v1057
  %1220 = vmatprep.subr.mxu0 0.0
  %1221 = vmatpush1.msra.mxu0 %v1058
  %1222 = vmatprep.subr.mxu0 0.0
  %1223 = vmatpush1.msra.mxu0 %v1059
  %1224 = vmatprep.subr.mxu0 0.0
  %1225 = vmatpush1.msra.mxu0 0.0
  %1226 = vmatprep.subr.mxu0 0.0
  %1227 = vmatpush1.msra.mxu0 0.0
  %1228 = vmatprep.subr.mxu0 0.0
  %1229 = vmatpush1.msra.mxu0 0.0
  %1230 = vmatprep.subr.mxu0 0.0
  %1231 = vmatpush1.msra.mxu0 0.0
  %1232 = vmatprep.subr.mxu0 0.0
  %1233 = vmatpush1.msra.mxu0 0.0
  %1234 = vmatprep.subr.mxu0 0.0
  %1235 = vmatpush1.msra.mxu0 0.0
  %1236 = vmatprep.subr.mxu0 0.0
  %1237 = vmatpush1.msra.mxu0 0.0
  %1238 = vmatprep.subr.mxu0 0.0
  %1239 = vmatpush1.msra.mxu0 0.0
  %1240 = vmatprep.subr.mxu0 0.0
  %1241 = vmatpush1.msra.mxu0 0.0
  %1242 = vmatprep.subr.mxu0 0.0
  %1243 = vmatpush1.msra.mxu0 0.0
  %1244 = vmatprep.subr.mxu0 0.0
  %1245 = vmatpush1.msra.mxu0 0.0
  %1246 = vmatprep.subr.mxu0 0.0
  %1247 = vmatpush1.msra.mxu0 0.0
  %1248 = vmatprep.subr.mxu0 0.0
  %1249 = vmatpush1.msra.mxu0 0.0
  %1250 = vmatprep.subr.mxu0 0.0
  %1251 = vmatpush1.msra.mxu0 0.0
  %1252 = vmatprep.subr.mxu0 0.0
  %1253 = vmatpush1.msra.mxu0 0.0
  %1254 = vmatprep.subr.mxu0 0.0
  %1255 = vmatpush1.msra.mxu0 0.0
  %1256 = vmatprep.subr.mxu0 0.0
  %1257 = vmatpush1.msra.mxu0 0.0
  %1258 = vmatprep.subr.mxu0 0.0
  %1259 = vmatpush1.msra.mxu0 0.0
  %1260 = vmatprep.subr.mxu0 0.0
  %1261 = vmatpush1.msra.mxu0 0.0
  %1262 = vmatprep.subr.mxu0 0.0
  %1263 = vmatpush1.msra.mxu0 0.0
  %1264 = vmatprep.subr.mxu0 0.0
  %1265 = vmatpush1.msra.mxu0 0.0
  %1266 = vmatprep.subr.mxu0 0.0
  %1267 = vmatpush1.msra.mxu0 0.0
  %1268 = vmatprep.subr.mxu0 0.0
  %1269 = vmatpush1.msra.mxu0 0.0
  %1270 = vmatprep.subr.mxu0 0.0
  %1271 = vmatpush1.msra.mxu0 0.0
  %1272 = vmatprep.subr.mxu0 0.0
  %1273 = vmatpush1.msra.mxu0 0.0
  %1274 = vmatprep.subr.mxu0 0.0
  %1275 = vmatpush1.msra.mxu0 0.0
  %1276 = vmatprep.subr.mxu0 0.0
  %1277 = vmatpush1.msra.mxu0 0.0
  %1278 = vmatprep.subr.mxu0 0.0
  %1279 = vmatpush1.msra.mxu0 0.0
  %1280 = vmatprep.mubr.f32.mxu0 0.0
  %1281 = vmatmul.mubr.f32.gmra.mrb[0].mxu0 %v372
  %v1282 = vpop.f32.mrb[0].mxu0
  %v1283 = vadd.f32 0.0, %v1282
  %v1284 = vpop.f32.mrb[0].mxu0
  %1285 = vmatprep.mubr.f32.mxu0 0.0
  %1286 = vmatmul.mubr.f32.gmra.mrb[0].mxu0 %v375
  %v1287 = vpop.f32.mrb[0].mxu0
  %v1288 = vadd.f32 0.0, %v1287
  %v1289 = vpop.f32.mrb[0].mxu0
  %1290 = vmatprep.mubr.f32.mxu0 0.0
  %1291 = vmatmul.mubr.f32.gmra.mrb[0].mxu0 %v378
  %v1292 = vpop.f32.mrb[0].mxu0
  %v1293 = vadd.f32 0.0, %v1292
  %v1294 = vpop.f32.mrb[0].mxu0
  %1295 = vmatprep.mubr.f32.mxu0 0.0
  %1296 = vmatmul.mubr.f32.gmra.mrb[0].mxu0 %v381
  %v1297 = vpop.f32.mrb[0].mxu0
  %v1298 = vadd.f32 0.0, %v1297
  %v1299 = vpop.f32.mrb[0].mxu0
  %1300 = vmatprep.mubr.f32.mxu0 0.0
  %1301 = vmatmul.mubr.f32.gmra.mrb[0].mxu0 %v384
  %v1302 = vpop.f32.mrb[0].mxu0
  %v1303 = vadd.f32 0.0, %v1302
  %v1304 = vpop.f32.mrb[0].mxu0
  %1305 = vmatprep.mubr.f32.mxu0 0.0
  %1306 = vmatmul.mubr.f32.gmra.mrb[0].mxu0 %v387
  %v1307 = vpop.f32.mrb[0].mxu0
  %v1308 = vadd.f32 0.0, %v1307
  %v1309 = vpop.f32.mrb[0].mxu0
  %1310 = vmatprep.mubr.f32.mxu0 0.0
  %1311 = vmatmul.mubr.f32.gmra.mrb[0].mxu0 %v390
  %v1312 = vpop.f32.mrb[0].mxu0
  %v1313 = vadd.f32 0.0, %v1312
  %v1314 = vpop.f32.mrb[0].mxu0
  %1315 = vmatprep.mubr.f32.mxu0 0.0
  %1316 = vmatmul.mubr.f32.gmra.mrb[0].mxu0 %v393
  %v1317 = vpop.f32.mrb[0].mxu0
  %v1318 = vadd.f32 0.0, %v1317
  %v1319 = vpop.f32.mrb[0].mxu0
  %1320 = vmatprep.mubr.f32.mxu0 0.0
  %1321 = vmatmul.mubr.f32.gmra.mrb[0].mxu0 %v396
  %v1322 = vpop.f32.mrb[0].mxu0
  %v1323 = vadd.f32 0.0, %v1322
  %v1324 = vpop.f32.mrb[0].mxu0
  %1325 = vmatprep.mubr.f32.mxu0 0.0
  %1326 = vmatmul.mubr.f32.gmra.mrb[0].mxu0 %v399
  %v1327 = vpop.f32.mrb[0].mxu0
  %v1328 = vadd.f32 0.0, %v1327
  %v1329 = vpop.f32.mrb[0].mxu0
  %1330 = vmatprep.mubr.f32.mxu0 0.0
  %1331 = vmatmul.mubr.f32.gmra.mrb[0].mxu0 %v402
  %v1332 = vpop.f32.mrb[0].mxu0
  %v1333 = vadd.f32 0.0, %v1332
  %v1334 = vpop.f32.mrb[0].mxu0
  %1335 = vmatprep.mubr.f32.mxu0 0.0
  %1336 = vmatmul.mubr.f32.gmra.mrb[0].mxu0 %v405
  %v1337 = vpop.f32.mrb[0].mxu0
  %v1338 = vadd.f32 0.0, %v1337
  %v1339 = vpop.f32.mrb[0].mxu0
  %1340 = vmatprep.mubr.f32.mxu0 0.0
  %1341 = vmatmul.mubr.f32.gmra.mrb[0].mxu0 %v1061
  %v1342 = vpop.f32.mrb[0].mxu0
  %v1343 = vadd.f32 0.0, %v1342
  %v1344 = vpop.f32.mrb[0].mxu0
  %1345 = vmatprep.mubr.f32.mxu0 0.0
  %1346 = vmatmul.mubr.f32.gmra.mrb[0].mxu0 %v1064
  %v1347 = vpop.f32.mrb[0].mxu0
  %v1348 = vadd.f32 0.0, %v1347
  %v1349 = vpop.f32.mrb[0].mxu0
  %1350 = vmatprep.mubr.f32.mxu0 0.0
  %1351 = vmatmul.mubr.f32.gmra.mrb[0].mxu0 %v1067
  %v1352 = vpop.f32.mrb[0].mxu0
  %v1353 = vadd.f32 0.0, %v1352
  %v1354 = vpop.f32.mrb[0].mxu0
  %1355 = vmatprep.mubr.f32.mxu0 0.0
  %1356 = vmatmul.mubr.f32.gmra.mrb[0].mxu0 %v1070
  %v1357 = vpop.f32.mrb[0].mxu0
  %v1358 = vadd.f32 0.0, %v1357
  %v1359 = vpop.f32.mrb[0].mxu0
  %1360 = vmatprep.mubr.f32.mxu0 0.0
  %1361 = vmatmul.mubr.f32.gmra.mrb[0].mxu0 %v1073
  %v1362 = vpop.f32.mrb[0].mxu0
  %v1363 = vadd.f32 0.0, %v1362
  %v1364 = vpop.f32.mrb[0].mxu0
  %1365 = vmatprep.mubr.f32.mxu0 0.0
  %1366 = vmatmul.mubr.f32.gmra.mrb[0].mxu0 %v1076
  %v1367 = vpop.f32.mrb[0].mxu0
  %v1368 = vadd.f32 0.0, %v1367
  %v1369 = vpop.f32.mrb[0].mxu0
  %1370 = vmatprep.mubr.f32.mxu0 0.0
  %1371 = vmatmul.mubr.f32.gmra.mrb[0].mxu0 %v1079
  %v1372 = vpop.f32.mrb[0].mxu0
  %v1373 = vadd.f32 0.0, %v1372
  %v1374 = vpop.f32.mrb[0].mxu0
  %1375 = vmatprep.mubr.f32.mxu0 0.0
  %1376 = vmatmul.mubr.f32.gmra.mrb[0].mxu0 %v1082
  %v1377 = vpop.f32.mrb[0].mxu0
  %v1378 = vadd.f32 0.0, %v1377
  %v1379 = vpop.f32.mrb[0].mxu0
  %1380 = vmatprep.mubr.f32.mxu0 0.0
  %1381 = vmatmul.mubr.f32.gmra.mrb[0].mxu0 %v1085
  %v1382 = vpop.f32.mrb[0].mxu0
  %v1383 = vadd.f32 0.0, %v1382
  %v1384 = vpop.f32.mrb[0].mxu0
  %1385 = vmatprep.mubr.f32.mxu0 0.0
  %1386 = vmatmul.mubr.f32.gmra.mrb[0].mxu0 %v1088
  %v1387 = vpop.f32.mrb[0].mxu0
  %v1388 = vadd.f32 0.0, %v1387
  %v1389 = vpop.f32.mrb[0].mxu0
  %1390 = vmatprep.mubr.f32.mxu0 0.0
  %1391 = vmatmul.mubr.f32.gmra.mrb[0].mxu0 %v1091
  %v1392 = vpop.f32.mrb[0].mxu0
  %v1393 = vadd.f32 0.0, %v1392
  %v1394 = vpop.f32.mrb[0].mxu0
  %1395 = vmatprep.mubr.f32.mxu0 0.0
  %1396 = vmatmul.mubr.f32.gmra.mrb[0].mxu0 %v1094
  %v1397 = vpop.f32.mrb[0].mxu0
  %v1398 = vadd.f32 0.0, %v1397
  %v1399 = vpop.f32.mrb[0].mxu0
  %1400 = vmatprep.mubr.f32.mxu0 0.0
  %1401 = vmatmul.mubr.f32.gmra.mrb[0].mxu0 %v1097
  %v1402 = vpop.f32.mrb[0].mxu0
  %v1403 = vadd.f32 0.0, %v1402
  %v1404 = vpop.f32.mrb[0].mxu0
  %1405 = vmatprep.mubr.f32.mxu0 0.0
  %1406 = vmatmul.mubr.f32.gmra.mrb[0].mxu0 %v1100
  %v1407 = vpop.f32.mrb[0].mxu0
  %v1408 = vadd.f32 0.0, %v1407
  %v1409 = vpop.f32.mrb[0].mxu0
  %1410 = vmatprep.mubr.f32.mxu0 0.0
  %1411 = vmatmul.mubr.f32.gmra.mrb[0].mxu0 %v1103
  %v1412 = vpop.f32.mrb[0].mxu0
  %v1413 = vadd.f32 0.0, %v1412
  %v1414 = vpop.f32.mrb[0].mxu0
  %1415 = vmatprep.mubr.f32.mxu0 0.0
  %1416 = vmatmul.mubr.f32.gmra.mrb[0].mxu0 %v1106
  %v1417 = vpop.f32.mrb[0].mxu0
  %v1418 = vadd.f32 0.0, %v1417
  %v1419 = vpop.f32.mrb[0].mxu0
  %1420 = vmatprep.mubr.f32.mxu0 0.0
  %1421 = vmatmul.mubr.f32.gmra.mrb[0].mxu0 %v1109
  %v1422 = vpop.f32.mrb[0].mxu0
  %v1423 = vadd.f32 0.0, %v1422
  %v1424 = vpop.f32.mrb[0].mxu0
  %1425 = vmatprep.mubr.f32.mxu0 0.0
  %1426 = vmatmul.mubr.f32.gmra.mrb[0].mxu0 %v1112
  %v1427 = vpop.f32.mrb[0].mxu0
  %v1428 = vadd.f32 0.0, %v1427
  %v1429 = vpop.f32.mrb[0].mxu0
  %1430 = vmatprep.mubr.f32.mxu0 0.0
  %1431 = vmatmul.mubr.f32.gmra.mrb[0].mxu0 %v1115
  %v1432 = vpop.f32.mrb[0].mxu0
  %v1433 = vadd.f32 0.0, %v1432
  %v1434 = vpop.f32.mrb[0].mxu0
  %1435 = vmatprep.mubr.f32.mxu0 0.0
  %1436 = vmatmul.mubr.f32.gmra.mrb[0].mxu0 %v1118
  %v1437 = vpop.f32.mrb[0].mxu0
  %v1438 = vadd.f32 0.0, %v1437
  %v1439 = vpop.f32.mrb[0].mxu0
  %1440 = vmatprep.mubr.f32.mxu0 0.0
  %1441 = vmatmul.mubr.f32.gmra.mrb[0].mxu0 %v1121
  %v1442 = vpop.f32.mrb[0].mxu0
  %v1443 = vadd.f32 0.0, %v1442
  %v1444 = vpop.f32.mrb[0].mxu0
  %1445 = vmatprep.mubr.f32.mxu0 0.0
  %1446 = vmatmul.mubr.f32.gmra.mrb[0].mxu0 %v1124
  %v1447 = vpop.f32.mrb[0].mxu0
  %v1448 = vadd.f32 0.0, %v1447
  %v1449 = vpop.f32.mrb[0].mxu0
  %1450 = vmatprep.mubr.f32.mxu0 0.0
  %1451 = vmatmul.mubr.f32.gmra.mrb[0].mxu0 %v1127
  %v1452 = vpop.f32.mrb[0].mxu0
  %v1453 = vadd.f32 0.0, %v1452
  %v1454 = vpop.f32.mrb[0].mxu0
  %1455 = vmatprep.mubr.f32.mxu0 0.0
  %1456 = vmatmul.mubr.f32.gmra.mrb[0].mxu0 %v1130
  %v1457 = vpop.f32.mrb[0].mxu0
  %v1458 = vadd.f32 0.0, %v1457
  %v1459 = vpop.f32.mrb[0].mxu0
  %1460 = vmatprep.mubr.f32.mxu0 0.0
  %1461 = vmatmul.mubr.f32.gmra.mrb[0].mxu0 %v1133
  %v1462 = vpop.f32.mrb[0].mxu0
  %v1463 = vadd.f32 0.0, %v1462
  %v1464 = vpop.f32.mrb[0].mxu0
  %1465 = vmatprep.mubr.f32.mxu0 0.0
  %1466 = vmatmul.mubr.f32.gmra.mrb[0].mxu0 %v1136
  %v1467 = vpop.f32.mrb[0].mxu0
  %v1468 = vadd.f32 0.0, %v1467
  %v1469 = vpop.f32.mrb[0].mxu0
  %1470 = vmatprep.mubr.f32.mxu0 0.0
  %1471 = vmatmul.mubr.f32.gmra.mrb[0].mxu0 %v1139
  %v1472 = vpop.f32.mrb[0].mxu0
  %v1473 = vadd.f32 0.0, %v1472
  %v1474 = vpop.f32.mrb[0].mxu0
  %1475 = vmatprep.mubr.f32.mxu0 0.0
  %1476 = vmatmul.mubr.f32.gmra.mrb[0].mxu0 %v1142
  %v1477 = vpop.f32.mrb[0].mxu0
  %v1478 = vadd.f32 0.0, %v1477
  %v1479 = vpop.f32.mrb[0].mxu0
  %1480 = vmatprep.mubr.f32.mxu0 0.0
  %1481 = vmatmul.mubr.f32.gmra.mrb[0].mxu0 %v1145
  %v1482 = vpop.f32.mrb[0].mxu0
  %v1483 = vadd.f32 0.0, %v1482
  %v1484 = vpop.f32.mrb[0].mxu0
  %1485 = vmatprep.mubr.f32.mxu0 0.0
  %1486 = vmatmul.mubr.f32.gmra.mrb[0].mxu0 %v1148
  %v1487 = vpop.f32.mrb[0].mxu0
  %v1488 = vadd.f32 0.0, %v1487
  %v1489 = vpop.f32.mrb[0].mxu0
  %1490 = vmatprep.mubr.f32.mxu0 0.0
  %1491 = vmatmul.mubr.f32.gmra.mrb[0].mxu0 %v1151
  %v1492 = vpop.f32.mrb[0].mxu0
  %v1493 = vadd.f32 0.0, %v1492
  %v1494 = vpop.f32.mrb[0].mxu0
  %1495 = vmatprep.mubr.f32.mxu0 0.0
  %1496 = vmatmul.mubr.f32.gmra.mrb[0].mxu0 %v1154
  %v1497 = vpop.f32.mrb[0].mxu0
  %v1498 = vadd.f32 0.0, %v1497
  %v1499 = vpop.f32.mrb[0].mxu0
  %1500 = vmatprep.mubr.f32.mxu0 0.0
  %1501 = vmatmul.mubr.f32.gmra.mrb[0].mxu0 %v1157
  %v1502 = vpop.f32.mrb[0].mxu0
  %v1503 = vadd.f32 0.0, %v1502
  %v1504 = vpop.f32.mrb[0].mxu0
  %1505 = vmatprep.mubr.f32.mxu0 0.0
  %1506 = vmatmul.mubr.f32.gmra.mrb[0].mxu0 %v1160
  %v1507 = vpop.f32.mrb[0].mxu0
  %v1508 = vadd.f32 0.0, %v1507
  %v1509 = vpop.f32.mrb[0].mxu0
  %1510 = vmatprep.mubr.f32.mxu0 0.0
  %1511 = vmatmul.mubr.f32.gmra.mrb[0].mxu0 %v1163
  %v1512 = vpop.f32.mrb[0].mxu0
  %v1513 = vadd.f32 0.0, %v1512
  %v1514 = vpop.f32.mrb[0].mxu0
  %1515 = vmatprep.mubr.f32.mxu0 0.0
  %1516 = vmatmul.mubr.f32.gmra.mrb[0].mxu0 %v1166
  %v1517 = vpop.f32.mrb[0].mxu0
  %v1518 = vadd.f32 0.0, %v1517
  %v1519 = vpop.f32.mrb[0].mxu0
  %1520 = vmatprep.mubr.f32.mxu0 0.0
  %1521 = vmatmul.mubr.f32.gmra.mrb[0].mxu0 %v1169
  %v1522 = vpop.f32.mrb[0].mxu0
  %v1523 = vadd.f32 0.0, %v1522
  %v1524 = vpop.f32.mrb[0].mxu0
  %1525 = vmatprep.mubr.f32.mxu0 0.0
  %1526 = vmatmul.mubr.f32.gmra.mrb[0].mxu0 %v1172
  %v1527 = vpop.f32.mrb[0].mxu0
  %v1528 = vadd.f32 0.0, %v1527
  %v1529 = vpop.f32.mrb[0].mxu0
  %1530 = vmatprep.mubr.f32.mxu0 0.0
  %1531 = vmatmul.mubr.f32.gmra.mrb[0].mxu0 %v1175
  %v1532 = vpop.f32.mrb[0].mxu0
  %v1533 = vadd.f32 0.0, %v1532
  %v1534 = vpop.f32.mrb[0].mxu0
  %1535 = vmatprep.mubr.f32.mxu0 0.0
  %1536 = vmatmul.mubr.f32.gmra.mrb[0].mxu0 %v1178
  %v1537 = vpop.f32.mrb[0].mxu0
  %v1538 = vadd.f32 0.0, %v1537
  %v1539 = vpop.f32.mrb[0].mxu0
  %1540 = vmatprep.mubr.f32.mxu0 0.0
  %1541 = vmatmul.mubr.f32.gmra.mrb[0].mxu0 %v1181
  %v1542 = vpop.f32.mrb[0].mxu0
  %v1543 = vadd.f32 0.0, %v1542
  %v1544 = vpop.f32.mrb[0].mxu0
  %1545 = vmatprep.mubr.f32.mxu0 0.0
  %1546 = vmatmul.mubr.f32.gmra.mrb[0].mxu0 %v1184
  %v1547 = vpop.f32.mrb[0].mxu0
  %v1548 = vadd.f32 0.0, %v1547
  %v1549 = vpop.f32.mrb[0].mxu0
  %1550 = vmatprep.mubr.f32.mxu0 0.0
  %1551 = vmatmul.mubr.f32.gmra.mrb[0].mxu0 %v1187
  %v1552 = vpop.f32.mrb[0].mxu0
  %v1553 = vadd.f32 0.0, %v1552
  %v1554 = vpop.f32.mrb[0].mxu0
  %1555 = vmatprep.mubr.f32.mxu0 0.0
  %1556 = vmatmul.mubr.f32.gmra.mrb[0].mxu0 %v1190
  %v1557 = vpop.f32.mrb[0].mxu0
  %v1558 = vadd.f32 0.0, %v1557
  %v1559 = vpop.f32.mrb[0].mxu0
  %1560 = vmatprep.mubr.f32.mxu0 0.0
  %1561 = vmatmul.mubr.f32.gmra.mrb[0].mxu0 %v1193
  %v1562 = vpop.f32.mrb[0].mxu0
  %v1563 = vadd.f32 0.0, %v1562
  %v1564 = vpop.f32.mrb[0].mxu0
  %1565 = vmatprep.mubr.f32.mxu0 0.0
  %1566 = vmatmul.mubr.f32.gmra.mrb[0].mxu0 %v1196
  %v1567 = vpop.f32.mrb[0].mxu0
  %v1568 = vadd.f32 0.0, %v1567
  %v1569 = vpop.f32.mrb[0].mxu0
  %1570 = vmatprep.mubr.f32.mxu0 0.0
  %1571 = vmatmul.mubr.f32.gmra.mrb[0].mxu0 %v1199
  %v1572 = vpop.f32.mrb[0].mxu0
  %v1573 = vadd.f32 0.0, %v1572
  %v1574 = vpop.f32.mrb[0].mxu0
  %1575 = vmatprep.mubr.f32.mxu0 0.0
  %1576 = vmatmul.mubr.f32.gmra.mrb[0].mxu0 %v1202
  %v1577 = vpop.f32.mrb[0].mxu0
  %v1578 = vadd.f32 0.0, %v1577
  %v1579 = vpop.f32.mrb[0].mxu0
  %1580 = vmatprep.mubr.f32.mxu0 0.0
  %1581 = vmatmul.mubr.f32.gmra.mrb[0].mxu0 %v1205
  %v1582 = vpop.f32.mrb[0].mxu0
  %v1583 = vadd.f32 0.0, %v1582
  %v1584 = vpop.f32.mrb[0].mxu0
  %1585 = vmatprep.mubr.f32.mxu0 0.0
  %1586 = vmatmul.mubr.f32.gmra.mrb[0].mxu0 %v1208
  %v1587 = vpop.f32.mrb[0].mxu0
  %v1588 = vadd.f32 0.0, %v1587
  %v1589 = vpop.f32.mrb[0].mxu0
  %1590 = vmatprep.mubr.f32.mxu0 0.0
  %1591 = vmatmul.mubr.f32.gmra.mrb[0].mxu0 %v1211
  %v1592 = vpop.f32.mrb[0].mxu0
  %v1593 = vadd.f32 0.0, %v1592
  %v1594 = vpop.f32.mrb[0].mxu0
  %1595 = vmatprep.mubr.f32.mxu0 0.0
  %1596 = vmatmul.mubr.f32.gmra.mrb[0].mxu0 %v1214
  %v1597 = vpop.f32.mrb[0].mxu0
  %v1598 = vadd.f32 0.0, %v1597
  %v1599 = vpop.f32.mrb[0].mxu0
  %1600 = vdwg.mxu0
  %v1601 = vld [vmem:[%s2 + $0x210] sm:$0xff]
  %v1602 = vld [vmem:[%s2 + $0x218] sm:$0xff]
  %v1605 = vcombine.high %v1601, %v1601
  %v1607 = vunpack.c.l.s4 1966171168
  %v1608 = vunpack.c.0.s8 %v1607
  %v1609 = vlaneseq
  %v1610 = vshrl.u32 %v1609, 7
  %v1611 = vsub.s32 %v1608, %v1610
  %v1612 = vrot.slane %v1601, %v1611
  %v1614 = vunpack.c.l.s4 1966171168
  %v1615 = vunpack.c.0.s8 %v1614
  %v1616 = vlaneseq
  %v1617 = vshrl.u32 %v1616, 7
  %v1618 = vsub.s32 %v1615, %v1617
  %v1619 = vrot.slane %v1605, %v1618
  %v1620 = vcombine.high %v1612, %v1612
  %v1621 = vcombine.high %v1619, %v1619
  %v1623 = vunpack.c.l.s4 1966171168
  %v1624 = vunpack.c.0.s8 %v1623
  %v1625 = vlaneseq
  %v1626 = vshrl.u32 %v1625, 7
  %v1627 = vsub.s32 %v1624, %v1626
  %v1628 = vrot.slane %v1612, %v1627
  %v1630 = vunpack.c.l.s4 1966171168
  %v1631 = vunpack.c.0.s8 %v1630
  %v1632 = vlaneseq
  %v1633 = vshrl.u32 %v1632, 7
  %v1634 = vsub.s32 %v1631, %v1633
  %v1635 = vrot.slane %v1619, %v1634
  %v1637 = vunpack.c.l.s4 1966171168
  %v1638 = vunpack.c.0.s8 %v1637
  %v1639 = vlaneseq
  %v1640 = vshrl.u32 %v1639, 7
  %v1641 = vsub.s32 %v1638, %v1640
  %v1642 = vrot.slane %v1620, %v1641
  %v1644 = vunpack.c.l.s4 1966171168
  %v1645 = vunpack.c.0.s8 %v1644
  %v1646 = vlaneseq
  %v1647 = vshrl.u32 %v1646, 7
  %v1648 = vsub.s32 %v1645, %v1647
  %v1649 = vrot.slane %v1621, %v1648
  %v1650 = vcombine.high %v1628, %v1628
  %v1651 = vcombine.high %v1635, %v1635
  %v1652 = vcombine.high %v1642, %v1642
  %v1653 = vcombine.high %v1649, %v1649
  %v1654 = vcombine.high %v1602, %v1602
  %v1656 = vunpack.c.l.s4 1966171168
  %v1657 = vunpack.c.0.s8 %v1656
  %v1658 = vlaneseq
  %v1659 = vshrl.u32 %v1658, 7
  %v1660 = vsub.s32 %v1657, %v1659
  %v1661 = vrot.slane %v1602, %v1660
  %v1663 = vunpack.c.l.s4 1966171168
  %v1664 = vunpack.c.0.s8 %v1663
  %v1665 = vlaneseq
  %v1666 = vshrl.u32 %v1665, 7
  %v1667 = vsub.s32 %v1664, %v1666
  %v1668 = vrot.slane %v1654, %v1667
  %v1669 = vcombine.high %v1661, %v1661
  %v1670 = vcombine.high %v1668, %v1668
  %v1672 = vunpack.c.l.s4 1966171168
  %v1673 = vunpack.c.0.s8 %v1672
  %v1674 = vlaneseq
  %v1675 = vshrl.u32 %v1674, 7
  %v1676 = vsub.s32 %v1673, %v1675
  %v1677 = vrot.slane %v1661, %v1676
  %v1679 = vunpack.c.l.s4 1966171168
  %v1680 = vunpack.c.0.s8 %v1679
  %v1681 = vlaneseq
  %v1682 = vshrl.u32 %v1681, 7
  %v1683 = vsub.s32 %v1680, %v1682
  %v1684 = vrot.slane %v1668, %v1683
  %v1686 = vunpack.c.l.s4 1966171168
  %v1687 = vunpack.c.0.s8 %v1686
  %v1688 = vlaneseq
  %v1689 = vshrl.u32 %v1688, 7
  %v1690 = vsub.s32 %v1687, %v1689
  %v1691 = vrot.slane %v1669, %v1690
  %v1693 = vunpack.c.l.s4 1966171168
  %v1694 = vunpack.c.0.s8 %v1693
  %v1695 = vlaneseq
  %v1696 = vshrl.u32 %v1695, 7
  %v1697 = vsub.s32 %v1694, %v1696
  %v1698 = vrot.slane %v1670, %v1697
  %v1699 = vcombine.high %v1677, %v1677
  %v1700 = vcombine.high %v1684, %v1684
  %v1701 = vcombine.high %v1691, %v1691
  %v1702 = vcombine.high %v1698, %v1698
  %v1703 = vlaneseq
  %v1704 = vshrl.u32 %v1703, 7
  %v1705 = vsub.s32 0, %v1704
  %v1706 = vrot.slane %v1628, %v1705
  %v1707 = vlaneseq
  %v1708 = vshrl.u32 %v1707, 7
  %v1709 = vsub.s32 0, %v1708
  %v1710 = vrot.slane %v1642, %v1709
  %v1711 = vlaneseq
  %v1712 = vshrl.u32 %v1711, 7
  %v1713 = vsub.s32 0, %v1712
  %v1714 = vrot.slane %v1650, %v1713
  %v1715 = vlaneseq
  %v1716 = vshrl.u32 %v1715, 7
  %v1717 = vsub.s32 0, %v1716
  %v1718 = vrot.slane %v1652, %v1717
  %v1719 = vlaneseq
  %v1720 = vshrl.u32 %v1719, 7
  %v1721 = vsub.s32 0, %v1720
  %v1722 = vrot.slane %v1635, %v1721
  %v1723 = vlaneseq
  %v1724 = vshrl.u32 %v1723, 7
  %v1725 = vsub.s32 0, %v1724
  %v1726 = vrot.slane %v1649, %v1725
  %v1727 = vlaneseq
  %v1728 = vshrl.u32 %v1727, 7
  %v1729 = vsub.s32 0, %v1728
  %v1730 = vrot.slane %v1651, %v1729
  %v1731 = vlaneseq
  %v1732 = vshrl.u32 %v1731, 7
  %v1733 = vsub.s32 0, %v1732
  %v1734 = vrot.slane %v1653, %v1733
  %v1735 = vlaneseq
  %v1736 = vshrl.u32 %v1735, 7
  %v1737 = vsub.s32 0, %v1736
  %v1738 = vrot.slane %v1677, %v1737
  %v1739 = vlaneseq
  %v1740 = vshrl.u32 %v1739, 7
  %v1741 = vsub.s32 0, %v1740
  %v1742 = vrot.slane %v1691, %v1741
  %v1743 = vlaneseq
  %v1744 = vshrl.u32 %v1743, 7
  %v1745 = vsub.s32 0, %v1744
  %v1746 = vrot.slane %v1699, %v1745
  %v1747 = vlaneseq
  %v1748 = vshrl.u32 %v1747, 7
  %v1749 = vsub.s32 0, %v1748
  %v1750 = vrot.slane %v1701, %v1749
  %v1751 = vlaneseq
  %v1752 = vshrl.u32 %v1751, 7
  %v1753 = vsub.s32 0, %v1752
  %v1754 = vrot.slane %v1684, %v1753
  %v1755 = vlaneseq
  %v1756 = vshrl.u32 %v1755, 7
  %v1757 = vsub.s32 0, %v1756
  %v1758 = vrot.slane %v1698, %v1757
  %v1759 = vlaneseq
  %v1760 = vshrl.u32 %v1759, 7
  %v1761 = vsub.s32 0, %v1760
  %v1762 = vrot.slane %v1700, %v1761
  %v1763 = vlaneseq
  %v1764 = vshrl.u32 %v1763, 7
  %v1765 = vsub.s32 0, %v1764
  %v1766 = vrot.slane %v1702, %v1765
  %v1783 = vmul.f32 %v1283, %v1706
  %v1784 = vmul.f32 %v1288, %v1706
  %v1785 = vmul.f32 %v1293, %v1706
  %v1786 = vmul.f32 %v1298, %v1706
  %v1787 = vmul.f32 %v1303, %v1710
  %v1788 = vmul.f32 %v1308, %v1710
  %v1789 = vmul.f32 %v1313, %v1710
  %v1790 = vmul.f32 %v1318, %v1710
  %v1791 = vmul.f32 %v1323, %v1714
  %v1792 = vmul.f32 %v1328, %v1714
  %v1793 = vmul.f32 %v1333, %v1714
  %v1794 = vmul.f32 %v1338, %v1714
  %v1795 = vmul.f32 %v1343, %v1718
  %v1796 = vmul.f32 %v1348, %v1718
  %v1797 = vmul.f32 %v1353, %v1718
  %v1798 = vmul.f32 %v1358, %v1718
  %v1799 = vmul.f32 %v1363, %v1722
  %v1800 = vmul.f32 %v1368, %v1722
  %v1801 = vmul.f32 %v1373, %v1722
  %v1802 = vmul.f32 %v1378, %v1722
  %v1803 = vmul.f32 %v1383, %v1726
  %v1804 = vmul.f32 %v1388, %v1726
  %v1805 = vmul.f32 %v1393, %v1726
  %v1806 = vmul.f32 %v1398, %v1726
  %v1807 = vmul.f32 %v1403, %v1730
  %v1808 = vmul.f32 %v1408, %v1730
  %v1809 = vmul.f32 %v1413, %v1730
  %v1810 = vmul.f32 %v1418, %v1730
  %v1811 = vmul.f32 %v1423, %v1734
  %v1812 = vmul.f32 %v1428, %v1734
  %v1813 = vmul.f32 %v1433, %v1734
  %v1814 = vmul.f32 %v1438, %v1734
  %v1815 = vmul.f32 %v1443, %v1738
  %v1816 = vmul.f32 %v1448, %v1738
  %v1817 = vmul.f32 %v1453, %v1738
  %v1818 = vmul.f32 %v1458, %v1738
  %v1819 = vmul.f32 %v1463, %v1742
  %v1820 = vmul.f32 %v1468, %v1742
  %v1821 = vmul.f32 %v1473, %v1742
  %v1822 = vmul.f32 %v1478, %v1742
  %v1823 = vmul.f32 %v1483, %v1746
  %v1824 = vmul.f32 %v1488, %v1746
  %v1825 = vmul.f32 %v1493, %v1746
  %v1826 = vmul.f32 %v1498, %v1746
  %v1827 = vmul.f32 %v1503, %v1750
  %v1828 = vmul.f32 %v1508, %v1750
  %v1829 = vmul.f32 %v1513, %v1750
  %v1830 = vmul.f32 %v1518, %v1750
  %v1831 = vmul.f32 %v1523, %v1754
  %v1832 = vmul.f32 %v1528, %v1754
  %v1833 = vmul.f32 %v1533, %v1754
  %v1834 = vmul.f32 %v1538, %v1754
  %v1835 = vmul.f32 %v1543, %v1758
  %v1836 = vmul.f32 %v1548, %v1758
  %v1837 = vmul.f32 %v1553, %v1758
  %v1838 = vmul.f32 %v1558, %v1758
  %v1839 = vmul.f32 %v1563, %v1762
  %v1840 = vmul.f32 %v1568, %v1762
  %v1841 = vmul.f32 %v1573, %v1762
  %v1842 = vmul.f32 %v1578, %v1762
  %v1843 = vmul.f32 %v1583, %v1766
  %v1844 = vmul.f32 %v1588, %v1766
  %v1845 = vmul.f32 %v1593, %v1766
  %v1846 = vmul.f32 %v1598, %v1766
  %v1847 = vsel %vm223, %v1783, 0.0
  %v1848 = vsel %vm223, %v1787, 0.0
  %v1849 = vadd.f32 %v1847, %v1848
  %v1850 = vsel %vm223, %v1791, 0.0
  %v1851 = vadd.f32 %v1849, %v1850
  %v1852 = vsel %vm223, %v1795, 0.0
  %v1853 = vadd.f32 %v1851, %v1852
  %v1854 = vsel %vm223, %v1799, 0.0
  %v1855 = vadd.f32 %v1853, %v1854
  %v1856 = vsel %vm223, %v1803, 0.0
  %v1857 = vadd.f32 %v1855, %v1856
  %v1858 = vsel %vm223, %v1807, 0.0
  %v1859 = vadd.f32 %v1857, %v1858
  %v1860 = vsel %vm223, %v1811, 0.0
  %v1861 = vadd.f32 %v1859, %v1860
  %v1862 = vsel %vm223, %v1815, 0.0
  %v1863 = vadd.f32 %v1861, %v1862
  %v1864 = vsel %vm223, %v1819, 0.0
  %v1865 = vadd.f32 %v1863, %v1864
  %v1866 = vsel %vm223, %v1823, 0.0
  %v1867 = vadd.f32 %v1865, %v1866
  %v1868 = vsel %vm223, %v1827, 0.0
  %v1869 = vadd.f32 %v1867, %v1868
  %v1870 = vsel %vm223, %v1831, 0.0
  %v1871 = vadd.f32 %v1869, %v1870
  %v1872 = vsel %vm223, %v1835, 0.0
  %v1873 = vadd.f32 %v1871, %v1872
  %v1874 = vsel %vm223, %v1839, 0.0
  %v1875 = vadd.f32 %v1873, %v1874
  %v1876 = vsel %vm223, %v1843, 0.0
  %v1877 = vadd.f32 %v1875, %v1876
  %v1878 = vsel %vm223, %v1784, 0.0
  %v1879 = vsel %vm223, %v1788, 0.0
  %v1880 = vadd.f32 %v1878, %v1879
  %v1881 = vsel %vm223, %v1792, 0.0
  %v1882 = vadd.f32 %v1880, %v1881
  %v1883 = vsel %vm223, %v1796, 0.0
  %v1884 = vadd.f32 %v1882, %v1883
  %v1885 = vsel %vm223, %v1800, 0.0
  %v1886 = vadd.f32 %v1884, %v1885
  %v1887 = vsel %vm223, %v1804, 0.0
  %v1888 = vadd.f32 %v1886, %v1887
  %v1889 = vsel %vm223, %v1808, 0.0
  %v1890 = vadd.f32 %v1888, %v1889
  %v1891 = vsel %vm223, %v1812, 0.0
  %v1892 = vadd.f32 %v1890, %v1891
  %v1893 = vsel %vm223, %v1816, 0.0
  %v1894 = vadd.f32 %v1892, %v1893
  %v1895 = vsel %vm223, %v1820, 0.0
  %v1896 = vadd.f32 %v1894, %v1895
  %v1897 = vsel %vm223, %v1824, 0.0
  %v1898 = vadd.f32 %v1896, %v1897
  %v1899 = vsel %vm223, %v1828, 0.0
  %v1900 = vadd.f32 %v1898, %v1899
  %v1901 = vsel %vm223, %v1832, 0.0
  %v1902 = vadd.f32 %v1900, %v1901
  %v1903 = vsel %vm223, %v1836, 0.0
  %v1904 = vadd.f32 %v1902, %v1903
  %v1905 = vsel %vm223, %v1840, 0.0
  %v1906 = vadd.f32 %v1904, %v1905
  %v1907 = vsel %vm223, %v1844, 0.0
  %v1908 = vadd.f32 %v1906, %v1907
  %v1909 = vsel %vm223, %v1785, 0.0
  %v1910 = vsel %vm223, %v1789, 0.0
  %v1911 = vadd.f32 %v1909, %v1910
  %v1912 = vsel %vm223, %v1793, 0.0
  %v1913 = vadd.f32 %v1911, %v1912
  %v1914 = vsel %vm223, %v1797, 0.0
  %v1915 = vadd.f32 %v1913, %v1914
  %v1916 = vsel %vm223, %v1801, 0.0
  %v1917 = vadd.f32 %v1915, %v1916
  %v1918 = vsel %vm223, %v1805, 0.0
  %v1919 = vadd.f32 %v1917, %v1918
  %v1920 = vsel %vm223, %v1809, 0.0
  %v1921 = vadd.f32 %v1919, %v1920
  %v1922 = vsel %vm223, %v1813, 0.0
  %v1923 = vadd.f32 %v1921, %v1922
  %v1924 = vsel %vm223, %v1817, 0.0
  %v1925 = vadd.f32 %v1923, %v1924
  %v1926 = vsel %vm223, %v1821, 0.0
  %v1927 = vadd.f32 %v1925, %v1926
  %v1928 = vsel %vm223, %v1825, 0.0
  %v1929 = vadd.f32 %v1927, %v1928
  %v1930 = vsel %vm223, %v1829, 0.0
  %v1931 = vadd.f32 %v1929, %v1930
  %v1932 = vsel %vm223, %v1833, 0.0
  %v1933 = vadd.f32 %v1931, %v1932
  %v1934 = vsel %vm223, %v1837, 0.0
  %v1935 = vadd.f32 %v1933, %v1934
  %v1936 = vsel %vm223, %v1841, 0.0
  %v1937 = vadd.f32 %v1935, %v1936
  %v1938 = vsel %vm223, %v1845, 0.0
  %v1939 = vadd.f32 %v1937, %v1938
  %v1940 = vsel %vm223, %v1786, 0.0
  %v1941 = vsel %vm223, %v1790, 0.0
  %v1942 = vadd.f32 %v1940, %v1941
  %v1943 = vsel %vm223, %v1794, 0.0
  %v1944 = vadd.f32 %v1942, %v1943
  %v1945 = vsel %vm223, %v1798, 0.0
  %v1946 = vadd.f32 %v1944, %v1945
  %v1947 = vsel %vm223, %v1802, 0.0
  %v1948 = vadd.f32 %v1946, %v1947
  %v1949 = vsel %vm223, %v1806, 0.0
  %v1950 = vadd.f32 %v1948, %v1949
  %v1951 = vsel %vm223, %v1810, 0.0
  %v1952 = vadd.f32 %v1950, %v1951
  %v1953 = vsel %vm223, %v1814, 0.0
  %v1954 = vadd.f32 %v1952, %v1953
  %v1955 = vsel %vm223, %v1818, 0.0
  %v1956 = vadd.f32 %v1954, %v1955
  %v1957 = vsel %vm223, %v1822, 0.0
  %v1958 = vadd.f32 %v1956, %v1957
  %v1959 = vsel %vm223, %v1826, 0.0
  %v1960 = vadd.f32 %v1958, %v1959
  %v1961 = vsel %vm223, %v1830, 0.0
  %v1962 = vadd.f32 %v1960, %v1961
  %v1963 = vsel %vm223, %v1834, 0.0
  %v1964 = vadd.f32 %v1962, %v1963
  %v1965 = vsel %vm223, %v1838, 0.0
  %v1966 = vadd.f32 %v1964, %v1965
  %v1967 = vsel %vm223, %v1842, 0.0
  %v1968 = vadd.f32 %v1966, %v1967
  %v1969 = vsel %vm223, %v1846, 0.0
  %v1970 = vadd.f32 %v1968, %v1969
  %v1971 = vld [vmem:[%s2 + $0x2d9] sm:$0x1]
  %v1972 = vlaneseq
  %v1973 = vshrl.u32 %v1972, 7
  %v1974 = vsub.s32 0, %v1973
  %v1975 = vrot.slane %v1971, %v1974
  %v1976 = vmul.f32 %v1056, %v1975
  %v1977 = vmul.f32 %v1057, %v1975
  %v1978 = vmul.f32 %v1058, %v1975
  %v1979 = vmul.f32 %v1059, %v1975
  %v1980 = vadd.f32 %v1877, %v1976
  %v1981 = vadd.f32 %v1908, %v1977
  %v1982 = vadd.f32 %v1939, %v1978
  %v1983 = vadd.f32 %v1970, %v1979
  %v1984 = vmul.f32 %v1980, %v572
  %v1985 = vmul.f32 %v1981, %v573
  %v1986 = vmul.f32 %v1982, %v574
  %v1987 = vmul.f32 %v1983, %v575
  %v1988 = vld [vmem:[%s2 + $0x238] sm:$0xff]
  %v1989 = vld [vmem:[%s2 + $0x240] sm:$0xff]
  %v1990 = vld [vmem:[%s2 + $0x248] sm:$0xff]
  %v1991 = vld [vmem:[%s2 + $0x250] sm:$0xff]
  %v1992 = vld [vmem:[%s2 + $0x2da] sm:$0x1]
  %v1993 = vlaneseq
  %v1994 = vshrl.u32 %v1993, 7
  %v1995 = vsub.s32 0, %v1994
  %v1996 = vrot.slane %v1992, %v1995
  %v1998 = vsel %vm223, %v1984, 0
  %v2001 = vsel %vm223, %v1985, 0
  %v2004 = vsel %vm223, %v1986, 0
  %v2007 = vsel %vm223, %v1987, 0
  %2009 = vmatprep.subr.mxu0 0.0
  %2010 = vmatpush1.msra.mxu0 %v1988
  %2011 = vmatprep.subr.mxu0 0.0
  %2012 = vmatpush1.msra.mxu0 %v1989
  %2013 = vmatprep.subr.mxu0 0.0
  %2014 = vmatpush1.msra.mxu0 %v1990
  %2015 = vmatprep.subr.mxu0 0.0
  %2016 = vmatpush1.msra.mxu0 %v1991
  %2017 = vmatprep.subr.mxu0 0.0
  %2018 = vmatpush1.msra.mxu0 0.0
  %2019 = vmatprep.subr.mxu0 0.0
  %2020 = vmatpush1.msra.mxu0 0.0
  %2021 = vmatprep.subr.mxu0 0.0
  %2022 = vmatpush1.msra.mxu0 0.0
  %2023 = vmatprep.subr.mxu0 0.0
  %2024 = vmatpush1.msra.mxu0 0.0
  %2025 = vmatprep.subr.mxu0 0.0
  %2026 = vmatpush1.msra.mxu0 0.0
  %2027 = vmatprep.subr.mxu0 0.0
  %2028 = vmatpush1.msra.mxu0 0.0
  %2029 = vmatprep.subr.mxu0 0.0
  %2030 = vmatpush1.msra.mxu0 0.0
  %2031 = vmatprep.subr.mxu0 0.0
  %2032 = vmatpush1.msra.mxu0 0.0
  %2033 = vmatprep.subr.mxu0 0.0
  %2034 = vmatpush1.msra.mxu0 0.0
  %2035 = vmatprep.subr.mxu0 0.0
  %2036 = vmatpush1.msra.mxu0 0.0
  %2037 = vmatprep.subr.mxu0 0.0
  %2038 = vmatpush1.msra.mxu0 0.0
  %2039 = vmatprep.subr.mxu0 0.0
  %2040 = vmatpush1.msra.mxu0 0.0
  %2041 = vmatprep.subr.mxu0 0.0
  %2042 = vmatpush1.msra.mxu0 0.0
  %2043 = vmatprep.subr.mxu0 0.0
  %2044 = vmatpush1.msra.mxu0 0.0
  %2045 = vmatprep.subr.mxu0 0.0
  %2046 = vmatpush1.msra.mxu0 0.0
  %2047 = vmatprep.subr.mxu0 0.0
  %2048 = vmatpush1.msra.mxu0 0.0
  %2049 = vmatprep.subr.mxu0 0.0
  %2050 = vmatpush1.msra.mxu0 0.0
  %2051 = vmatprep.subr.mxu0 0.0
  %2052 = vmatpush1.msra.mxu0 0.0
  %2053 = vmatprep.subr.mxu0 0.0
  %2054 = vmatpush1.msra.mxu0 0.0
  %2055 = vmatprep.subr.mxu0 0.0
  %2056 = vmatpush1.msra.mxu0 0.0
  %2057 = vmatprep.subr.mxu0 0.0
  %2058 = vmatpush1.msra.mxu0 0.0
  %2059 = vmatprep.subr.mxu0 0.0
  %2060 = vmatpush1.msra.mxu0 0.0
  %2061 = vmatprep.subr.mxu0 0.0
  %2062 = vmatpush1.msra.mxu0 0.0
  %2063 = vmatprep.subr.mxu0 0.0
  %2064 = vmatpush1.msra.mxu0 0.0
  %2065 = vmatprep.subr.mxu0 0.0
  %2066 = vmatpush1.msra.mxu0 0.0
  %2067 = vmatprep.subr.mxu0 0.0
  %2068 = vmatpush1.msra.mxu0 0.0
  %2069 = vmatprep.subr.mxu0 0.0
  %2070 = vmatpush1.msra.mxu0 0.0
  %2071 = vmatprep.subr.mxu0 0.0
  %2072 = vmatpush1.msra.mxu0 0.0
  %2073 = vmatprep.mubr.f32.mxu0 0.0
  %2074 = vmatmul.mubr.f32.gmra.mrb[0].mxu0 %v1998
  %v2075 = vpop.f32.mrb[0].mxu0
  %v2076 = vadd.f32 %v1996, %v2075
  %v2077 = vpop.f32.mrb[0].mxu0
  %2078 = vmatprep.mubr.f32.mxu0 0.0
  %2079 = vmatmul.mubr.f32.gmra.mrb[0].mxu0 %v2001
  %v2080 = vpop.f32.mrb[0].mxu0
  %v2081 = vadd.f32 %v1996, %v2080
  %v2082 = vpop.f32.mrb[0].mxu0
  %2083 = vmatprep.mubr.f32.mxu0 0.0
  %2084 = vmatmul.mubr.f32.gmra.mrb[0].mxu0 %v2004
  %v2085 = vpop.f32.mrb[0].mxu0
  %v2086 = vadd.f32 %v1996, %v2085
  %v2087 = vpop.f32.mrb[0].mxu0
  %2088 = vmatprep.mubr.f32.mxu0 0.0
  %2089 = vmatmul.mubr.f32.gmra.mrb[0].mxu0 %v2007
  %v2090 = vpop.f32.mrb[0].mxu0
  %v2091 = vadd.f32 %v1996, %v2090
  %v2092 = vpop.f32.mrb[0].mxu0
  %2093 = vdwg.mxu0
  %v2094 = vadd.f32 %v2076, %v203
  %v2095 = vadd.f32 %v2081, %v208
  %v2096 = vadd.f32 %v2086, %v213
  %v2097 = vadd.f32 %v2091, %v218
  %v2098 = vld [vmem:[%s2 + $0x2db] sm:$0x1]
  %v2099 = vld [vmem:[%s2 + $0x2dc] sm:$0x1]
  %v2100 = vsel %vm223, %v2094, 0.0
  %2101 = vadd.xlane.f32.xlu0 %v2100
  %v2102 = vpop.xlane.xlu0 %2101
  %v2103 = vsel %vm223, %v2095, 0.0
  %2104 = vadd.xlane.f32.xlu0 %v2103
  %v2105 = vpop.xlane.xlu0 %2104
  %v2106 = vsel %vm223, %v2096, 0.0
  %2107 = vadd.xlane.f32.xlu0 %v2106
  %v2108 = vpop.xlane.xlu0 %2107
  %v2109 = vsel %vm223, %v2097, 0.0
  %2110 = vadd.xlane.f32.xlu0 %v2109
  %v2111 = vpop.xlane.xlu0 %2110
  %v2112 = vmul.f32 %v2102, %v236
  %v2113 = vmul.f32 %v2105, %v236
  %v2114 = vmul.f32 %v2108, %v236
  %v2115 = vmul.f32 %v2111, %v236
  %v2116 = vsub.f32 %v2094, %v2112
  %v2117 = vsub.f32 %v2095, %v2113
  %v2118 = vsub.f32 %v2096, %v2114
  %v2119 = vsub.f32 %v2097, %v2115
  %v2120 = vmul.f32 %v2116, %v2116
  %v2121 = vmul.f32 %v2117, %v2117
  %v2122 = vmul.f32 %v2118, %v2118
  %v2123 = vmul.f32 %v2119, %v2119
  %v2124 = vsel %vm223, %v2120, 0.0
  %2125 = vadd.xlane.f32.xlu0 %v2124
  %v2126 = vpop.xlane.xlu0 %2125
  %v2127 = vsel %vm223, %v2121, 0.0
  %2128 = vadd.xlane.f32.xlu0 %v2127
  %v2129 = vpop.xlane.xlu0 %2128
  %v2130 = vsel %vm223, %v2122, 0.0
  %2131 = vadd.xlane.f32.xlu0 %v2130
  %v2132 = vpop.xlane.xlu0 %2131
  %v2133 = vsel %vm223, %v2123, 0.0
  %2134 = vadd.xlane.f32.xlu0 %v2133
  %v2135 = vpop.xlane.xlu0 %2134
  %v2136 = vmul.f32 %v2126, %v236
  %v2137 = vmul.f32 %v2129, %v236
  %v2138 = vmul.f32 %v2132, %v236
  %v2139 = vmul.f32 %v2135, %v236
  %v2140 = vadd.f32 %v2136, 1e-05
  %v2141 = vadd.f32 %v2137, 1e-05
  %v2142 = vadd.f32 %v2138, 1e-05
  %v2143 = vadd.f32 %v2139, 1e-05
  %v2144 = vrsqrt.pop %v2140
  %v2145 = vrsqrt.pop %v2141
  %v2146 = vrsqrt.pop %v2142
  %v2147 = vrsqrt.pop %v2143
  %v2148 = vmul.f32 %v2116, %v2144
  %v2149 = vmul.f32 %v2117, %v2145
  %v2150 = vmul.f32 %v2118, %v2146
  %v2151 = vmul.f32 %v2119, %v2147
  %v2152 = vlaneseq
  %v2153 = vshrl.u32 %v2152, 7
  %v2154 = vsub.s32 0, %v2153
  %v2155 = vrot.slane %v2098, %v2154
  %v2156 = vmul.f32 %v2148, %v2155
  %v2157 = vmul.f32 %v2149, %v2155
  %v2158 = vmul.f32 %v2150, %v2155
  %v2159 = vmul.f32 %v2151, %v2155
  %v2160 = vlaneseq
  %v2161 = vshrl.u32 %v2160, 7
  %v2162 = vsub.s32 0, %v2161
  %v2163 = vrot.slane %v2099, %v2162
  %v2164 = vadd.f32 %v2156, %v2163
  %v2165 = vadd.f32 %v2157, %v2163
  %v2166 = vadd.f32 %v2158, %v2163
  %v2167 = vadd.f32 %v2159, %v2163
  %v2168 = vpack.c.bf16 %v2165, %v2164
  %v2169 = vpack.c.bf16 %v2167, %v2166
  %v2170 = vld [vmem:[%s5] sm:$0xf]
  %v2171 = vld [vmem:[%s5 + $0x4] sm:$0xf]
  %v2172 = vld [vmem:[%s5 + $0x8] sm:$0xf]
  %v2173 = vld [vmem:[%s5 + $0xc] sm:$0xf]
  %v2174 = vld [vmem:[%s3] sm:$0x1]
  %v2175 = vlaneseq
  %v2176 = vshrl.u32 %v2175, 7
  %v2177 = vsub.s32 0, %v2176
  %v2178 = vrot.slane %v2174, %v2177
  %v2183 = vunpack.c.l.b16 %v2170
  %v2184 = vunpack.c.l.b16 %v2171
  %v2185 = vunpack.c.l.b16 %v2172
  %v2186 = vunpack.c.l.b16 %v2173
  %v2187 = vpack.c.b16 %v2184, %v2183
  %v2188 = vpack.c.b16 %v2186, %v2185
  %v2192 = vsel %vm223, %v2168, 0
  %v2195 = vsel %vm223, %v2169, 0
  %2197 = vmatprep.subr.bf16.mxu0 0
  %2198 = vmatpush1.bf16.msra.mxu0 %v2187
  %2199 = vmatprep.subr.bf16.mxu0 0
  %2200 = vmatpush1.bf16.msra.mxu0 %v2188
  %2201 = vmatprep.subr.bf16.mxu0 0
  %2202 = vmatpush1.bf16.msra.mxu0 0
  %2203 = vmatprep.subr.bf16.mxu0 0
  %2204 = vmatpush1.bf16.msra.mxu0 0
  %2205 = vmatprep.subr.bf16.mxu0 0
  %2206 = vmatpush1.bf16.msra.mxu0 0
  %2207 = vmatprep.subr.bf16.mxu0 0
  %2208 = vmatpush1.bf16.msra.mxu0 0
  %2209 = vmatprep.subr.bf16.mxu0 0
  %2210 = vmatpush1.bf16.msra.mxu0 0
  %2211 = vmatprep.subr.bf16.mxu0 0
  %2212 = vmatpush1.bf16.msra.mxu0 0
  %2213 = vmatprep.subr.bf16.mxu0 0
  %2214 = vmatpush1.bf16.msra.mxu0 0
  %2215 = vmatprep.subr.bf16.mxu0 0
  %2216 = vmatpush1.bf16.msra.mxu0 0
  %2217 = vmatprep.subr.bf16.mxu0 0
  %2218 = vmatpush1.bf16.msra.mxu0 0
  %2219 = vmatprep.subr.bf16.mxu0 0
  %2220 = vmatpush1.bf16.msra.mxu0 0
  %2221 = vmatprep.subr.bf16.mxu0 0
  %2222 = vmatpush1.bf16.msra.mxu0 0
  %2223 = vmatprep.subr.bf16.mxu0 0
  %2224 = vmatpush1.bf16.msra.mxu0 0
  %2225 = vmatprep.subr.bf16.mxu0 0
  %2226 = vmatpush1.bf16.msra.mxu0 0
  %2227 = vmatprep.subr.bf16.mxu0 0
  %2228 = vmatpush1.bf16.msra.mxu0 0
  %2229 = vmatprep.mubr.bf16.mxu0 0
  %2230 = vmatmul.mubr.bf16.gmra.mrb[0].mxu0 %v2192
  %v2231 = vpop.f32.mrb[0].mxu0
  %v2232 = vadd.f32 %v2178, %v2231
  %v2233 = vpop.f32.mrb[0].mxu0
  %v2234 = vpop.f32.mrb[0].mxu0
  %v2235 = vadd.f32 %v2178, %v2234
  %v2236 = vpop.f32.mrb[0].mxu0
  %2237 = vmatprep.mubr.bf16.mxu0 0
  %2238 = vmatmul.mubr.bf16.gmra.mrb[0].mxu0 %v2195
  %v2239 = vpop.f32.mrb[0].mxu0
  %v2240 = vadd.f32 %v2178, %v2239
  %v2241 = vpop.f32.mrb[0].mxu0
  %v2242 = vpop.f32.mrb[0].mxu0
  %v2243 = vadd.f32 %v2178, %v2242
  %v2244 = vpop.f32.mrb[0].mxu0
  %2245 = vdwg.mxu0
  %v2246 = vmul.f32 %v2232, %v2232
  %v2247 = vmul.f32 %v2235, %v2235
  %v2248 = vmul.f32 %v2240, %v2240
  %v2249 = vmul.f32 %v2243, %v2243
  %v2250 = vmul.f32 %v2232, %v2246
  %v2251 = vmul.f32 %v2235, %v2247
  %v2252 = vmul.f32 %v2240, %v2248
  %v2253 = vmul.f32 %v2243, %v2249
  %v2254 = vmul.f32 %v2250, 0.044715
  %v2255 = vmul.f32 %v2251, 0.044715
  %v2256 = vmul.f32 %v2252, 0.044715
  %v2257 = vmul.f32 %v2253, 0.044715
  %v2258 = vadd.f32 %v2232, %v2254
  %v2259 = vadd.f32 %v2235, %v2255
  %v2260 = vadd.f32 %v2240, %v2256
  %v2261 = vadd.f32 %v2243, %v2257
  %v2262 = vmul.f32 %v2258, 0.7978846
  %v2263 = vmul.f32 %v2259, 0.7978846
  %v2264 = vmul.f32 %v2260, 0.7978846
  %v2265 = vmul.f32 %v2261, 0.7978846
  %v2266 = vtanh.pop %v2262
  %v2267 = vtanh.pop %v2263
  %v2268 = vtanh.pop %v2264
  %v2269 = vtanh.pop %v2265
  %v2270 = vadd.f32 %v2266, 1.0
  %v2271 = vadd.f32 %v2267, 1.0
  %v2272 = vadd.f32 %v2268, 1.0
  %v2273 = vadd.f32 %v2269, 1.0
  %v2274 = vmul.f32 %v2270, 0.5
  %v2275 = vmul.f32 %v2271, 0.5
  %v2276 = vmul.f32 %v2272, 0.5
  %v2277 = vmul.f32 %v2273, 0.5
  %v2278 = vmul.f32 %v2232, %v2274
  %v2279 = vmul.f32 %v2235, %v2275
  %v2280 = vmul.f32 %v2240, %v2276
  %v2281 = vmul.f32 %v2243, %v2277
  %v2282 = vpack.c.bf16 %v2279, %v2278
  %v2283 = vpack.c.bf16 %v2281, %v2280
  %v2284 = vld [vmem:[%s6] sm:$0xf]
  %v2285 = vld [vmem:[%s6 + $0x4] sm:$0xf]
  %v2286 = vld [vmem:[%s6 + $0x8] sm:$0xf]
  %v2287 = vld [vmem:[%s6 + $0xc] sm:$0xf]
  %v2288 = vld [vmem:[%s6 + $0x10] sm:$0xf]
  %v2289 = vld [vmem:[%s6 + $0x14] sm:$0xf]
  %v2290 = vld [vmem:[%s6 + $0x18] sm:$0xf]
  %v2291 = vld [vmem:[%s6 + $0x1c] sm:$0xf]
  %v2292 = vld [vmem:[%s6 + $0x20] sm:$0xf]
  %v2293 = vld [vmem:[%s6 + $0x24] sm:$0xf]
  %v2294 = vld [vmem:[%s6 + $0x28] sm:$0xf]
  %v2295 = vld [vmem:[%s6 + $0x2c] sm:$0xf]
  %v2296 = vld [vmem:[%s6 + $0x30] sm:$0xf]
  %v2297 = vld [vmem:[%s6 + $0x34] sm:$0xf]
  %v2298 = vld [vmem:[%s6 + $0x38] sm:$0xf]
  %v2299 = vld [vmem:[%s6 + $0x3c] sm:$0xf]
  %v2300 = vld [vmem:[%s2 + $0x2dd] sm:$0x1]
  %v2301 = vlaneseq
  %v2302 = vshrl.u32 %v2301, 7
  %v2303 = vsub.s32 0, %v2302
  %v2304 = vrot.slane %v2300, %v2303
  %v2321 = vunpack.c.l.b16 %v2284
  %v2322 = vunpack.c.l.b16 %v2285
  %v2323 = vunpack.c.l.b16 %v2286
  %v2324 = vunpack.c.l.b16 %v2287
  %v2325 = vunpack.c.l.b16 %v2288
  %v2326 = vunpack.c.l.b16 %v2289
  %v2327 = vunpack.c.l.b16 %v2290
  %v2328 = vunpack.c.l.b16 %v2291
  %v2329 = vunpack.c.l.b16 %v2292
  %v2330 = vunpack.c.l.b16 %v2293
  %v2331 = vunpack.c.l.b16 %v2294
  %v2332 = vunpack.c.l.b16 %v2295
  %v2333 = vunpack.c.l.b16 %v2296
  %v2334 = vunpack.c.l.b16 %v2297
  %v2335 = vunpack.c.l.b16 %v2298
  %v2336 = vunpack.c.l.b16 %v2299
  %v2337 = vpack.c.b16 %v2322, %v2321
  %v2338 = vpack.c.b16 %v2324, %v2323
  %v2339 = vpack.c.b16 %v2326, %v2325
  %v2340 = vpack.c.b16 %v2328, %v2327
  %v2341 = vpack.c.b16 %v2330, %v2329
  %v2342 = vpack.c.b16 %v2332, %v2331
  %v2343 = vpack.c.b16 %v2334, %v2333
  %v2344 = vpack.c.b16 %v2336, %v2335
  %2353 = vmatprep.subr.bf16.mxu0 0
  %2354 = vmatpush1.bf16.msra.mxu0 %v2337
  %2355 = vmatprep.subr.bf16.mxu0 0
  %2356 = vmatpush1.bf16.msra.mxu0 %v2338
  %2357 = vmatprep.subr.bf16.mxu0 0
  %2358 = vmatpush1.bf16.msra.mxu0 %v2339
  %2359 = vmatprep.subr.bf16.mxu0 0
  %2360 = vmatpush1.bf16.msra.mxu0 %v2340
  %2361 = vmatprep.subr.bf16.mxu0 0
  %2362 = vmatpush1.bf16.msra.mxu0 %v2341
  %2363 = vmatprep.subr.bf16.mxu0 0
  %2364 = vmatpush1.bf16.msra.mxu0 %v2342
  %2365 = vmatprep.subr.bf16.mxu0 0
  %2366 = vmatpush1.bf16.msra.mxu0 %v2343
  %2367 = vmatprep.subr.bf16.mxu0 0
  %2368 = vmatpush1.bf16.msra.mxu0 %v2344
  %2369 = vmatprep.subr.bf16.mxu0 0
  %2370 = vmatpush1.bf16.msra.mxu0 0
  %2371 = vmatprep.subr.bf16.mxu0 0
  %2372 = vmatpush1.bf16.msra.mxu0 0
  %2373 = vmatprep.subr.bf16.mxu0 0
  %2374 = vmatpush1.bf16.msra.mxu0 0
  %2375 = vmatprep.subr.bf16.mxu0 0
  %2376 = vmatpush1.bf16.msra.mxu0 0
  %2377 = vmatprep.subr.bf16.mxu0 0
  %2378 = vmatpush1.bf16.msra.mxu0 0
  %2379 = vmatprep.subr.bf16.mxu0 0
  %2380 = vmatpush1.bf16.msra.mxu0 0
  %2381 = vmatprep.subr.bf16.mxu0 0
  %2382 = vmatpush1.bf16.msra.mxu0 0
  %2383 = vmatprep.subr.bf16.mxu0 0
  %2384 = vmatpush1.bf16.msra.mxu0 0
  %2385 = vmatprep.mubr.bf16.mxu0 0
  %2386 = vmatmul.mubr.bf16.gmra.mrb[0].mxu0 %v2282
  %v2387 = vpop.f32.mrb[0].mxu0
  %v2388 = vadd.f32 %v2304, %v2387
  %v2389 = vpop.f32.mrb[0].mxu0
  %v2390 = vpop.f32.mrb[0].mxu0
  %v2391 = vadd.f32 %v2304, %v2390
  %v2392 = vpop.f32.mrb[0].mxu0
  %2393 = vmatprep.mubr.bf16.mxu0 0
  %2394 = vmatmul.mubr.bf16.gmra.mrb[0].mxu0 %v2283
  %v2395 = vpop.f32.mrb[0].mxu0
  %v2396 = vadd.f32 %v2304, %v2395
  %v2397 = vpop.f32.mrb[0].mxu0
  %v2398 = vpop.f32.mrb[0].mxu0
  %v2399 = vadd.f32 %v2304, %v2398
  %v2400 = vpop.f32.mrb[0].mxu0
  %2401 = vdwg.mxu0
  %v2402 = vadd.f32 %v2388, %v2094
  %v2403 = vadd.f32 %v2391, %v2095
  %v2404 = vadd.f32 %v2396, %v2096
  %v2405 = vadd.f32 %v2399, %v2097
  %v2406 = vld [vmem:[%s2 + $0x2e0] sm:$0x1]
  %v2407 = vld [vmem:[%s2 + $0x2e1] sm:$0x1]
  %v2408 = vsel %vm223, %v2402, 0.0
  %2409 = vadd.xlane.f32.xlu0 %v2408
  %v2410 = vpop.xlane.xlu0 %2409
  %v2411 = vsel %vm223, %v2403, 0.0
  %2412 = vadd.xlane.f32.xlu0 %v2411
  %v2413 = vpop.xlane.xlu0 %2412
  %v2414 = vsel %vm223, %v2404, 0.0
  %2415 = vadd.xlane.f32.xlu0 %v2414
  %v2416 = vpop.xlane.xlu0 %2415
  %v2417 = vsel %vm223, %v2405, 0.0
  %2418 = vadd.xlane.f32.xlu0 %v2417
  %v2419 = vpop.xlane.xlu0 %2418
  %v2420 = vmul.f32 %v2410, %v236
  %v2421 = vmul.f32 %v2413, %v236
  %v2422 = vmul.f32 %v2416, %v236
  %v2423 = vmul.f32 %v2419, %v236
  %v2424 = vsub.f32 %v2402, %v2420
  %v2425 = vsub.f32 %v2403, %v2421
  %v2426 = vsub.f32 %v2404, %v2422
  %v2427 = vsub.f32 %v2405, %v2423
  %v2428 = vmul.f32 %v2424, %v2424
  %v2429 = vmul.f32 %v2425, %v2425
  %v2430 = vmul.f32 %v2426, %v2426
  %v2431 = vmul.f32 %v2427, %v2427
  %v2432 = vsel %vm223, %v2428, 0.0
  %2433 = vadd.xlane.f32.xlu0 %v2432
  %v2434 = vpop.xlane.xlu0 %2433
  %v2435 = vsel %vm223, %v2429, 0.0
  %2436 = vadd.xlane.f32.xlu0 %v2435
  %v2437 = vpop.xlane.xlu0 %2436
  %v2438 = vsel %vm223, %v2430, 0.0
  %2439 = vadd.xlane.f32.xlu0 %v2438
  %v2440 = vpop.xlane.xlu0 %2439
  %v2441 = vsel %vm223, %v2431, 0.0
  %2442 = vadd.xlane.f32.xlu0 %v2441
  %v2443 = vpop.xlane.xlu0 %2442
  %v2444 = vmul.f32 %v2434, %v236
  %v2445 = vmul.f32 %v2437, %v236
  %v2446 = vmul.f32 %v2440, %v236
  %v2447 = vmul.f32 %v2443, %v236
  %v2448 = vadd.f32 %v2444, 1e-05
  %v2449 = vadd.f32 %v2445, 1e-05
  %v2450 = vadd.f32 %v2446, 1e-05
  %v2451 = vadd.f32 %v2447, 1e-05
  %v2452 = vrsqrt.pop %v2448
  %v2453 = vrsqrt.pop %v2449
  %v2454 = vrsqrt.pop %v2450
  %v2455 = vrsqrt.pop %v2451
  %v2456 = vmul.f32 %v2424, %v2452
  %v2457 = vmul.f32 %v2425, %v2453
  %v2458 = vmul.f32 %v2426, %v2454
  %v2459 = vmul.f32 %v2427, %v2455
  %v2460 = vlaneseq
  %v2461 = vshrl.u32 %v2460, 7
  %v2462 = vsub.s32 0, %v2461
  %v2463 = vrot.slane %v2406, %v2462
  %v2464 = vmul.f32 %v2456, %v2463
  %v2465 = vmul.f32 %v2457, %v2463
  %v2466 = vmul.f32 %v2458, %v2463
  %v2467 = vmul.f32 %v2459, %v2463
  %v2468 = vlaneseq
  %v2469 = vshrl.u32 %v2468, 7
  %v2470 = vsub.s32 0, %v2469
  %v2471 = vrot.slane %v2407, %v2470
  %v2472 = vadd.f32 %v2464, %v2471
  %v2473 = vadd.f32 %v2465, %v2471
  %v2474 = vadd.f32 %v2466, %v2471
  %v2475 = vadd.f32 %v2467, %v2471
  %v2476 = vpack.c.bf16 %v2473, %v2472
  %v2477 = vpack.c.bf16 %v2475, %v2474
  %s2478 = scalar_lea.vmem %s4, 48
  %v2479 = vld [vmem:[%s2478] sm:$0xf]
  %v2480 = vld [vmem:[%s2478 + $0x4] sm:$0xf]
  %v2481 = vld [vmem:[%s2478 + $0x8] sm:$0xf]
  %v2482 = vld [vmem:[%s2478 + $0xc] sm:$0xf]
  %v2483 = vld [vmem:[%s2 + $0x2e2] sm:$0x1]
  %v2484 = vlaneseq
  %v2485 = vshrl.u32 %v2484, 7
  %v2486 = vsub.s32 0, %v2485
  %v2487 = vrot.slane %v2483, %v2486
  %v2492 = vunpack.c.l.b16 %v2479
  %v2493 = vunpack.c.l.b16 %v2480
  %v2494 = vunpack.c.l.b16 %v2481
  %v2495 = vunpack.c.l.b16 %v2482
  %v2496 = vpack.c.b16 %v2493, %v2492
  %v2497 = vpack.c.b16 %v2495, %v2494
  %v2501 = vsel %vm223, %v2476, 0
  %v2504 = vsel %vm223, %v2477, 0
  %2506 = vmatprep.subr.bf16.mxu0 0
  %2507 = vmatpush1.bf16.msra.mxu0 %v2496
  %2508 = vmatprep.subr.bf16.mxu0 0
  %2509 = vmatpush1.bf16.msra.mxu0 %v2497
  %2510 = vmatprep.subr.bf16.mxu0 0
  %2511 = vmatpush1.bf16.msra.mxu0 0
  %2512 = vmatprep.subr.bf16.mxu0 0
  %2513 = vmatpush1.bf16.msra.mxu0 0
  %2514 = vmatprep.subr.bf16.mxu0 0
  %2515 = vmatpush1.bf16.msra.mxu0 0
  %2516 = vmatprep.subr.bf16.mxu0 0
  %2517 = vmatpush1.bf16.msra.mxu0 0
  %2518 = vmatprep.subr.bf16.mxu0 0
  %2519 = vmatpush1.bf16.msra.mxu0 0
  %2520 = vmatprep.subr.bf16.mxu0 0
  %2521 = vmatpush1.bf16.msra.mxu0 0
  %2522 = vmatprep.subr.bf16.mxu0 0
  %2523 = vmatpush1.bf16.msra.mxu0 0
  %2524 = vmatprep.subr.bf16.mxu0 0
  %2525 = vmatpush1.bf16.msra.mxu0 0
  %2526 = vmatprep.subr.bf16.mxu0 0
  %2527 = vmatpush1.bf16.msra.mxu0 0
  %2528 = vmatprep.subr.bf16.mxu0 0
  %2529 = vmatpush1.bf16.msra.mxu0 0
  %2530 = vmatprep.subr.bf16.mxu0 0
  %2531 = vmatpush1.bf16.msra.mxu0 0
  %2532 = vmatprep.subr.bf16.mxu0 0
  %2533 = vmatpush1.bf16.msra.mxu0 0
  %2534 = vmatprep.subr.bf16.mxu0 0
  %2535 = vmatpush1.bf16.msra.mxu0 0
  %2536 = vmatprep.subr.bf16.mxu0 0
  %2537 = vmatpush1.bf16.msra.mxu0 0
  %2538 = vmatprep.mubr.bf16.mxu0 0
  %2539 = vmatmul.mubr.bf16.gmra.mrb[0].mxu0 %v2501
  %v2540 = vpop.f32.mrb[0].mxu0
  %v2541 = vadd.f32 %v2487, %v2540
  %v2542 = vpop.f32.mrb[0].mxu0
  %v2543 = vpop.f32.mrb[0].mxu0
  %v2544 = vadd.f32 %v2487, %v2543
  %v2545 = vpop.f32.mrb[0].mxu0
  %2546 = vmatprep.mubr.bf16.mxu0 0
  %2547 = vmatmul.mubr.bf16.gmra.mrb[0].mxu0 %v2504
  %v2548 = vpop.f32.mrb[0].mxu0
  %v2549 = vadd.f32 %v2487, %v2548
  %v2550 = vpop.f32.mrb[0].mxu0
  %v2551 = vpop.f32.mrb[0].mxu0
  %v2552 = vadd.f32 %v2487, %v2551
  %v2553 = vpop.f32.mrb[0].mxu0
  %2554 = vdwg.mxu0
  %2555 = vmatprep.subr.mxu0 0.0
  %2556 = vmatpush1.msra.mxu0 %v2541
  %2557 = vmatprep.subr.mxu0 0.0
  %2558 = vmatpush1.msra.mxu0 %v2544
  %2559 = vmatprep.subr.mxu0 0.0
  %2560 = vmatpush1.msra.mxu0 %v2549
  %2561 = vmatprep.subr.mxu0 0.0
  %2562 = vmatpush1.msra.mxu0 %v2552
  %2563 = vmatprep.subr.mxu0 0.0
  %2564 = vmatpush1.msra.mxu0 0.0
  %2565 = vmatprep.subr.mxu0 0.0
  %2566 = vmatpush1.msra.mxu0 0.0
  %2567 = vmatprep.subr.mxu0 0.0
  %2568 = vmatpush1.msra.mxu0 0.0
  %2569 = vmatprep.subr.mxu0 0.0
  %2570 = vmatpush1.msra.mxu0 0.0
  %2571 = vmatprep.subr.mxu0 0.0
  %2572 = vmatpush1.msra.mxu0 0.0
  %2573 = vmatprep.subr.mxu0 0.0
  %2574 = vmatpush1.msra.mxu0 0.0
  %2575 = vmatprep.subr.mxu0 0.0
  %2576 = vmatpush1.msra.mxu0 0.0
  %2577 = vmatprep.subr.mxu0 0.0
  %2578 = vmatpush1.msra.mxu0 0.0
  %2579 = vmatprep.subr.mxu0 0.0
  %2580 = vmatpush1.msra.mxu0 0.0
  %2581 = vmatprep.subr.mxu0 0.0
  %2582 = vmatpush1.msra.mxu0 0.0
  %2583 = vmatprep.subr.mxu0 0.0
  %2584 = vmatpush1.msra.mxu0 0.0
  %2585 = vmatprep.subr.mxu0 0.0
  %2586 = vmatpush1.msra.mxu0 0.0
  %2587 = vmatprep.subr.mxu0 0.0
  %2588 = vmatpush1.msra.mxu0 0.0
  %2589 = vmatprep.subr.mxu0 0.0
  %2590 = vmatpush1.msra.mxu0 0.0
  %2591 = vmatprep.subr.mxu0 0.0
  %2592 = vmatpush1.msra.mxu0 0.0
  %2593 = vmatprep.subr.mxu0 0.0
  %2594 = vmatpush1.msra.mxu0 0.0
  %2595 = vmatprep.subr.mxu0 0.0
  %2596 = vmatpush1.msra.mxu0 0.0
  %2597 = vmatprep.subr.mxu0 0.0
  %2598 = vmatpush1.msra.mxu0 0.0
  %2599 = vmatprep.subr.mxu0 0.0
  %2600 = vmatpush1.msra.mxu0 0.0
  %2601 = vmatprep.subr.mxu0 0.0
  %2602 = vmatpush1.msra.mxu0 0.0
  %2603 = vmatprep.subr.mxu0 0.0
  %2604 = vmatpush1.msra.mxu0 0.0
  %2605 = vmatprep.subr.mxu0 0.0
  %2606 = vmatpush1.msra.mxu0 0.0
  %2607 = vmatprep.subr.mxu0 0.0
  %2608 = vmatpush1.msra.mxu0 0.0
  %2609 = vmatprep.subr.mxu0 0.0
  %2610 = vmatpush1.msra.mxu0 0.0
  %2611 = vmatprep.subr.mxu0 0.0
  %2612 = vmatpush1.msra.mxu0 0.0
  %2613 = vmatprep.subr.mxu0 0.0
  %2614 = vmatpush1.msra.mxu0 0.0
  %2615 = vmatprep.subr.mxu0 0.0
  %2616 = vmatpush1.msra.mxu0 0.0
  %2617 = vmatprep.subr.mxu0 0.0
  %2618 = vmatpush1.msra.mxu0 0.0
  %2619 = vmatprep.mubr.f32.mxu0 0.0
  %2620 = vmatmul.mubr.f32.gmra.mrb[0].mxu0 %v372
  %v2621 = vpop.f32.mrb[0].mxu0
  %v2622 = vadd.f32 0.0, %v2621
  %v2623 = vpop.f32.mrb[0].mxu0
  %2624 = vmatprep.mubr.f32.mxu0 0.0
  %2625 = vmatmul.mubr.f32.gmra.mrb[0].mxu0 %v375
  %v2626 = vpop.f32.mrb[0].mxu0
  %v2627 = vadd.f32 0.0, %v2626
  %v2628 = vpop.f32.mrb[0].mxu0
  %2629 = vmatprep.mubr.f32.mxu0 0.0
  %2630 = vmatmul.mubr.f32.gmra.mrb[0].mxu0 %v378
  %v2631 = vpop.f32.mrb[0].mxu0
  %v2632 = vadd.f32 0.0, %v2631
  %v2633 = vpop.f32.mrb[0].mxu0
  %2634 = vmatprep.mubr.f32.mxu0 0.0
  %2635 = vmatmul.mubr.f32.gmra.mrb[0].mxu0 %v381
  %v2636 = vpop.f32.mrb[0].mxu0
  %v2637 = vadd.f32 0.0, %v2636
  %v2638 = vpop.f32.mrb[0].mxu0
  %2639 = vmatprep.mubr.f32.mxu0 0.0
  %2640 = vmatmul.mubr.f32.gmra.mrb[0].mxu0 %v384
  %v2641 = vpop.f32.mrb[0].mxu0
  %v2642 = vadd.f32 0.0, %v2641
  %v2643 = vpop.f32.mrb[0].mxu0
  %2644 = vmatprep.mubr.f32.mxu0 0.0
  %2645 = vmatmul.mubr.f32.gmra.mrb[0].mxu0 %v387
  %v2646 = vpop.f32.mrb[0].mxu0
  %v2647 = vadd.f32 0.0, %v2646
  %v2648 = vpop.f32.mrb[0].mxu0
  %2649 = vmatprep.mubr.f32.mxu0 0.0
  %2650 = vmatmul.mubr.f32.gmra.mrb[0].mxu0 %v390
  %v2651 = vpop.f32.mrb[0].mxu0
  %v2652 = vadd.f32 0.0, %v2651
  %v2653 = vpop.f32.mrb[0].mxu0
  %2654 = vmatprep.mubr.f32.mxu0 0.0
  %2655 = vmatmul.mubr.f32.gmra.mrb[0].mxu0 %v393
  %v2656 = vpop.f32.mrb[0].mxu0
  %v2657 = vadd.f32 0.0, %v2656
  %v2658 = vpop.f32.mrb[0].mxu0
  %2659 = vmatprep.mubr.f32.mxu0 0.0
  %2660 = vmatmul.mubr.f32.gmra.mrb[0].mxu0 %v396
  %v2661 = vpop.f32.mrb[0].mxu0
  %v2662 = vadd.f32 0.0, %v2661
  %v2663 = vpop.f32.mrb[0].mxu0
  %2664 = vmatprep.mubr.f32.mxu0 0.0
  %2665 = vmatmul.mubr.f32.gmra.mrb[0].mxu0 %v399
  %v2666 = vpop.f32.mrb[0].mxu0
  %v2667 = vadd.f32 0.0, %v2666
  %v2668 = vpop.f32.mrb[0].mxu0
  %2669 = vmatprep.mubr.f32.mxu0 0.0
  %2670 = vmatmul.mubr.f32.gmra.mrb[0].mxu0 %v402
  %v2671 = vpop.f32.mrb[0].mxu0
  %v2672 = vadd.f32 0.0, %v2671
  %v2673 = vpop.f32.mrb[0].mxu0
  %2674 = vmatprep.mubr.f32.mxu0 0.0
  %2675 = vmatmul.mubr.f32.gmra.mrb[0].mxu0 %v405
  %v2676 = vpop.f32.mrb[0].mxu0
  %v2677 = vadd.f32 0.0, %v2676
  %v2678 = vpop.f32.mrb[0].mxu0
  %2679 = vdwg.mxu0
  %v2680 = vld [vmem:[%s2 + $0x2ee] sm:$0x1]
  %v2681 = vld [vmem:[%s2 + $0x2e5] sm:$0x1]
  %v2682 = vlaneseq
  %v2683 = vshrl.u32 %v2682, 7
  %v2684 = vsub.s32 0, %v2683
  %v2685 = vrot.slane %v2681, %v2684
  %v2686 = vmul.f32 %v2622, %v2685
  %v2687 = vmul.f32 %v2627, %v2685
  %v2688 = vmul.f32 %v2632, %v2685
  %v2689 = vmul.f32 %v2637, %v2685
  %v2690 = vlaneseq
  %v2691 = vshrl.u32 %v2690, 7
  %v2692 = vsub.s32 0, %v2691
  %v2693 = vrot.slane %v2680, %v2692
  %v2694 = vadd.f32 %v2693, %v2686
  %v2695 = vadd.f32 %v2693, %v2687
  %v2696 = vadd.f32 %v2693, %v2688
  %v2697 = vadd.f32 %v2693, %v2689
  %v2698 = vld [vmem:[%s2 + $0x2e6] sm:$0x1]
  %v2699 = vlaneseq
  %v2700 = vshrl.u32 %v2699, 7
  %v2701 = vsub.s32 0, %v2700
  %v2702 = vrot.slane %v2698, %v2701
  %v2703 = vmul.f32 %v2642, %v2702
  %v2704 = vmul.f32 %v2647, %v2702
  %v2705 = vmul.f32 %v2652, %v2702
  %v2706 = vmul.f32 %v2657, %v2702
  %v2707 = vadd.f32 %v2694, %v2703
  %v2708 = vadd.f32 %v2695, %v2704
  %v2709 = vadd.f32 %v2696, %v2705
  %v2710 = vadd.f32 %v2697, %v2706
  %v2711 = vld [vmem:[%s2 + $0x2e7] sm:$0x1]
  %v2712 = vlaneseq
  %v2713 = vshrl.u32 %v2712, 7
  %v2714 = vsub.s32 0, %v2713
  %v2715 = vrot.slane %v2711, %v2714
  %v2716 = vmul.f32 %v2662, %v2715
  %v2717 = vmul.f32 %v2667, %v2715
  %v2718 = vmul.f32 %v2672, %v2715
  %v2719 = vmul.f32 %v2677, %v2715
  %v2720 = vadd.f32 %v2707, %v2716
  %v2721 = vadd.f32 %v2708, %v2717
  %v2722 = vadd.f32 %v2709, %v2718
  %v2723 = vadd.f32 %v2710, %v2719
  %s2724 = scalar_lea.vmem %s4, 64
  %v2725 = vld [vmem:[%s2724] sm:$0xf]
  %v2726 = vld [vmem:[%s2724 + $0x4] sm:$0xf]
  %v2727 = vld [vmem:[%s2724 + $0x8] sm:$0xf]
  %v2728 = vld [vmem:[%s2724 + $0xc] sm:$0xf]
  %v2729 = vld [vmem:[%s2 + $0x2e3] sm:$0x1]
  %v2730 = vlaneseq
  %v2731 = vshrl.u32 %v2730, 7
  %v2732 = vsub.s32 0, %v2731
  %v2733 = vrot.slane %v2729, %v2732
  %v2738 = vunpack.c.l.b16 %v2725
  %v2739 = vunpack.c.l.b16 %v2726
  %v2740 = vunpack.c.l.b16 %v2727
  %v2741 = vunpack.c.l.b16 %v2728
  %v2742 = vpack.c.b16 %v2739, %v2738
  %v2743 = vpack.c.b16 %v2741, %v2740
  %2746 = vmatprep.subr.bf16.mxu0 0
  %2747 = vmatpush1.bf16.msra.mxu0 %v2742
  %2748 = vmatprep.subr.bf16.mxu0 0
  %2749 = vmatpush1.bf16.msra.mxu0 %v2743
  %2750 = vmatprep.subr.bf16.mxu0 0
  %2751 = vmatpush1.bf16.msra.mxu0 0
  %2752 = vmatprep.subr.bf16.mxu0 0
  %2753 = vmatpush1.bf16.msra.mxu0 0
  %2754 = vmatprep.subr.bf16.mxu0 0
  %2755 = vmatpush1.bf16.msra.mxu0 0
  %2756 = vmatprep.subr.bf16.mxu0 0
  %2757 = vmatpush1.bf16.msra.mxu0 0
  %2758 = vmatprep.subr.bf16.mxu0 0
  %2759 = vmatpush1.bf16.msra.mxu0 0
  %2760 = vmatprep.subr.bf16.mxu0 0
  %2761 = vmatpush1.bf16.msra.mxu0 0
  %2762 = vmatprep.subr.bf16.mxu0 0
  %2763 = vmatpush1.bf16.msra.mxu0 0
  %2764 = vmatprep.subr.bf16.mxu0 0
  %2765 = vmatpush1.bf16.msra.mxu0 0
  %2766 = vmatprep.subr.bf16.mxu0 0
  %2767 = vmatpush1.bf16.msra.mxu0 0
  %2768 = vmatprep.subr.bf16.mxu0 0
  %2769 = vmatpush1.bf16.msra.mxu0 0
  %2770 = vmatprep.subr.bf16.mxu0 0
  %2771 = vmatpush1.bf16.msra.mxu0 0
  %2772 = vmatprep.subr.bf16.mxu0 0
  %2773 = vmatpush1.bf16.msra.mxu0 0
  %2774 = vmatprep.subr.bf16.mxu0 0
  %2775 = vmatpush1.bf16.msra.mxu0 0
  %2776 = vmatprep.subr.bf16.mxu0 0
  %2777 = vmatpush1.bf16.msra.mxu0 0
  %2778 = vmatprep.mubr.bf16.mxu0 0
  %2779 = vmatmul.mubr.bf16.gmra.mrb[0].mxu0 %v2501
  %v2780 = vpop.f32.mrb[0].mxu0
  %v2781 = vadd.f32 %v2733, %v2780
  %v2782 = vpop.f32.mrb[0].mxu0
  %v2783 = vpop.f32.mrb[0].mxu0
  %v2784 = vadd.f32 %v2733, %v2783
  %v2785 = vpop.f32.mrb[0].mxu0
  %2786 = vmatprep.mubr.bf16.mxu0 0
  %2787 = vmatmul.mubr.bf16.gmra.mrb[0].mxu0 %v2504
  %v2788 = vpop.f32.mrb[0].mxu0
  %v2789 = vadd.f32 %v2733, %v2788
  %v2790 = vpop.f32.mrb[0].mxu0
  %v2791 = vpop.f32.mrb[0].mxu0
  %v2792 = vadd.f32 %v2733, %v2791
  %v2793 = vpop.f32.mrb[0].mxu0
  %2794 = vdwg.mxu0
  %2795 = vmatprep.subr.mxu0 0.0
  %2796 = vmatpush1.msra.mxu0 %v2781
  %2797 = vmatprep.subr.mxu0 0.0
  %2798 = vmatpush1.msra.mxu0 %v2784
  %2799 = vmatprep.subr.mxu0 0.0
  %2800 = vmatpush1.msra.mxu0 %v2789
  %2801 = vmatprep.subr.mxu0 0.0
  %2802 = vmatpush1.msra.mxu0 %v2792
  %2803 = vmatprep.subr.mxu0 0.0
  %2804 = vmatpush1.msra.mxu0 0.0
  %2805 = vmatprep.subr.mxu0 0.0
  %2806 = vmatpush1.msra.mxu0 0.0
  %2807 = vmatprep.subr.mxu0 0.0
  %2808 = vmatpush1.msra.mxu0 0.0
  %2809 = vmatprep.subr.mxu0 0.0
  %2810 = vmatpush1.msra.mxu0 0.0
  %2811 = vmatprep.subr.mxu0 0.0
  %2812 = vmatpush1.msra.mxu0 0.0
  %2813 = vmatprep.subr.mxu0 0.0
  %2814 = vmatpush1.msra.mxu0 0.0
  %2815 = vmatprep.subr.mxu0 0.0
  %2816 = vmatpush1.msra.mxu0 0.0
  %2817 = vmatprep.subr.mxu0 0.0
  %2818 = vmatpush1.msra.mxu0 0.0
  %2819 = vmatprep.subr.mxu0 0.0
  %2820 = vmatpush1.msra.mxu0 0.0
  %2821 = vmatprep.subr.mxu0 0.0
  %2822 = vmatpush1.msra.mxu0 0.0
  %2823 = vmatprep.subr.mxu0 0.0
  %2824 = vmatpush1.msra.mxu0 0.0
  %2825 = vmatprep.subr.mxu0 0.0
  %2826 = vmatpush1.msra.mxu0 0.0
  %2827 = vmatprep.subr.mxu0 0.0
  %2828 = vmatpush1.msra.mxu0 0.0
  %2829 = vmatprep.subr.mxu0 0.0
  %2830 = vmatpush1.msra.mxu0 0.0
  %2831 = vmatprep.subr.mxu0 0.0
  %2832 = vmatpush1.msra.mxu0 0.0
  %2833 = vmatprep.subr.mxu0 0.0
  %2834 = vmatpush1.msra.mxu0 0.0
  %2835 = vmatprep.subr.mxu0 0.0
  %2836 = vmatpush1.msra.mxu0 0.0
  %2837 = vmatprep.subr.mxu0 0.0
  %2838 = vmatpush1.msra.mxu0 0.0
  %2839 = vmatprep.subr.mxu0 0.0
  %2840 = vmatpush1.msra.mxu0 0.0
  %2841 = vmatprep.subr.mxu0 0.0
  %2842 = vmatpush1.msra.mxu0 0.0
  %2843 = vmatprep.subr.mxu0 0.0
  %2844 = vmatpush1.msra.mxu0 0.0
  %2845 = vmatprep.subr.mxu0 0.0
  %2846 = vmatpush1.msra.mxu0 0.0
  %2847 = vmatprep.subr.mxu0 0.0
  %2848 = vmatpush1.msra.mxu0 0.0
  %2849 = vmatprep.subr.mxu0 0.0
  %2850 = vmatpush1.msra.mxu0 0.0
  %2851 = vmatprep.subr.mxu0 0.0
  %2852 = vmatpush1.msra.mxu0 0.0
  %2853 = vmatprep.subr.mxu0 0.0
  %2854 = vmatpush1.msra.mxu0 0.0
  %2855 = vmatprep.subr.mxu0 0.0
  %2856 = vmatpush1.msra.mxu0 0.0
  %2857 = vmatprep.subr.mxu0 0.0
  %2858 = vmatpush1.msra.mxu0 0.0
  %2859 = vmatprep.mubr.f32.mxu0 0.0
  %2860 = vmatmul.mubr.f32.gmra.mrb[0].mxu0 %v372
  %v2861 = vpop.f32.mrb[0].mxu0
  %v2862 = vadd.f32 0.0, %v2861
  %v2863 = vpop.f32.mrb[0].mxu0
  %2864 = vmatprep.mubr.f32.mxu0 0.0
  %2865 = vmatmul.mubr.f32.gmra.mrb[0].mxu0 %v375
  %v2866 = vpop.f32.mrb[0].mxu0
  %v2867 = vadd.f32 0.0, %v2866
  %v2868 = vpop.f32.mrb[0].mxu0
  %2869 = vmatprep.mubr.f32.mxu0 0.0
  %2870 = vmatmul.mubr.f32.gmra.mrb[0].mxu0 %v378
  %v2871 = vpop.f32.mrb[0].mxu0
  %v2872 = vadd.f32 0.0, %v2871
  %v2873 = vpop.f32.mrb[0].mxu0
  %2874 = vmatprep.mubr.f32.mxu0 0.0
  %2875 = vmatmul.mubr.f32.gmra.mrb[0].mxu0 %v381
  %v2876 = vpop.f32.mrb[0].mxu0
  %v2877 = vadd.f32 0.0, %v2876
  %v2878 = vpop.f32.mrb[0].mxu0
  %2879 = vmatprep.mubr.f32.mxu0 0.0
  %2880 = vmatmul.mubr.f32.gmra.mrb[0].mxu0 %v384
  %v2881 = vpop.f32.mrb[0].mxu0
  %v2882 = vadd.f32 0.0, %v2881
  %v2883 = vpop.f32.mrb[0].mxu0
  %2884 = vmatprep.mubr.f32.mxu0 0.0
  %2885 = vmatmul.mubr.f32.gmra.mrb[0].mxu0 %v387
  %v2886 = vpop.f32.mrb[0].mxu0
  %v2887 = vadd.f32 0.0, %v2886
  %v2888 = vpop.f32.mrb[0].mxu0
  %2889 = vmatprep.mubr.f32.mxu0 0.0
  %2890 = vmatmul.mubr.f32.gmra.mrb[0].mxu0 %v390
  %v2891 = vpop.f32.mrb[0].mxu0
  %v2892 = vadd.f32 0.0, %v2891
  %v2893 = vpop.f32.mrb[0].mxu0
  %2894 = vmatprep.mubr.f32.mxu0 0.0
  %2895 = vmatmul.mubr.f32.gmra.mrb[0].mxu0 %v393
  %v2896 = vpop.f32.mrb[0].mxu0
  %v2897 = vadd.f32 0.0, %v2896
  %v2898 = vpop.f32.mrb[0].mxu0
  %2899 = vmatprep.mubr.f32.mxu0 0.0
  %2900 = vmatmul.mubr.f32.gmra.mrb[0].mxu0 %v396
  %v2901 = vpop.f32.mrb[0].mxu0
  %v2902 = vadd.f32 0.0, %v2901
  %v2903 = vpop.f32.mrb[0].mxu0
  %2904 = vmatprep.mubr.f32.mxu0 0.0
  %2905 = vmatmul.mubr.f32.gmra.mrb[0].mxu0 %v399
  %v2906 = vpop.f32.mrb[0].mxu0
  %v2907 = vadd.f32 0.0, %v2906
  %v2908 = vpop.f32.mrb[0].mxu0
  %2909 = vmatprep.mubr.f32.mxu0 0.0
  %2910 = vmatmul.mubr.f32.gmra.mrb[0].mxu0 %v402
  %v2911 = vpop.f32.mrb[0].mxu0
  %v2912 = vadd.f32 0.0, %v2911
  %v2913 = vpop.f32.mrb[0].mxu0
  %2914 = vmatprep.mubr.f32.mxu0 0.0
  %2915 = vmatmul.mubr.f32.gmra.mrb[0].mxu0 %v405
  %v2916 = vpop.f32.mrb[0].mxu0
  %v2917 = vadd.f32 0.0, %v2916
  %v2918 = vpop.f32.mrb[0].mxu0
  %2919 = vdwg.mxu0
  %v2920 = vld [vmem:[%s2 + $0x2ef] sm:$0x1]
  %v2921 = vld [vmem:[%s2 + $0x2e8] sm:$0x1]
  %v2922 = vlaneseq
  %v2923 = vshrl.u32 %v2922, 7
  %v2924 = vsub.s32 0, %v2923
  %v2925 = vrot.slane %v2921, %v2924
  %v2926 = vmul.f32 %v2862, %v2925
  %v2927 = vmul.f32 %v2867, %v2925
  %v2928 = vmul.f32 %v2872, %v2925
  %v2929 = vmul.f32 %v2877, %v2925
  %v2930 = vlaneseq
  %v2931 = vshrl.u32 %v2930, 7
  %v2932 = vsub.s32 0, %v2931
  %v2933 = vrot.slane %v2920, %v2932
  %v2934 = vadd.f32 %v2933, %v2926
  %v2935 = vadd.f32 %v2933, %v2927
  %v2936 = vadd.f32 %v2933, %v2928
  %v2937 = vadd.f32 %v2933, %v2929
  %v2938 = vld [vmem:[%s2 + $0x2e9] sm:$0x1]
  %v2939 = vlaneseq
  %v2940 = vshrl.u32 %v2939, 7
  %v2941 = vsub.s32 0, %v2940
  %v2942 = vrot.slane %v2938, %v2941
  %v2943 = vmul.f32 %v2882, %v2942
  %v2944 = vmul.f32 %v2887, %v2942
  %v2945 = vmul.f32 %v2892, %v2942
  %v2946 = vmul.f32 %v2897, %v2942
  %v2947 = vadd.f32 %v2934, %v2943
  %v2948 = vadd.f32 %v2935, %v2944
  %v2949 = vadd.f32 %v2936, %v2945
  %v2950 = vadd.f32 %v2937, %v2946
  %v2951 = vld [vmem:[%s2 + $0x2ea] sm:$0x1]
  %v2952 = vlaneseq
  %v2953 = vshrl.u32 %v2952, 7
  %v2954 = vsub.s32 0, %v2953
  %v2955 = vrot.slane %v2951, %v2954
  %v2956 = vmul.f32 %v2902, %v2955
  %v2957 = vmul.f32 %v2907, %v2955
  %v2958 = vmul.f32 %v2912, %v2955
  %v2959 = vmul.f32 %v2917, %v2955
  %v2960 = vadd.f32 %v2947, %v2956
  %v2961 = vadd.f32 %v2948, %v2957
  %v2962 = vadd.f32 %v2949, %v2958
  %v2963 = vadd.f32 %v2950, %v2959
  %s2964 = scalar_lea.vmem %s4, 80
  %v2965 = vld [vmem:[%s2964] sm:$0xf]
  %v2966 = vld [vmem:[%s2964 + $0x4] sm:$0xf]
  %v2967 = vld [vmem:[%s2964 + $0x8] sm:$0xf]
  %v2968 = vld [vmem:[%s2964 + $0xc] sm:$0xf]
  %v2969 = vld [vmem:[%s2 + $0x2e4] sm:$0x1]
  %v2970 = vlaneseq
  %v2971 = vshrl.u32 %v2970, 7
  %v2972 = vsub.s32 0, %v2971
  %v2973 = vrot.slane %v2969, %v2972
  %v2978 = vunpack.c.l.b16 %v2965
  %v2979 = vunpack.c.l.b16 %v2966
  %v2980 = vunpack.c.l.b16 %v2967
  %v2981 = vunpack.c.l.b16 %v2968
  %v2982 = vpack.c.b16 %v2979, %v2978
  %v2983 = vpack.c.b16 %v2981, %v2980
  %2986 = vmatprep.subr.bf16.mxu0 0
  %2987 = vmatpush1.bf16.msra.mxu0 %v2982
  %2988 = vmatprep.subr.bf16.mxu0 0
  %2989 = vmatpush1.bf16.msra.mxu0 %v2983
  %2990 = vmatprep.subr.bf16.mxu0 0
  %2991 = vmatpush1.bf16.msra.mxu0 0
  %2992 = vmatprep.subr.bf16.mxu0 0
  %2993 = vmatpush1.bf16.msra.mxu0 0
  %2994 = vmatprep.subr.bf16.mxu0 0
  %2995 = vmatpush1.bf16.msra.mxu0 0
  %2996 = vmatprep.subr.bf16.mxu0 0
  %2997 = vmatpush1.bf16.msra.mxu0 0
  %2998 = vmatprep.subr.bf16.mxu0 0
  %2999 = vmatpush1.bf16.msra.mxu0 0
  %3000 = vmatprep.subr.bf16.mxu0 0
  %3001 = vmatpush1.bf16.msra.mxu0 0
  %3002 = vmatprep.subr.bf16.mxu0 0
  %3003 = vmatpush1.bf16.msra.mxu0 0
  %3004 = vmatprep.subr.bf16.mxu0 0
  %3005 = vmatpush1.bf16.msra.mxu0 0
  %3006 = vmatprep.subr.bf16.mxu0 0
  %3007 = vmatpush1.bf16.msra.mxu0 0
  %3008 = vmatprep.subr.bf16.mxu0 0
  %3009 = vmatpush1.bf16.msra.mxu0 0
  %3010 = vmatprep.subr.bf16.mxu0 0
  %3011 = vmatpush1.bf16.msra.mxu0 0
  %3012 = vmatprep.subr.bf16.mxu0 0
  %3013 = vmatpush1.bf16.msra.mxu0 0
  %3014 = vmatprep.subr.bf16.mxu0 0
  %3015 = vmatpush1.bf16.msra.mxu0 0
  %3016 = vmatprep.subr.bf16.mxu0 0
  %3017 = vmatpush1.bf16.msra.mxu0 0
  %3018 = vmatprep.mubr.bf16.mxu0 0
  %3019 = vmatmul.mubr.bf16.gmra.mrb[0].mxu0 %v2501
  %v3020 = vpop.f32.mrb[0].mxu0
  %v3021 = vadd.f32 %v2973, %v3020
  %v3022 = vpop.f32.mrb[0].mxu0
  %v3023 = vpop.f32.mrb[0].mxu0
  %v3024 = vadd.f32 %v2973, %v3023
  %v3025 = vpop.f32.mrb[0].mxu0
  %3026 = vmatprep.mubr.bf16.mxu0 0
  %3027 = vmatmul.mubr.bf16.gmra.mrb[0].mxu0 %v2504
  %v3028 = vpop.f32.mrb[0].mxu0
  %v3029 = vadd.f32 %v2973, %v3028
  %v3030 = vpop.f32.mrb[0].mxu0
  %v3031 = vpop.f32.mrb[0].mxu0
  %v3032 = vadd.f32 %v2973, %v3031
  %v3033 = vpop.f32.mrb[0].mxu0
  %3034 = vdwg.mxu0
  %3035 = vmatprep.subr.mxu0 0.0
  %3036 = vmatpush1.msra.mxu0 %v3021
  %3037 = vmatprep.subr.mxu0 0.0
  %3038 = vmatpush1.msra.mxu0 %v3024
  %3039 = vmatprep.subr.mxu0 0.0
  %3040 = vmatpush1.msra.mxu0 %v3029
  %3041 = vmatprep.subr.mxu0 0.0
  %3042 = vmatpush1.msra.mxu0 %v3032
  %3043 = vmatprep.subr.mxu0 0.0
  %3044 = vmatpush1.msra.mxu0 0.0
  %3045 = vmatprep.subr.mxu0 0.0
  %3046 = vmatpush1.msra.mxu0 0.0
  %3047 = vmatprep.subr.mxu0 0.0
  %3048 = vmatpush1.msra.mxu0 0.0
  %3049 = vmatprep.subr.mxu0 0.0
  %3050 = vmatpush1.msra.mxu0 0.0
  %3051 = vmatprep.subr.mxu0 0.0
  %3052 = vmatpush1.msra.mxu0 0.0
  %3053 = vmatprep.subr.mxu0 0.0
  %3054 = vmatpush1.msra.mxu0 0.0
  %3055 = vmatprep.subr.mxu0 0.0
  %3056 = vmatpush1.msra.mxu0 0.0
  %3057 = vmatprep.subr.mxu0 0.0
  %3058 = vmatpush1.msra.mxu0 0.0
  %3059 = vmatprep.subr.mxu0 0.0
  %3060 = vmatpush1.msra.mxu0 0.0
  %3061 = vmatprep.subr.mxu0 0.0
  %3062 = vmatpush1.msra.mxu0 0.0
  %3063 = vmatprep.subr.mxu0 0.0
  %3064 = vmatpush1.msra.mxu0 0.0
  %3065 = vmatprep.subr.mxu0 0.0
  %3066 = vmatpush1.msra.mxu0 0.0
  %3067 = vmatprep.subr.mxu0 0.0
  %3068 = vmatpush1.msra.mxu0 0.0
  %3069 = vmatprep.subr.mxu0 0.0
  %3070 = vmatpush1.msra.mxu0 0.0
  %3071 = vmatprep.subr.mxu0 0.0
  %3072 = vmatpush1.msra.mxu0 0.0
  %3073 = vmatprep.subr.mxu0 0.0
  %3074 = vmatpush1.msra.mxu0 0.0
  %3075 = vmatprep.subr.mxu0 0.0
  %3076 = vmatpush1.msra.mxu0 0.0
  %3077 = vmatprep.subr.mxu0 0.0
  %3078 = vmatpush1.msra.mxu0 0.0
  %3079 = vmatprep.subr.mxu0 0.0
  %3080 = vmatpush1.msra.mxu0 0.0
  %3081 = vmatprep.subr.mxu0 0.0
  %3082 = vmatpush1.msra.mxu0 0.0
  %3083 = vmatprep.subr.mxu0 0.0
  %3084 = vmatpush1.msra.mxu0 0.0
  %3085 = vmatprep.subr.mxu0 0.0
  %3086 = vmatpush1.msra.mxu0 0.0
  %3087 = vmatprep.subr.mxu0 0.0
  %3088 = vmatpush1.msra.mxu0 0.0
  %3089 = vmatprep.subr.mxu0 0.0
  %3090 = vmatpush1.msra.mxu0 0.0
  %3091 = vmatprep.subr.mxu0 0.0
  %3092 = vmatpush1.msra.mxu0 0.0
  %3093 = vmatprep.subr.mxu0 0.0
  %3094 = vmatpush1.msra.mxu0 0.0
  %3095 = vmatprep.subr.mxu0 0.0
  %3096 = vmatpush1.msra.mxu0 0.0
  %3097 = vmatprep.subr.mxu0 0.0
  %3098 = vmatpush1.msra.mxu0 0.0
  %3099 = vmatprep.mubr.f32.mxu0 0.0
  %3100 = vmatmul.mubr.f32.gmra.mrb[0].mxu0 %v372
  %v3101 = vpop.f32.mrb[0].mxu0
  %v3102 = vadd.f32 0.0, %v3101
  %v3103 = vpop.f32.mrb[0].mxu0
  %3104 = vmatprep.mubr.f32.mxu0 0.0
  %3105 = vmatmul.mubr.f32.gmra.mrb[0].mxu0 %v375
  %v3106 = vpop.f32.mrb[0].mxu0
  %v3107 = vadd.f32 0.0, %v3106
  %v3108 = vpop.f32.mrb[0].mxu0
  %3109 = vmatprep.mubr.f32.mxu0 0.0
  %3110 = vmatmul.mubr.f32.gmra.mrb[0].mxu0 %v378
  %v3111 = vpop.f32.mrb[0].mxu0
  %v3112 = vadd.f32 0.0, %v3111
  %v3113 = vpop.f32.mrb[0].mxu0
  %3114 = vmatprep.mubr.f32.mxu0 0.0
  %3115 = vmatmul.mubr.f32.gmra.mrb[0].mxu0 %v381
  %v3116 = vpop.f32.mrb[0].mxu0
  %v3117 = vadd.f32 0.0, %v3116
  %v3118 = vpop.f32.mrb[0].mxu0
  %3119 = vmatprep.mubr.f32.mxu0 0.0
  %3120 = vmatmul.mubr.f32.gmra.mrb[0].mxu0 %v384
  %v3121 = vpop.f32.mrb[0].mxu0
  %v3122 = vadd.f32 0.0, %v3121
  %v3123 = vpop.f32.mrb[0].mxu0
  %3124 = vmatprep.mubr.f32.mxu0 0.0
  %3125 = vmatmul.mubr.f32.gmra.mrb[0].mxu0 %v387
  %v3126 = vpop.f32.mrb[0].mxu0
  %v3127 = vadd.f32 0.0, %v3126
  %v3128 = vpop.f32.mrb[0].mxu0
  %3129 = vmatprep.mubr.f32.mxu0 0.0
  %3130 = vmatmul.mubr.f32.gmra.mrb[0].mxu0 %v390
  %v3131 = vpop.f32.mrb[0].mxu0
  %v3132 = vadd.f32 0.0, %v3131
  %v3133 = vpop.f32.mrb[0].mxu0
  %3134 = vmatprep.mubr.f32.mxu0 0.0
  %3135 = vmatmul.mubr.f32.gmra.mrb[0].mxu0 %v393
  %v3136 = vpop.f32.mrb[0].mxu0
  %v3137 = vadd.f32 0.0, %v3136
  %v3138 = vpop.f32.mrb[0].mxu0
  %3139 = vmatprep.mubr.f32.mxu0 0.0
  %3140 = vmatmul.mubr.f32.gmra.mrb[0].mxu0 %v396
  %v3141 = vpop.f32.mrb[0].mxu0
  %v3142 = vadd.f32 0.0, %v3141
  %v3143 = vpop.f32.mrb[0].mxu0
  %3144 = vmatprep.mubr.f32.mxu0 0.0
  %3145 = vmatmul.mubr.f32.gmra.mrb[0].mxu0 %v399
  %v3146 = vpop.f32.mrb[0].mxu0
  %v3147 = vadd.f32 0.0, %v3146
  %v3148 = vpop.f32.mrb[0].mxu0
  %3149 = vmatprep.mubr.f32.mxu0 0.0
  %3150 = vmatmul.mubr.f32.gmra.mrb[0].mxu0 %v402
  %v3151 = vpop.f32.mrb[0].mxu0
  %v3152 = vadd.f32 0.0, %v3151
  %v3153 = vpop.f32.mrb[0].mxu0
  %3154 = vmatprep.mubr.f32.mxu0 0.0
  %3155 = vmatmul.mubr.f32.gmra.mrb[0].mxu0 %v405
  %v3156 = vpop.f32.mrb[0].mxu0
  %v3157 = vadd.f32 0.0, %v3156
  %v3158 = vpop.f32.mrb[0].mxu0
  %3159 = vdwg.mxu0
  %v3160 = vld [vmem:[%s2 + $0x2f0] sm:$0x1]
  %v3161 = vld [vmem:[%s2 + $0x2eb] sm:$0x1]
  %v3162 = vlaneseq
  %v3163 = vshrl.u32 %v3162, 7
  %v3164 = vsub.s32 0, %v3163
  %v3165 = vrot.slane %v3161, %v3164
  %v3166 = vmul.f32 %v3102, %v3165
  %v3167 = vmul.f32 %v3107, %v3165
  %v3168 = vmul.f32 %v3112, %v3165
  %v3169 = vmul.f32 %v3117, %v3165
  %v3170 = vlaneseq
  %v3171 = vshrl.u32 %v3170, 7
  %v3172 = vsub.s32 0, %v3171
  %v3173 = vrot.slane %v3160, %v3172
  %v3174 = vadd.f32 %v3173, %v3166
  %v3175 = vadd.f32 %v3173, %v3167
  %v3176 = vadd.f32 %v3173, %v3168
  %v3177 = vadd.f32 %v3173, %v3169
  %v3178 = vld [vmem:[%s2 + $0x2ec] sm:$0x1]
  %v3179 = vlaneseq
  %v3180 = vshrl.u32 %v3179, 7
  %v3181 = vsub.s32 0, %v3180
  %v3182 = vrot.slane %v3178, %v3181
  %v3183 = vmul.f32 %v3122, %v3182
  %v3184 = vmul.f32 %v3127, %v3182
  %v3185 = vmul.f32 %v3132, %v3182
  %v3186 = vmul.f32 %v3137, %v3182
  %v3187 = vadd.f32 %v3174, %v3183
  %v3188 = vadd.f32 %v3175, %v3184
  %v3189 = vadd.f32 %v3176, %v3185
  %v3190 = vadd.f32 %v3177, %v3186
  %v3191 = vld [vmem:[%s2 + $0x2ed] sm:$0x1]
  %v3192 = vlaneseq
  %v3193 = vshrl.u32 %v3192, 7
  %v3194 = vsub.s32 0, %v3193
  %v3195 = vrot.slane %v3191, %v3194
  %v3196 = vmul.f32 %v3142, %v3195
  %v3197 = vmul.f32 %v3147, %v3195
  %v3198 = vmul.f32 %v3152, %v3195
  %v3199 = vmul.f32 %v3157, %v3195
  %v3200 = vadd.f32 %v3187, %v3196
  %v3201 = vadd.f32 %v3188, %v3197
  %v3202 = vadd.f32 %v3189, %v3198
  %v3203 = vadd.f32 %v3190, %v3199
  %v3204 = vmul.f32 %v3200, %v2960
  %v3205 = vmul.f32 %v3201, %v2961
  %v3206 = vmul.f32 %v3202, %v2962
  %v3207 = vmul.f32 %v3203, %v2963
  %3208 = vmatprep.subr.mxu0 0.0
  %3209 = vmatpush1.msra.mxu0 %v3204
  %3210 = vmatprep.subr.mxu0 0.0
  %3211 = vmatpush1.msra.mxu0 %v3205
  %3212 = vmatprep.subr.mxu0 0.0
  %3213 = vmatpush1.msra.mxu0 %v3206
  %3214 = vmatprep.subr.mxu0 0.0
  %3215 = vmatpush1.msra.mxu0 %v3207
  %3216 = vmatprep.subr.mxu0 0.0
  %3217 = vmatpush1.msra.mxu0 0.0
  %3218 = vmatprep.subr.mxu0 0.0
  %3219 = vmatpush1.msra.mxu0 0.0
  %3220 = vmatprep.subr.mxu0 0.0
  %3221 = vmatpush1.msra.mxu0 0.0
  %3222 = vmatprep.subr.mxu0 0.0
  %3223 = vmatpush1.msra.mxu0 0.0
  %3224 = vmatprep.subr.mxu0 0.0
  %3225 = vmatpush1.msra.mxu0 0.0
  %3226 = vmatprep.subr.mxu0 0.0
  %3227 = vmatpush1.msra.mxu0 0.0
  %3228 = vmatprep.subr.mxu0 0.0
  %3229 = vmatpush1.msra.mxu0 0.0
  %3230 = vmatprep.subr.mxu0 0.0
  %3231 = vmatpush1.msra.mxu0 0.0
  %3232 = vmatprep.subr.mxu0 0.0
  %3233 = vmatpush1.msra.mxu0 0.0
  %3234 = vmatprep.subr.mxu0 0.0
  %3235 = vmatpush1.msra.mxu0 0.0
  %3236 = vmatprep.subr.mxu0 0.0
  %3237 = vmatpush1.msra.mxu0 0.0
  %3238 = vmatprep.subr.mxu0 0.0
  %3239 = vmatpush1.msra.mxu0 0.0
  %3240 = vmatprep.subr.mxu0 0.0
  %3241 = vmatpush1.msra.mxu0 0.0
  %3242 = vmatprep.subr.mxu0 0.0
  %3243 = vmatpush1.msra.mxu0 0.0
  %3244 = vmatprep.subr.mxu0 0.0
  %3245 = vmatpush1.msra.mxu0 0.0
  %3246 = vmatprep.subr.mxu0 0.0
  %3247 = vmatpush1.msra.mxu0 0.0
  %3248 = vmatprep.subr.mxu0 0.0
  %3249 = vmatpush1.msra.mxu0 0.0
  %3250 = vmatprep.subr.mxu0 0.0
  %3251 = vmatpush1.msra.mxu0 0.0
  %3252 = vmatprep.subr.mxu0 0.0
  %3253 = vmatpush1.msra.mxu0 0.0
  %3254 = vmatprep.subr.mxu0 0.0
  %3255 = vmatpush1.msra.mxu0 0.0
  %3256 = vmatprep.subr.mxu0 0.0
  %3257 = vmatpush1.msra.mxu0 0.0
  %3258 = vmatprep.subr.mxu0 0.0
  %3259 = vmatpush1.msra.mxu0 0.0
  %3260 = vmatprep.subr.mxu0 0.0
  %3261 = vmatpush1.msra.mxu0 0.0
  %3262 = vmatprep.subr.mxu0 0.0
  %3263 = vmatpush1.msra.mxu0 0.0
  %3264 = vmatprep.subr.mxu0 0.0
  %3265 = vmatpush1.msra.mxu0 0.0
  %3266 = vmatprep.subr.mxu0 0.0
  %3267 = vmatpush1.msra.mxu0 0.0
  %3268 = vmatprep.subr.mxu0 0.0
  %3269 = vmatpush1.msra.mxu0 0.0
  %3270 = vmatprep.subr.mxu0 0.0
  %3271 = vmatpush1.msra.mxu0 0.0
  %3272 = vmatprep.mubr.f32.mxu0 0.0
  %3273 = vmatmul.mubr.f32.gmra.mrb[0].mxu0 %v372
  %v3274 = vpop.f32.mrb[0].mxu0
  %v3275 = vadd.f32 0.0, %v3274
  %v3276 = vpop.f32.mrb[0].mxu0
  %3277 = vmatprep.mubr.f32.mxu0 0.0
  %3278 = vmatmul.mubr.f32.gmra.mrb[0].mxu0 %v375
  %v3279 = vpop.f32.mrb[0].mxu0
  %v3280 = vadd.f32 0.0, %v3279
  %v3281 = vpop.f32.mrb[0].mxu0
  %3282 = vmatprep.mubr.f32.mxu0 0.0
  %3283 = vmatmul.mubr.f32.gmra.mrb[0].mxu0 %v378
  %v3284 = vpop.f32.mrb[0].mxu0
  %v3285 = vadd.f32 0.0, %v3284
  %v3286 = vpop.f32.mrb[0].mxu0
  %3287 = vmatprep.mubr.f32.mxu0 0.0
  %3288 = vmatmul.mubr.f32.gmra.mrb[0].mxu0 %v381
  %v3289 = vpop.f32.mrb[0].mxu0
  %v3290 = vadd.f32 0.0, %v3289
  %v3291 = vpop.f32.mrb[0].mxu0
  %3292 = vmatprep.mubr.f32.mxu0 0.0
  %3293 = vmatmul.mubr.f32.gmra.mrb[0].mxu0 %v384
  %v3294 = vpop.f32.mrb[0].mxu0
  %v3295 = vadd.f32 0.0, %v3294
  %v3296 = vpop.f32.mrb[0].mxu0
  %3297 = vmatprep.mubr.f32.mxu0 0.0
  %3298 = vmatmul.mubr.f32.gmra.mrb[0].mxu0 %v387
  %v3299 = vpop.f32.mrb[0].mxu0
  %v3300 = vadd.f32 0.0, %v3299
  %v3301 = vpop.f32.mrb[0].mxu0
  %3302 = vmatprep.mubr.f32.mxu0 0.0
  %3303 = vmatmul.mubr.f32.gmra.mrb[0].mxu0 %v390
  %v3304 = vpop.f32.mrb[0].mxu0
  %v3305 = vadd.f32 0.0, %v3304
  %v3306 = vpop.f32.mrb[0].mxu0
  %3307 = vmatprep.mubr.f32.mxu0 0.0
  %3308 = vmatmul.mubr.f32.gmra.mrb[0].mxu0 %v393
  %v3309 = vpop.f32.mrb[0].mxu0
  %v3310 = vadd.f32 0.0, %v3309
  %v3311 = vpop.f32.mrb[0].mxu0
  %3312 = vmatprep.mubr.f32.mxu0 0.0
  %3313 = vmatmul.mubr.f32.gmra.mrb[0].mxu0 %v396
  %v3314 = vpop.f32.mrb[0].mxu0
  %v3315 = vadd.f32 0.0, %v3314
  %v3316 = vpop.f32.mrb[0].mxu0
  %3317 = vmatprep.mubr.f32.mxu0 0.0
  %3318 = vmatmul.mubr.f32.gmra.mrb[0].mxu0 %v399
  %v3319 = vpop.f32.mrb[0].mxu0
  %v3320 = vadd.f32 0.0, %v3319
  %v3321 = vpop.f32.mrb[0].mxu0
  %3322 = vmatprep.mubr.f32.mxu0 0.0
  %3323 = vmatmul.mubr.f32.gmra.mrb[0].mxu0 %v402
  %v3324 = vpop.f32.mrb[0].mxu0
  %v3325 = vadd.f32 0.0, %v3324
  %v3326 = vpop.f32.mrb[0].mxu0
  %3327 = vmatprep.mubr.f32.mxu0 0.0
  %3328 = vmatmul.mubr.f32.gmra.mrb[0].mxu0 %v405
  %v3329 = vpop.f32.mrb[0].mxu0
  %v3330 = vadd.f32 0.0, %v3329
  %v3331 = vpop.f32.mrb[0].mxu0
  %3332 = vmatprep.mubr.f32.mxu0 0.0
  %3333 = vmatmul.mubr.f32.gmra.mrb[0].mxu0 %v1061
  %v3334 = vpop.f32.mrb[0].mxu0
  %v3335 = vadd.f32 0.0, %v3334
  %v3336 = vpop.f32.mrb[0].mxu0
  %3337 = vmatprep.mubr.f32.mxu0 0.0
  %3338 = vmatmul.mubr.f32.gmra.mrb[0].mxu0 %v1064
  %v3339 = vpop.f32.mrb[0].mxu0
  %v3340 = vadd.f32 0.0, %v3339
  %v3341 = vpop.f32.mrb[0].mxu0
  %3342 = vmatprep.mubr.f32.mxu0 0.0
  %3343 = vmatmul.mubr.f32.gmra.mrb[0].mxu0 %v1067
  %v3344 = vpop.f32.mrb[0].mxu0
  %v3345 = vadd.f32 0.0, %v3344
  %v3346 = vpop.f32.mrb[0].mxu0
  %3347 = vmatprep.mubr.f32.mxu0 0.0
  %3348 = vmatmul.mubr.f32.gmra.mrb[0].mxu0 %v1070
  %v3349 = vpop.f32.mrb[0].mxu0
  %v3350 = vadd.f32 0.0, %v3349
  %v3351 = vpop.f32.mrb[0].mxu0
  %3352 = vmatprep.mubr.f32.mxu0 0.0
  %3353 = vmatmul.mubr.f32.gmra.mrb[0].mxu0 %v1073
  %v3354 = vpop.f32.mrb[0].mxu0
  %v3355 = vadd.f32 0.0, %v3354
  %v3356 = vpop.f32.mrb[0].mxu0
  %3357 = vmatprep.mubr.f32.mxu0 0.0
  %3358 = vmatmul.mubr.f32.gmra.mrb[0].mxu0 %v1076
  %v3359 = vpop.f32.mrb[0].mxu0
  %v3360 = vadd.f32 0.0, %v3359
  %v3361 = vpop.f32.mrb[0].mxu0
  %3362 = vmatprep.mubr.f32.mxu0 0.0
  %3363 = vmatmul.mubr.f32.gmra.mrb[0].mxu0 %v1079
  %v3364 = vpop.f32.mrb[0].mxu0
  %v3365 = vadd.f32 0.0, %v3364
  %v3366 = vpop.f32.mrb[0].mxu0
  %3367 = vmatprep.mubr.f32.mxu0 0.0
  %3368 = vmatmul.mubr.f32.gmra.mrb[0].mxu0 %v1082
  %v3369 = vpop.f32.mrb[0].mxu0
  %v3370 = vadd.f32 0.0, %v3369
  %v3371 = vpop.f32.mrb[0].mxu0
  %3372 = vmatprep.mubr.f32.mxu0 0.0
  %3373 = vmatmul.mubr.f32.gmra.mrb[0].mxu0 %v1085
  %v3374 = vpop.f32.mrb[0].mxu0
  %v3375 = vadd.f32 0.0, %v3374
  %v3376 = vpop.f32.mrb[0].mxu0
  %3377 = vmatprep.mubr.f32.mxu0 0.0
  %3378 = vmatmul.mubr.f32.gmra.mrb[0].mxu0 %v1088
  %v3379 = vpop.f32.mrb[0].mxu0
  %v3380 = vadd.f32 0.0, %v3379
  %v3381 = vpop.f32.mrb[0].mxu0
  %3382 = vmatprep.mubr.f32.mxu0 0.0
  %3383 = vmatmul.mubr.f32.gmra.mrb[0].mxu0 %v1091
  %v3384 = vpop.f32.mrb[0].mxu0
  %v3385 = vadd.f32 0.0, %v3384
  %v3386 = vpop.f32.mrb[0].mxu0
  %3387 = vmatprep.mubr.f32.mxu0 0.0
  %3388 = vmatmul.mubr.f32.gmra.mrb[0].mxu0 %v1094
  %v3389 = vpop.f32.mrb[0].mxu0
  %v3390 = vadd.f32 0.0, %v3389
  %v3391 = vpop.f32.mrb[0].mxu0
  %3392 = vmatprep.mubr.f32.mxu0 0.0
  %3393 = vmatmul.mubr.f32.gmra.mrb[0].mxu0 %v1097
  %v3394 = vpop.f32.mrb[0].mxu0
  %v3395 = vadd.f32 0.0, %v3394
  %v3396 = vpop.f32.mrb[0].mxu0
  %3397 = vmatprep.mubr.f32.mxu0 0.0
  %3398 = vmatmul.mubr.f32.gmra.mrb[0].mxu0 %v1100
  %v3399 = vpop.f32.mrb[0].mxu0
  %v3400 = vadd.f32 0.0, %v3399
  %v3401 = vpop.f32.mrb[0].mxu0
  %3402 = vmatprep.mubr.f32.mxu0 0.0
  %3403 = vmatmul.mubr.f32.gmra.mrb[0].mxu0 %v1103
  %v3404 = vpop.f32.mrb[0].mxu0
  %v3405 = vadd.f32 0.0, %v3404
  %v3406 = vpop.f32.mrb[0].mxu0
  %3407 = vmatprep.mubr.f32.mxu0 0.0
  %3408 = vmatmul.mubr.f32.gmra.mrb[0].mxu0 %v1106
  %v3409 = vpop.f32.mrb[0].mxu0
  %v3410 = vadd.f32 0.0, %v3409
  %v3411 = vpop.f32.mrb[0].mxu0
  %3412 = vmatprep.mubr.f32.mxu0 0.0
  %3413 = vmatmul.mubr.f32.gmra.mrb[0].mxu0 %v1109
  %v3414 = vpop.f32.mrb[0].mxu0
  %v3415 = vadd.f32 0.0, %v3414
  %v3416 = vpop.f32.mrb[0].mxu0
  %3417 = vmatprep.mubr.f32.mxu0 0.0
  %3418 = vmatmul.mubr.f32.gmra.mrb[0].mxu0 %v1112
  %v3419 = vpop.f32.mrb[0].mxu0
  %v3420 = vadd.f32 0.0, %v3419
  %v3421 = vpop.f32.mrb[0].mxu0
  %3422 = vmatprep.mubr.f32.mxu0 0.0
  %3423 = vmatmul.mubr.f32.gmra.mrb[0].mxu0 %v1115
  %v3424 = vpop.f32.mrb[0].mxu0
  %v3425 = vadd.f32 0.0, %v3424
  %v3426 = vpop.f32.mrb[0].mxu0
  %3427 = vmatprep.mubr.f32.mxu0 0.0
  %3428 = vmatmul.mubr.f32.gmra.mrb[0].mxu0 %v1118
  %v3429 = vpop.f32.mrb[0].mxu0
  %v3430 = vadd.f32 0.0, %v3429
  %v3431 = vpop.f32.mrb[0].mxu0
  %3432 = vmatprep.mubr.f32.mxu0 0.0
  %3433 = vmatmul.mubr.f32.gmra.mrb[0].mxu0 %v1121
  %v3434 = vpop.f32.mrb[0].mxu0
  %v3435 = vadd.f32 0.0, %v3434
  %v3436 = vpop.f32.mrb[0].mxu0
  %3437 = vmatprep.mubr.f32.mxu0 0.0
  %3438 = vmatmul.mubr.f32.gmra.mrb[0].mxu0 %v1124
  %v3439 = vpop.f32.mrb[0].mxu0
  %v3440 = vadd.f32 0.0, %v3439
  %v3441 = vpop.f32.mrb[0].mxu0
  %3442 = vmatprep.mubr.f32.mxu0 0.0
  %3443 = vmatmul.mubr.f32.gmra.mrb[0].mxu0 %v1127
  %v3444 = vpop.f32.mrb[0].mxu0
  %v3445 = vadd.f32 0.0, %v3444
  %v3446 = vpop.f32.mrb[0].mxu0
  %3447 = vmatprep.mubr.f32.mxu0 0.0
  %3448 = vmatmul.mubr.f32.gmra.mrb[0].mxu0 %v1130
  %v3449 = vpop.f32.mrb[0].mxu0
  %v3450 = vadd.f32 0.0, %v3449
  %v3451 = vpop.f32.mrb[0].mxu0
  %3452 = vmatprep.mubr.f32.mxu0 0.0
  %3453 = vmatmul.mubr.f32.gmra.mrb[0].mxu0 %v1133
  %v3454 = vpop.f32.mrb[0].mxu0
  %v3455 = vadd.f32 0.0, %v3454
  %v3456 = vpop.f32.mrb[0].mxu0
  %3457 = vmatprep.mubr.f32.mxu0 0.0
  %3458 = vmatmul.mubr.f32.gmra.mrb[0].mxu0 %v1136
  %v3459 = vpop.f32.mrb[0].mxu0
  %v3460 = vadd.f32 0.0, %v3459
  %v3461 = vpop.f32.mrb[0].mxu0
  %3462 = vmatprep.mubr.f32.mxu0 0.0
  %3463 = vmatmul.mubr.f32.gmra.mrb[0].mxu0 %v1139
  %v3464 = vpop.f32.mrb[0].mxu0
  %v3465 = vadd.f32 0.0, %v3464
  %v3466 = vpop.f32.mrb[0].mxu0
  %3467 = vmatprep.mubr.f32.mxu0 0.0
  %3468 = vmatmul.mubr.f32.gmra.mrb[0].mxu0 %v1142
  %v3469 = vpop.f32.mrb[0].mxu0
  %v3470 = vadd.f32 0.0, %v3469
  %v3471 = vpop.f32.mrb[0].mxu0
  %3472 = vmatprep.mubr.f32.mxu0 0.0
  %3473 = vmatmul.mubr.f32.gmra.mrb[0].mxu0 %v1145
  %v3474 = vpop.f32.mrb[0].mxu0
  %v3475 = vadd.f32 0.0, %v3474
  %v3476 = vpop.f32.mrb[0].mxu0
  %3477 = vmatprep.mubr.f32.mxu0 0.0
  %3478 = vmatmul.mubr.f32.gmra.mrb[0].mxu0 %v1148
  %v3479 = vpop.f32.mrb[0].mxu0
  %v3480 = vadd.f32 0.0, %v3479
  %v3481 = vpop.f32.mrb[0].mxu0
  %3482 = vmatprep.mubr.f32.mxu0 0.0
  %3483 = vmatmul.mubr.f32.gmra.mrb[0].mxu0 %v1151
  %v3484 = vpop.f32.mrb[0].mxu0
  %v3485 = vadd.f32 0.0, %v3484
  %v3486 = vpop.f32.mrb[0].mxu0
  %3487 = vmatprep.mubr.f32.mxu0 0.0
  %3488 = vmatmul.mubr.f32.gmra.mrb[0].mxu0 %v1154
  %v3489 = vpop.f32.mrb[0].mxu0
  %v3490 = vadd.f32 0.0, %v3489
  %v3491 = vpop.f32.mrb[0].mxu0
  %3492 = vmatprep.mubr.f32.mxu0 0.0
  %3493 = vmatmul.mubr.f32.gmra.mrb[0].mxu0 %v1157
  %v3494 = vpop.f32.mrb[0].mxu0
  %v3495 = vadd.f32 0.0, %v3494
  %v3496 = vpop.f32.mrb[0].mxu0
  %3497 = vmatprep.mubr.f32.mxu0 0.0
  %3498 = vmatmul.mubr.f32.gmra.mrb[0].mxu0 %v1160
  %v3499 = vpop.f32.mrb[0].mxu0
  %v3500 = vadd.f32 0.0, %v3499
  %v3501 = vpop.f32.mrb[0].mxu0
  %3502 = vmatprep.mubr.f32.mxu0 0.0
  %3503 = vmatmul.mubr.f32.gmra.mrb[0].mxu0 %v1163
  %v3504 = vpop.f32.mrb[0].mxu0
  %v3505 = vadd.f32 0.0, %v3504
  %v3506 = vpop.f32.mrb[0].mxu0
  %3507 = vmatprep.mubr.f32.mxu0 0.0
  %3508 = vmatmul.mubr.f32.gmra.mrb[0].mxu0 %v1166
  %v3509 = vpop.f32.mrb[0].mxu0
  %v3510 = vadd.f32 0.0, %v3509
  %v3511 = vpop.f32.mrb[0].mxu0
  %3512 = vmatprep.mubr.f32.mxu0 0.0
  %3513 = vmatmul.mubr.f32.gmra.mrb[0].mxu0 %v1169
  %v3514 = vpop.f32.mrb[0].mxu0
  %v3515 = vadd.f32 0.0, %v3514
  %v3516 = vpop.f32.mrb[0].mxu0
  %3517 = vmatprep.mubr.f32.mxu0 0.0
  %3518 = vmatmul.mubr.f32.gmra.mrb[0].mxu0 %v1172
  %v3519 = vpop.f32.mrb[0].mxu0
  %v3520 = vadd.f32 0.0, %v3519
  %v3521 = vpop.f32.mrb[0].mxu0
  %3522 = vmatprep.mubr.f32.mxu0 0.0
  %3523 = vmatmul.mubr.f32.gmra.mrb[0].mxu0 %v1175
  %v3524 = vpop.f32.mrb[0].mxu0
  %v3525 = vadd.f32 0.0, %v3524
  %v3526 = vpop.f32.mrb[0].mxu0
  %3527 = vmatprep.mubr.f32.mxu0 0.0
  %3528 = vmatmul.mubr.f32.gmra.mrb[0].mxu0 %v1178
  %v3529 = vpop.f32.mrb[0].mxu0
  %v3530 = vadd.f32 0.0, %v3529
  %v3531 = vpop.f32.mrb[0].mxu0
  %3532 = vmatprep.mubr.f32.mxu0 0.0
  %3533 = vmatmul.mubr.f32.gmra.mrb[0].mxu0 %v1181
  %v3534 = vpop.f32.mrb[0].mxu0
  %v3535 = vadd.f32 0.0, %v3534
  %v3536 = vpop.f32.mrb[0].mxu0
  %3537 = vmatprep.mubr.f32.mxu0 0.0
  %3538 = vmatmul.mubr.f32.gmra.mrb[0].mxu0 %v1184
  %v3539 = vpop.f32.mrb[0].mxu0
  %v3540 = vadd.f32 0.0, %v3539
  %v3541 = vpop.f32.mrb[0].mxu0
  %3542 = vmatprep.mubr.f32.mxu0 0.0
  %3543 = vmatmul.mubr.f32.gmra.mrb[0].mxu0 %v1187
  %v3544 = vpop.f32.mrb[0].mxu0
  %v3545 = vadd.f32 0.0, %v3544
  %v3546 = vpop.f32.mrb[0].mxu0
  %3547 = vmatprep.mubr.f32.mxu0 0.0
  %3548 = vmatmul.mubr.f32.gmra.mrb[0].mxu0 %v1190
  %v3549 = vpop.f32.mrb[0].mxu0
  %v3550 = vadd.f32 0.0, %v3549
  %v3551 = vpop.f32.mrb[0].mxu0
  %3552 = vmatprep.mubr.f32.mxu0 0.0
  %3553 = vmatmul.mubr.f32.gmra.mrb[0].mxu0 %v1193
  %v3554 = vpop.f32.mrb[0].mxu0
  %v3555 = vadd.f32 0.0, %v3554
  %v3556 = vpop.f32.mrb[0].mxu0
  %3557 = vmatprep.mubr.f32.mxu0 0.0
  %3558 = vmatmul.mubr.f32.gmra.mrb[0].mxu0 %v1196
  %v3559 = vpop.f32.mrb[0].mxu0
  %v3560 = vadd.f32 0.0, %v3559
  %v3561 = vpop.f32.mrb[0].mxu0
  %3562 = vmatprep.mubr.f32.mxu0 0.0
  %3563 = vmatmul.mubr.f32.gmra.mrb[0].mxu0 %v1199
  %v3564 = vpop.f32.mrb[0].mxu0
  %v3565 = vadd.f32 0.0, %v3564
  %v3566 = vpop.f32.mrb[0].mxu0
  %3567 = vmatprep.mubr.f32.mxu0 0.0
  %3568 = vmatmul.mubr.f32.gmra.mrb[0].mxu0 %v1202
  %v3569 = vpop.f32.mrb[0].mxu0
  %v3570 = vadd.f32 0.0, %v3569
  %v3571 = vpop.f32.mrb[0].mxu0
  %3572 = vmatprep.mubr.f32.mxu0 0.0
  %3573 = vmatmul.mubr.f32.gmra.mrb[0].mxu0 %v1205
  %v3574 = vpop.f32.mrb[0].mxu0
  %v3575 = vadd.f32 0.0, %v3574
  %v3576 = vpop.f32.mrb[0].mxu0
  %3577 = vmatprep.mubr.f32.mxu0 0.0
  %3578 = vmatmul.mubr.f32.gmra.mrb[0].mxu0 %v1208
  %v3579 = vpop.f32.mrb[0].mxu0
  %v3580 = vadd.f32 0.0, %v3579
  %v3581 = vpop.f32.mrb[0].mxu0
  %3582 = vmatprep.mubr.f32.mxu0 0.0
  %3583 = vmatmul.mubr.f32.gmra.mrb[0].mxu0 %v1211
  %v3584 = vpop.f32.mrb[0].mxu0
  %v3585 = vadd.f32 0.0, %v3584
  %v3586 = vpop.f32.mrb[0].mxu0
  %3587 = vmatprep.mubr.f32.mxu0 0.0
  %3588 = vmatmul.mubr.f32.gmra.mrb[0].mxu0 %v1214
  %v3589 = vpop.f32.mrb[0].mxu0
  %v3590 = vadd.f32 0.0, %v3589
  %v3591 = vpop.f32.mrb[0].mxu0
  %3592 = vdwg.mxu0
  %v3593 = vld [vmem:[%s2 + $0x220] sm:$0xff]
  %v3594 = vld [vmem:[%s2 + $0x228] sm:$0xff]
  %v3597 = vcombine.high %v3593, %v3593
  %v3599 = vunpack.c.l.s4 1966171168
  %v3600 = vunpack.c.0.s8 %v3599
  %v3601 = vlaneseq
  %v3602 = vshrl.u32 %v3601, 7
  %v3603 = vsub.s32 %v3600, %v3602
  %v3604 = vrot.slane %v3593, %v3603
  %v3606 = vunpack.c.l.s4 1966171168
  %v3607 = vunpack.c.0.s8 %v3606
  %v3608 = vlaneseq
  %v3609 = vshrl.u32 %v3608, 7
  %v3610 = vsub.s32 %v3607, %v3609
  %v3611 = vrot.slane %v3597, %v3610
  %v3612 = vcombine.high %v3604, %v3604
  %v3613 = vcombine.high %v3611, %v3611
  %v3615 = vunpack.c.l.s4 1966171168
  %v3616 = vunpack.c.0.s8 %v3615
  %v3617 = vlaneseq
  %v3618 = vshrl.u32 %v3617, 7
  %v3619 = vsub.s32 %v3616, %v3618
  %v3620 = vrot.slane %v3604, %v3619
  %v3622 = vunpack.c.l.s4 1966171168
  %v3623 = vunpack.c.0.s8 %v3622
  %v3624 = vlaneseq
  %v3625 = vshrl.u32 %v3624, 7
  %v3626 = vsub.s32 %v3623, %v3625
  %v3627 = vrot.slane %v3611, %v3626
  %v3629 = vunpack.c.l.s4 1966171168
  %v3630 = vunpack.c.0.s8 %v3629
  %v3631 = vlaneseq
  %v3632 = vshrl.u32 %v3631, 7
  %v3633 = vsub.s32 %v3630, %v3632
  %v3634 = vrot.slane %v3612, %v3633
  %v3636 = vunpack.c.l.s4 1966171168
  %v3637 = vunpack.c.0.s8 %v3636
  %v3638 = vlaneseq
  %v3639 = vshrl.u32 %v3638, 7
  %v3640 = vsub.s32 %v3637, %v3639
  %v3641 = vrot.slane %v3613, %v3640
  %v3642 = vcombine.high %v3620, %v3620
  %v3643 = vcombine.high %v3627, %v3627
  %v3644 = vcombine.high %v3634, %v3634
  %v3645 = vcombine.high %v3641, %v3641
  %v3646 = vcombine.high %v3594, %v3594
  %v3648 = vunpack.c.l.s4 1966171168
  %v3649 = vunpack.c.0.s8 %v3648
  %v3650 = vlaneseq
  %v3651 = vshrl.u32 %v3650, 7
  %v3652 = vsub.s32 %v3649, %v3651
  %v3653 = vrot.slane %v3594, %v3652
  %v3655 = vunpack.c.l.s4 1966171168
  %v3656 = vunpack.c.0.s8 %v3655
  %v3657 = vlaneseq
  %v3658 = vshrl.u32 %v3657, 7
  %v3659 = vsub.s32 %v3656, %v3658
  %v3660 = vrot.slane %v3646, %v3659
  %v3661 = vcombine.high %v3653, %v3653
  %v3662 = vcombine.high %v3660, %v3660
  %v3664 = vunpack.c.l.s4 1966171168
  %v3665 = vunpack.c.0.s8 %v3664
  %v3666 = vlaneseq
  %v3667 = vshrl.u32 %v3666, 7
  %v3668 = vsub.s32 %v3665, %v3667
  %v3669 = vrot.slane %v3653, %v3668
  %v3671 = vunpack.c.l.s4 1966171168
  %v3672 = vunpack.c.0.s8 %v3671
  %v3673 = vlaneseq
  %v3674 = vshrl.u32 %v3673, 7
  %v3675 = vsub.s32 %v3672, %v3674
  %v3676 = vrot.slane %v3660, %v3675
  %v3678 = vunpack.c.l.s4 1966171168
  %v3679 = vunpack.c.0.s8 %v3678
  %v3680 = vlaneseq
  %v3681 = vshrl.u32 %v3680, 7
  %v3682 = vsub.s32 %v3679, %v3681
  %v3683 = vrot.slane %v3661, %v3682
  %v3685 = vunpack.c.l.s4 1966171168
  %v3686 = vunpack.c.0.s8 %v3685
  %v3687 = vlaneseq
  %v3688 = vshrl.u32 %v3687, 7
  %v3689 = vsub.s32 %v3686, %v3688
  %v3690 = vrot.slane %v3662, %v3689
  %v3691 = vcombine.high %v3669, %v3669
  %v3692 = vcombine.high %v3676, %v3676
  %v3693 = vcombine.high %v3683, %v3683
  %v3694 = vcombine.high %v3690, %v3690
  %v3695 = vlaneseq
  %v3696 = vshrl.u32 %v3695, 7
  %v3697 = vsub.s32 0, %v3696
  %v3698 = vrot.slane %v3620, %v3697
  %v3699 = vlaneseq
  %v3700 = vshrl.u32 %v3699, 7
  %v3701 = vsub.s32 0, %v3700
  %v3702 = vrot.slane %v3634, %v3701
  %v3703 = vlaneseq
  %v3704 = vshrl.u32 %v3703, 7
  %v3705 = vsub.s32 0, %v3704
  %v3706 = vrot.slane %v3642, %v3705
  %v3707 = vlaneseq
  %v3708 = vshrl.u32 %v3707, 7
  %v3709 = vsub.s32 0, %v3708
  %v3710 = vrot.slane %v3644, %v3709
  %v3711 = vlaneseq
  %v3712 = vshrl.u32 %v3711, 7
  %v3713 = vsub.s32 0, %v3712
  %v3714 = vrot.slane %v3627, %v3713
  %v3715 = vlaneseq
  %v3716 = vshrl.u32 %v3715, 7
  %v3717 = vsub.s32 0, %v3716
  %v3718 = vrot.slane %v3641, %v3717
  %v3719 = vlaneseq
  %v3720 = vshrl.u32 %v3719, 7
  %v3721 = vsub.s32 0, %v3720
  %v3722 = vrot.slane %v3643, %v3721
  %v3723 = vlaneseq
  %v3724 = vshrl.u32 %v3723, 7
  %v3725 = vsub.s32 0, %v3724
  %v3726 = vrot.slane %v3645, %v3725
  %v3727 = vlaneseq
  %v3728 = vshrl.u32 %v3727, 7
  %v3729 = vsub.s32 0, %v3728
  %v3730 = vrot.slane %v3669, %v3729
  %v3731 = vlaneseq
  %v3732 = vshrl.u32 %v3731, 7
  %v3733 = vsub.s32 0, %v3732
  %v3734 = vrot.slane %v3683, %v3733
  %v3735 = vlaneseq
  %v3736 = vshrl.u32 %v3735, 7
  %v3737 = vsub.s32 0, %v3736
  %v3738 = vrot.slane %v3691, %v3737
  %v3739 = vlaneseq
  %v3740 = vshrl.u32 %v3739, 7
  %v3741 = vsub.s32 0, %v3740
  %v3742 = vrot.slane %v3693, %v3741
  %v3743 = vlaneseq
  %v3744 = vshrl.u32 %v3743, 7
  %v3745 = vsub.s32 0, %v3744
  %v3746 = vrot.slane %v3676, %v3745
  %v3747 = vlaneseq
  %v3748 = vshrl.u32 %v3747, 7
  %v3749 = vsub.s32 0, %v3748
  %v3750 = vrot.slane %v3690, %v3749
  %v3751 = vlaneseq
  %v3752 = vshrl.u32 %v3751, 7
  %v3753 = vsub.s32 0, %v3752
  %v3754 = vrot.slane %v3692, %v3753
  %v3755 = vlaneseq
  %v3756 = vshrl.u32 %v3755, 7
  %v3757 = vsub.s32 0, %v3756
  %v3758 = vrot.slane %v3694, %v3757
  %v3775 = vmul.f32 %v3275, %v3698
  %v3776 = vmul.f32 %v3280, %v3698
  %v3777 = vmul.f32 %v3285, %v3698
  %v3778 = vmul.f32 %v3290, %v3698
  %v3779 = vmul.f32 %v3295, %v3702
  %v3780 = vmul.f32 %v3300, %v3702
  %v3781 = vmul.f32 %v3305, %v3702
  %v3782 = vmul.f32 %v3310, %v3702
  %v3783 = vmul.f32 %v3315, %v3706
  %v3784 = vmul.f32 %v3320, %v3706
  %v3785 = vmul.f32 %v3325, %v3706
  %v3786 = vmul.f32 %v3330, %v3706
  %v3787 = vmul.f32 %v3335, %v3710
  %v3788 = vmul.f32 %v3340, %v3710
  %v3789 = vmul.f32 %v3345, %v3710
  %v3790 = vmul.f32 %v3350, %v3710
  %v3791 = vmul.f32 %v3355, %v3714
  %v3792 = vmul.f32 %v3360, %v3714
  %v3793 = vmul.f32 %v3365, %v3714
  %v3794 = vmul.f32 %v3370, %v3714
  %v3795 = vmul.f32 %v3375, %v3718
  %v3796 = vmul.f32 %v3380, %v3718
  %v3797 = vmul.f32 %v3385, %v3718
  %v3798 = vmul.f32 %v3390, %v3718
  %v3799 = vmul.f32 %v3395, %v3722
  %v3800 = vmul.f32 %v3400, %v3722
  %v3801 = vmul.f32 %v3405, %v3722
  %v3802 = vmul.f32 %v3410, %v3722
  %v3803 = vmul.f32 %v3415, %v3726
  %v3804 = vmul.f32 %v3420, %v3726
  %v3805 = vmul.f32 %v3425, %v3726
  %v3806 = vmul.f32 %v3430, %v3726
  %v3807 = vmul.f32 %v3435, %v3730
  %v3808 = vmul.f32 %v3440, %v3730
  %v3809 = vmul.f32 %v3445, %v3730
  %v3810 = vmul.f32 %v3450, %v3730
  %v3811 = vmul.f32 %v3455, %v3734
  %v3812 = vmul.f32 %v3460, %v3734
  %v3813 = vmul.f32 %v3465, %v3734
  %v3814 = vmul.f32 %v3470, %v3734
  %v3815 = vmul.f32 %v3475, %v3738
  %v3816 = vmul.f32 %v3480, %v3738
  %v3817 = vmul.f32 %v3485, %v3738
  %v3818 = vmul.f32 %v3490, %v3738
  %v3819 = vmul.f32 %v3495, %v3742
  %v3820 = vmul.f32 %v3500, %v3742
  %v3821 = vmul.f32 %v3505, %v3742
  %v3822 = vmul.f32 %v3510, %v3742
  %v3823 = vmul.f32 %v3515, %v3746
  %v3824 = vmul.f32 %v3520, %v3746
  %v3825 = vmul.f32 %v3525, %v3746
  %v3826 = vmul.f32 %v3530, %v3746
  %v3827 = vmul.f32 %v3535, %v3750
  %v3828 = vmul.f32 %v3540, %v3750
  %v3829 = vmul.f32 %v3545, %v3750
  %v3830 = vmul.f32 %v3550, %v3750
  %v3831 = vmul.f32 %v3555, %v3754
  %v3832 = vmul.f32 %v3560, %v3754
  %v3833 = vmul.f32 %v3565, %v3754
  %v3834 = vmul.f32 %v3570, %v3754
  %v3835 = vmul.f32 %v3575, %v3758
  %v3836 = vmul.f32 %v3580, %v3758
  %v3837 = vmul.f32 %v3585, %v3758
  %v3838 = vmul.f32 %v3590, %v3758
  %v3839 = vsel %vm223, %v3775, 0.0
  %v3840 = vsel %vm223, %v3779, 0.0
  %v3841 = vadd.f32 %v3839, %v3840
  %v3842 = vsel %vm223, %v3783, 0.0
  %v3843 = vadd.f32 %v3841, %v3842
  %v3844 = vsel %vm223, %v3787, 0.0
  %v3845 = vadd.f32 %v3843, %v3844
  %v3846 = vsel %vm223, %v3791, 0.0
  %v3847 = vadd.f32 %v3845, %v3846
  %v3848 = vsel %vm223, %v3795, 0.0
  %v3849 = vadd.f32 %v3847, %v3848
  %v3850 = vsel %vm223, %v3799, 0.0
  %v3851 = vadd.f32 %v3849, %v3850
  %v3852 = vsel %vm223, %v3803, 0.0
  %v3853 = vadd.f32 %v3851, %v3852
  %v3854 = vsel %vm223, %v3807, 0.0
  %v3855 = vadd.f32 %v3853, %v3854
  %v3856 = vsel %vm223, %v3811, 0.0
  %v3857 = vadd.f32 %v3855, %v3856
  %v3858 = vsel %vm223, %v3815, 0.0
  %v3859 = vadd.f32 %v3857, %v3858
  %v3860 = vsel %vm223, %v3819, 0.0
  %v3861 = vadd.f32 %v3859, %v3860
  %v3862 = vsel %vm223, %v3823, 0.0
  %v3863 = vadd.f32 %v3861, %v3862
  %v3864 = vsel %vm223, %v3827, 0.0
  %v3865 = vadd.f32 %v3863, %v3864
  %v3866 = vsel %vm223, %v3831, 0.0
  %v3867 = vadd.f32 %v3865, %v3866
  %v3868 = vsel %vm223, %v3835, 0.0
  %v3869 = vadd.f32 %v3867, %v3868
  %v3870 = vsel %vm223, %v3776, 0.0
  %v3871 = vsel %vm223, %v3780, 0.0
  %v3872 = vadd.f32 %v3870, %v3871
  %v3873 = vsel %vm223, %v3784, 0.0
  %v3874 = vadd.f32 %v3872, %v3873
  %v3875 = vsel %vm223, %v3788, 0.0
  %v3876 = vadd.f32 %v3874, %v3875
  %v3877 = vsel %vm223, %v3792, 0.0
  %v3878 = vadd.f32 %v3876, %v3877
  %v3879 = vsel %vm223, %v3796, 0.0
  %v3880 = vadd.f32 %v3878, %v3879
  %v3881 = vsel %vm223, %v3800, 0.0
  %v3882 = vadd.f32 %v3880, %v3881
  %v3883 = vsel %vm223, %v3804, 0.0
  %v3884 = vadd.f32 %v3882, %v3883
  %v3885 = vsel %vm223, %v3808, 0.0
  %v3886 = vadd.f32 %v3884, %v3885
  %v3887 = vsel %vm223, %v3812, 0.0
  %v3888 = vadd.f32 %v3886, %v3887
  %v3889 = vsel %vm223, %v3816, 0.0
  %v3890 = vadd.f32 %v3888, %v3889
  %v3891 = vsel %vm223, %v3820, 0.0
  %v3892 = vadd.f32 %v3890, %v3891
  %v3893 = vsel %vm223, %v3824, 0.0
  %v3894 = vadd.f32 %v3892, %v3893
  %v3895 = vsel %vm223, %v3828, 0.0
  %v3896 = vadd.f32 %v3894, %v3895
  %v3897 = vsel %vm223, %v3832, 0.0
  %v3898 = vadd.f32 %v3896, %v3897
  %v3899 = vsel %vm223, %v3836, 0.0
  %v3900 = vadd.f32 %v3898, %v3899
  %v3901 = vsel %vm223, %v3777, 0.0
  %v3902 = vsel %vm223, %v3781, 0.0
  %v3903 = vadd.f32 %v3901, %v3902
  %v3904 = vsel %vm223, %v3785, 0.0
  %v3905 = vadd.f32 %v3903, %v3904
  %v3906 = vsel %vm223, %v3789, 0.0
  %v3907 = vadd.f32 %v3905, %v3906
  %v3908 = vsel %vm223, %v3793, 0.0
  %v3909 = vadd.f32 %v3907, %v3908
  %v3910 = vsel %vm223, %v3797, 0.0
  %v3911 = vadd.f32 %v3909, %v3910
  %v3912 = vsel %vm223, %v3801, 0.0
  %v3913 = vadd.f32 %v3911, %v3912
  %v3914 = vsel %vm223, %v3805, 0.0
  %v3915 = vadd.f32 %v3913, %v3914
  %v3916 = vsel %vm223, %v3809, 0.0
  %v3917 = vadd.f32 %v3915, %v3916
  %v3918 = vsel %vm223, %v3813, 0.0
  %v3919 = vadd.f32 %v3917, %v3918
  %v3920 = vsel %vm223, %v3817, 0.0
  %v3921 = vadd.f32 %v3919, %v3920
  %v3922 = vsel %vm223, %v3821, 0.0
  %v3923 = vadd.f32 %v3921, %v3922
  %v3924 = vsel %vm223, %v3825, 0.0
  %v3925 = vadd.f32 %v3923, %v3924
  %v3926 = vsel %vm223, %v3829, 0.0
  %v3927 = vadd.f32 %v3925, %v3926
  %v3928 = vsel %vm223, %v3833, 0.0
  %v3929 = vadd.f32 %v3927, %v3928
  %v3930 = vsel %vm223, %v3837, 0.0
  %v3931 = vadd.f32 %v3929, %v3930
  %v3932 = vsel %vm223, %v3778, 0.0
  %v3933 = vsel %vm223, %v3782, 0.0
  %v3934 = vadd.f32 %v3932, %v3933
  %v3935 = vsel %vm223, %v3786, 0.0
  %v3936 = vadd.f32 %v3934, %v3935
  %v3937 = vsel %vm223, %v3790, 0.0
  %v3938 = vadd.f32 %v3936, %v3937
  %v3939 = vsel %vm223, %v3794, 0.0
  %v3940 = vadd.f32 %v3938, %v3939
  %v3941 = vsel %vm223, %v3798, 0.0
  %v3942 = vadd.f32 %v3940, %v3941
  %v3943 = vsel %vm223, %v3802, 0.0
  %v3944 = vadd.f32 %v3942, %v3943
  %v3945 = vsel %vm223, %v3806, 0.0
  %v3946 = vadd.f32 %v3944, %v3945
  %v3947 = vsel %vm223, %v3810, 0.0
  %v3948 = vadd.f32 %v3946, %v3947
  %v3949 = vsel %vm223, %v3814, 0.0
  %v3950 = vadd.f32 %v3948, %v3949
  %v3951 = vsel %vm223, %v3818, 0.0
  %v3952 = vadd.f32 %v3950, %v3951
  %v3953 = vsel %vm223, %v3822, 0.0
  %v3954 = vadd.f32 %v3952, %v3953
  %v3955 = vsel %vm223, %v3826, 0.0
  %v3956 = vadd.f32 %v3954, %v3955
  %v3957 = vsel %vm223, %v3830, 0.0
  %v3958 = vadd.f32 %v3956, %v3957
  %v3959 = vsel %vm223, %v3834, 0.0
  %v3960 = vadd.f32 %v3958, %v3959
  %v3961 = vsel %vm223, %v3838, 0.0
  %v3962 = vadd.f32 %v3960, %v3961
  %v3963 = vld [vmem:[%s2 + $0x2f1] sm:$0x1]
  %v3964 = vlaneseq
  %v3965 = vshrl.u32 %v3964, 7
  %v3966 = vsub.s32 0, %v3965
  %v3967 = vrot.slane %v3963, %v3966
  %v3968 = vmul.f32 %v3204, %v3967
  %v3969 = vmul.f32 %v3205, %v3967
  %v3970 = vmul.f32 %v3206, %v3967
  %v3971 = vmul.f32 %v3207, %v3967
  %v3972 = vadd.f32 %v3869, %v3968
  %v3973 = vadd.f32 %v3900, %v3969
  %v3974 = vadd.f32 %v3931, %v3970
  %v3975 = vadd.f32 %v3962, %v3971
  %v3976 = vmul.f32 %v3972, %v2720
  %v3977 = vmul.f32 %v3973, %v2721
  %v3978 = vmul.f32 %v3974, %v2722
  %v3979 = vmul.f32 %v3975, %v2723
  %v3980 = vld [vmem:[%s2 + $0x258] sm:$0xff]
  %v3981 = vld [vmem:[%s2 + $0x260] sm:$0xff]
  %v3982 = vld [vmem:[%s2 + $0x268] sm:$0xff]
  %v3983 = vld [vmem:[%s2 + $0x270] sm:$0xff]
  %v3984 = vld [vmem:[%s2 + $0x2f2] sm:$0x1]
  %v3985 = vlaneseq
  %v3986 = vshrl.u32 %v3985, 7
  %v3987 = vsub.s32 0, %v3986
  %v3988 = vrot.slane %v3984, %v3987
  %v3990 = vsel %vm223, %v3976, 0
  %v3993 = vsel %vm223, %v3977, 0
  %v3996 = vsel %vm223, %v3978, 0
  %v3999 = vsel %vm223, %v3979, 0
  %4001 = vmatprep.subr.mxu0 0.0
  %4002 = vmatpush1.msra.mxu0 %v3980
  %4003 = vmatprep.subr.mxu0 0.0
  %4004 = vmatpush1.msra.mxu0 %v3981
  %4005 = vmatprep.subr.mxu0 0.0
  %4006 = vmatpush1.msra.mxu0 %v3982
  %4007 = vmatprep.subr.mxu0 0.0
  %4008 = vmatpush1.msra.mxu0 %v3983
  %4009 = vmatprep.subr.mxu0 0.0
  %4010 = vmatpush1.msra.mxu0 0.0
  %4011 = vmatprep.subr.mxu0 0.0
  %4012 = vmatpush1.msra.mxu0 0.0
  %4013 = vmatprep.subr.mxu0 0.0
  %4014 = vmatpush1.msra.mxu0 0.0
  %4015 = vmatprep.subr.mxu0 0.0
  %4016 = vmatpush1.msra.mxu0 0.0
  %4017 = vmatprep.subr.mxu0 0.0
  %4018 = vmatpush1.msra.mxu0 0.0
  %4019 = vmatprep.subr.mxu0 0.0
  %4020 = vmatpush1.msra.mxu0 0.0
  %4021 = vmatprep.subr.mxu0 0.0
  %4022 = vmatpush1.msra.mxu0 0.0
  %4023 = vmatprep.subr.mxu0 0.0
  %4024 = vmatpush1.msra.mxu0 0.0
  %4025 = vmatprep.subr.mxu0 0.0
  %4026 = vmatpush1.msra.mxu0 0.0
  %4027 = vmatprep.subr.mxu0 0.0
  %4028 = vmatpush1.msra.mxu0 0.0
  %4029 = vmatprep.subr.mxu0 0.0
  %4030 = vmatpush1.msra.mxu0 0.0
  %4031 = vmatprep.subr.mxu0 0.0
  %4032 = vmatpush1.msra.mxu0 0.0
  %4033 = vmatprep.subr.mxu0 0.0
  %4034 = vmatpush1.msra.mxu0 0.0
  %4035 = vmatprep.subr.mxu0 0.0
  %4036 = vmatpush1.msra.mxu0 0.0
  %4037 = vmatprep.subr.mxu0 0.0
  %4038 = vmatpush1.msra.mxu0 0.0
  %4039 = vmatprep.subr.mxu0 0.0
  %4040 = vmatpush1.msra.mxu0 0.0
  %4041 = vmatprep.subr.mxu0 0.0
  %4042 = vmatpush1.msra.mxu0 0.0
  %4043 = vmatprep.subr.mxu0 0.0
  %4044 = vmatpush1.msra.mxu0 0.0
  %4045 = vmatprep.subr.mxu0 0.0
  %4046 = vmatpush1.msra.mxu0 0.0
  %4047 = vmatprep.subr.mxu0 0.0
  %4048 = vmatpush1.msra.mxu0 0.0
  %4049 = vmatprep.subr.mxu0 0.0
  %4050 = vmatpush1.msra.mxu0 0.0
  %4051 = vmatprep.subr.mxu0 0.0
  %4052 = vmatpush1.msra.mxu0 0.0
  %4053 = vmatprep.subr.mxu0 0.0
  %4054 = vmatpush1.msra.mxu0 0.0
  %4055 = vmatprep.subr.mxu0 0.0
  %4056 = vmatpush1.msra.mxu0 0.0
  %4057 = vmatprep.subr.mxu0 0.0
  %4058 = vmatpush1.msra.mxu0 0.0
  %4059 = vmatprep.subr.mxu0 0.0
  %4060 = vmatpush1.msra.mxu0 0.0
  %4061 = vmatprep.subr.mxu0 0.0
  %4062 = vmatpush1.msra.mxu0 0.0
  %4063 = vmatprep.subr.mxu0 0.0
  %4064 = vmatpush1.msra.mxu0 0.0
  %4065 = vmatprep.mubr.f32.mxu0 0.0
  %4066 = vmatmul.mubr.f32.gmra.mrb[0].mxu0 %v3990
  %v4067 = vpop.f32.mrb[0].mxu0
  %v4068 = vadd.f32 %v3988, %v4067
  %v4069 = vpop.f32.mrb[0].mxu0
  %4070 = vmatprep.mubr.f32.mxu0 0.0
  %4071 = vmatmul.mubr.f32.gmra.mrb[0].mxu0 %v3993
  %v4072 = vpop.f32.mrb[0].mxu0
  %v4073 = vadd.f32 %v3988, %v4072
  %v4074 = vpop.f32.mrb[0].mxu0
  %4075 = vmatprep.mubr.f32.mxu0 0.0
  %4076 = vmatmul.mubr.f32.gmra.mrb[0].mxu0 %v3996
  %v4077 = vpop.f32.mrb[0].mxu0
  %v4078 = vadd.f32 %v3988, %v4077
  %v4079 = vpop.f32.mrb[0].mxu0
  %4080 = vmatprep.mubr.f32.mxu0 0.0
  %4081 = vmatmul.mubr.f32.gmra.mrb[0].mxu0 %v3999
  %v4082 = vpop.f32.mrb[0].mxu0
  %v4083 = vadd.f32 %v3988, %v4082
  %v4084 = vpop.f32.mrb[0].mxu0
  %4085 = vdwg.mxu0
  %v4086 = vadd.f32 %v4068, %v2402
  %v4087 = vadd.f32 %v4073, %v2403
  %v4088 = vadd.f32 %v4078, %v2404
  %v4089 = vadd.f32 %v4083, %v2405
  %v4090 = vld [vmem:[%s2 + $0x2f3] sm:$0x1]
  %v4091 = vld [vmem:[%s2 + $0x2f4] sm:$0x1]
  %v4092 = vsel %vm223, %v4086, 0.0
  %4093 = vadd.xlane.f32.xlu0 %v4092
  %v4094 = vpop.xlane.xlu0 %4093
  %v4095 = vsel %vm223, %v4087, 0.0
  %4096 = vadd.xlane.f32.xlu0 %v4095
  %v4097 = vpop.xlane.xlu0 %4096
  %v4098 = vsel %vm223, %v4088, 0.0
  %4099 = vadd.xlane.f32.xlu0 %v4098
  %v4100 = vpop.xlane.xlu0 %4099
  %v4101 = vsel %vm223, %v4089, 0.0
  %4102 = vadd.xlane.f32.xlu0 %v4101
  %v4103 = vpop.xlane.xlu0 %4102
  %v4104 = vmul.f32 %v4094, %v236
  %v4105 = vmul.f32 %v4097, %v236
  %v4106 = vmul.f32 %v4100, %v236
  %v4107 = vmul.f32 %v4103, %v236
  %v4108 = vsub.f32 %v4086, %v4104
  %v4109 = vsub.f32 %v4087, %v4105
  %v4110 = vsub.f32 %v4088, %v4106
  %v4111 = vsub.f32 %v4089, %v4107
  %v4112 = vmul.f32 %v4108, %v4108
  %v4113 = vmul.f32 %v4109, %v4109
  %v4114 = vmul.f32 %v4110, %v4110
  %v4115 = vmul.f32 %v4111, %v4111
  %v4116 = vsel %vm223, %v4112, 0.0
  %4117 = vadd.xlane.f32.xlu0 %v4116
  %v4118 = vpop.xlane.xlu0 %4117
  %v4119 = vsel %vm223, %v4113, 0.0
  %4120 = vadd.xlane.f32.xlu0 %v4119
  %v4121 = vpop.xlane.xlu0 %4120
  %v4122 = vsel %vm223, %v4114, 0.0
  %4123 = vadd.xlane.f32.xlu0 %v4122
  %v4124 = vpop.xlane.xlu0 %4123
  %v4125 = vsel %vm223, %v4115, 0.0
  %4126 = vadd.xlane.f32.xlu0 %v4125
  %v4127 = vpop.xlane.xlu0 %4126
  %v4128 = vmul.f32 %v4118, %v236
  %v4129 = vmul.f32 %v4121, %v236
  %v4130 = vmul.f32 %v4124, %v236
  %v4131 = vmul.f32 %v4127, %v236
  %v4132 = vadd.f32 %v4128, 1e-05
  %v4133 = vadd.f32 %v4129, 1e-05
  %v4134 = vadd.f32 %v4130, 1e-05
  %v4135 = vadd.f32 %v4131, 1e-05
  %v4136 = vrsqrt.pop %v4132
  %v4137 = vrsqrt.pop %v4133
  %v4138 = vrsqrt.pop %v4134
  %v4139 = vrsqrt.pop %v4135
  %v4140 = vmul.f32 %v4108, %v4136
  %v4141 = vmul.f32 %v4109, %v4137
  %v4142 = vmul.f32 %v4110, %v4138
  %v4143 = vmul.f32 %v4111, %v4139
  %v4144 = vlaneseq
  %v4145 = vshrl.u32 %v4144, 7
  %v4146 = vsub.s32 0, %v4145
  %v4147 = vrot.slane %v4090, %v4146
  %v4148 = vmul.f32 %v4140, %v4147
  %v4149 = vmul.f32 %v4141, %v4147
  %v4150 = vmul.f32 %v4142, %v4147
  %v4151 = vmul.f32 %v4143, %v4147
  %v4152 = vlaneseq
  %v4153 = vshrl.u32 %v4152, 7
  %v4154 = vsub.s32 0, %v4153
  %v4155 = vrot.slane %v4091, %v4154
  %v4156 = vadd.f32 %v4148, %v4155
  %v4157 = vadd.f32 %v4149, %v4155
  %v4158 = vadd.f32 %v4150, %v4155
  %v4159 = vadd.f32 %v4151, %v4155
  %v4160 = vpack.c.bf16 %v4157, %v4156
  %v4161 = vpack.c.bf16 %v4159, %v4158
  %s4162 = scalar_lea.vmem %s5, 16
  %v4163 = vld [vmem:[%s4162] sm:$0xf]
  %v4164 = vld [vmem:[%s4162 + $0x4] sm:$0xf]
  %v4165 = vld [vmem:[%s4162 + $0x8] sm:$0xf]
  %v4166 = vld [vmem:[%s4162 + $0xc] sm:$0xf]
  %v4167 = vld [vmem:[%s3 + $0x1] sm:$0x1]
  %v4168 = vlaneseq
  %v4169 = vshrl.u32 %v4168, 7
  %v4170 = vsub.s32 0, %v4169
  %v4171 = vrot.slane %v4167, %v4170
  %v4176 = vunpack.c.l.b16 %v4163
  %v4177 = vunpack.c.l.b16 %v4164
  %v4178 = vunpack.c.l.b16 %v4165
  %v4179 = vunpack.c.l.b16 %v4166
  %v4180 = vpack.c.b16 %v4177, %v4176
  %v4181 = vpack.c.b16 %v4179, %v4178
  %v4185 = vsel %vm223, %v4160, 0
  %v4188 = vsel %vm223, %v4161, 0
  %4190 = vmatprep.subr.bf16.mxu0 0
  %4191 = vmatpush1.bf16.msra.mxu0 %v4180
  %4192 = vmatprep.subr.bf16.mxu0 0
  %4193 = vmatpush1.bf16.msra.mxu0 %v4181
  %4194 = vmatprep.subr.bf16.mxu0 0
  %4195 = vmatpush1.bf16.msra.mxu0 0
  %4196 = vmatprep.subr.bf16.mxu0 0
  %4197 = vmatpush1.bf16.msra.mxu0 0
  %4198 = vmatprep.subr.bf16.mxu0 0
  %4199 = vmatpush1.bf16.msra.mxu0 0
  %4200 = vmatprep.subr.bf16.mxu0 0
  %4201 = vmatpush1.bf16.msra.mxu0 0
  %4202 = vmatprep.subr.bf16.mxu0 0
  %4203 = vmatpush1.bf16.msra.mxu0 0
  %4204 = vmatprep.subr.bf16.mxu0 0
  %4205 = vmatpush1.bf16.msra.mxu0 0
  %4206 = vmatprep.subr.bf16.mxu0 0
  %4207 = vmatpush1.bf16.msra.mxu0 0
  %4208 = vmatprep.subr.bf16.mxu0 0
  %4209 = vmatpush1.bf16.msra.mxu0 0
  %4210 = vmatprep.subr.bf16.mxu0 0
  %4211 = vmatpush1.bf16.msra.mxu0 0
  %4212 = vmatprep.subr.bf16.mxu0 0
  %4213 = vmatpush1.bf16.msra.mxu0 0
  %4214 = vmatprep.subr.bf16.mxu0 0
  %4215 = vmatpush1.bf16.msra.mxu0 0
  %4216 = vmatprep.subr.bf16.mxu0 0
  %4217 = vmatpush1.bf16.msra.mxu0 0
  %4218 = vmatprep.subr.bf16.mxu0 0
  %4219 = vmatpush1.bf16.msra.mxu0 0
  %4220 = vmatprep.subr.bf16.mxu0 0
  %4221 = vmatpush1.bf16.msra.mxu0 0
  %4222 = vmatprep.mubr.bf16.mxu0 0
  %4223 = vmatmul.mubr.bf16.gmra.mrb[0].mxu0 %v4185
  %v4224 = vpop.f32.mrb[0].mxu0
  %v4225 = vadd.f32 %v4171, %v4224
  %v4226 = vpop.f32.mrb[0].mxu0
  %v4227 = vpop.f32.mrb[0].mxu0
  %v4228 = vadd.f32 %v4171, %v4227
  %v4229 = vpop.f32.mrb[0].mxu0
  %4230 = vmatprep.mubr.bf16.mxu0 0
  %4231 = vmatmul.mubr.bf16.gmra.mrb[0].mxu0 %v4188
  %v4232 = vpop.f32.mrb[0].mxu0
  %v4233 = vadd.f32 %v4171, %v4232
  %v4234 = vpop.f32.mrb[0].mxu0
  %v4235 = vpop.f32.mrb[0].mxu0
  %v4236 = vadd.f32 %v4171, %v4235
  %v4237 = vpop.f32.mrb[0].mxu0
  %4238 = vdwg.mxu0
  %v4239 = vmul.f32 %v4225, %v4225
  %v4240 = vmul.f32 %v4228, %v4228
  %v4241 = vmul.f32 %v4233, %v4233
  %v4242 = vmul.f32 %v4236, %v4236
  %v4243 = vmul.f32 %v4225, %v4239
  %v4244 = vmul.f32 %v4228, %v4240
  %v4245 = vmul.f32 %v4233, %v4241
  %v4246 = vmul.f32 %v4236, %v4242
  %v4247 = vmul.f32 %v4243, 0.044715
  %v4248 = vmul.f32 %v4244, 0.044715
  %v4249 = vmul.f32 %v4245, 0.044715
  %v4250 = vmul.f32 %v4246, 0.044715
  %v4251 = vadd.f32 %v4225, %v4247
  %v4252 = vadd.f32 %v4228, %v4248
  %v4253 = vadd.f32 %v4233, %v4249
  %v4254 = vadd.f32 %v4236, %v4250
  %v4255 = vmul.f32 %v4251, 0.7978846
  %v4256 = vmul.f32 %v4252, 0.7978846
  %v4257 = vmul.f32 %v4253, 0.7978846
  %v4258 = vmul.f32 %v4254, 0.7978846
  %v4259 = vtanh.pop %v4255
  %v4260 = vtanh.pop %v4256
  %v4261 = vtanh.pop %v4257
  %v4262 = vtanh.pop %v4258
  %v4263 = vadd.f32 %v4259, 1.0
  %v4264 = vadd.f32 %v4260, 1.0
  %v4265 = vadd.f32 %v4261, 1.0
  %v4266 = vadd.f32 %v4262, 1.0
  %v4267 = vmul.f32 %v4263, 0.5
  %v4268 = vmul.f32 %v4264, 0.5
  %v4269 = vmul.f32 %v4265, 0.5
  %v4270 = vmul.f32 %v4266, 0.5
  %v4271 = vmul.f32 %v4225, %v4267
  %v4272 = vmul.f32 %v4228, %v4268
  %v4273 = vmul.f32 %v4233, %v4269
  %v4274 = vmul.f32 %v4236, %v4270
  %v4275 = vpack.c.bf16 %v4272, %v4271
  %v4276 = vpack.c.bf16 %v4274, %v4273
  %s4277 = scalar_lea.vmem %s6, 64
  %v4278 = vld [vmem:[%s4277] sm:$0xf]
  %v4279 = vld [vmem:[%s4277 + $0x4] sm:$0xf]
  %v4280 = vld [vmem:[%s4277 + $0x8] sm:$0xf]
  %v4281 = vld [vmem:[%s4277 + $0xc] sm:$0xf]
  %v4282 = vld [vmem:[%s4277 + $0x10] sm:$0xf]
  %v4283 = vld [vmem:[%s4277 + $0x14] sm:$0xf]
  %v4284 = vld [vmem:[%s4277 + $0x18] sm:$0xf]
  %v4285 = vld [vmem:[%s4277 + $0x1c] sm:$0xf]
  %v4286 = vld [vmem:[%s4277 + $0x20] sm:$0xf]
  %v4287 = vld [vmem:[%s4277 + $0x24] sm:$0xf]
  %v4288 = vld [vmem:[%s4277 + $0x28] sm:$0xf]
  %v4289 = vld [vmem:[%s4277 + $0x2c] sm:$0xf]
  %v4290 = vld [vmem:[%s4277 + $0x30] sm:$0xf]
  %v4291 = vld [vmem:[%s4277 + $0x34] sm:$0xf]
  %v4292 = vld [vmem:[%s4277 + $0x38] sm:$0xf]
  %v4293 = vld [vmem:[%s4277 + $0x3c] sm:$0xf]
  %v4294 = vld [vmem:[%s2 + $0x2f5] sm:$0x1]
  %v4295 = vlaneseq
  %v4296 = vshrl.u32 %v4295, 7
  %v4297 = vsub.s32 0, %v4296
  %v4298 = vrot.slane %v4294, %v4297
  %v4315 = vunpack.c.l.b16 %v4278
  %v4316 = vunpack.c.l.b16 %v4279
  %v4317 = vunpack.c.l.b16 %v4280
  %v4318 = vunpack.c.l.b16 %v4281
  %v4319 = vunpack.c.l.b16 %v4282
  %v4320 = vunpack.c.l.b16 %v4283
  %v4321 = vunpack.c.l.b16 %v4284
  %v4322 = vunpack.c.l.b16 %v4285
  %v4323 = vunpack.c.l.b16 %v4286
  %v4324 = vunpack.c.l.b16 %v4287
  %v4325 = vunpack.c.l.b16 %v4288
  %v4326 = vunpack.c.l.b16 %v4289
  %v4327 = vunpack.c.l.b16 %v4290
  %v4328 = vunpack.c.l.b16 %v4291
  %v4329 = vunpack.c.l.b16 %v4292
  %v4330 = vunpack.c.l.b16 %v4293
  %v4331 = vpack.c.b16 %v4316, %v4315
  %v4332 = vpack.c.b16 %v4318, %v4317
  %v4333 = vpack.c.b16 %v4320, %v4319
  %v4334 = vpack.c.b16 %v4322, %v4321
  %v4335 = vpack.c.b16 %v4324, %v4323
  %v4336 = vpack.c.b16 %v4326, %v4325
  %v4337 = vpack.c.b16 %v4328, %v4327
  %v4338 = vpack.c.b16 %v4330, %v4329
  %4347 = vmatprep.subr.bf16.mxu0 0
  %4348 = vmatpush1.bf16.msra.mxu0 %v4331
  %4349 = vmatprep.subr.bf16.mxu0 0
  %4350 = vmatpush1.bf16.msra.mxu0 %v4332
  %4351 = vmatprep.subr.bf16.mxu0 0
  %4352 = vmatpush1.bf16.msra.mxu0 %v4333
  %4353 = vmatprep.subr.bf16.mxu0 0
  %4354 = vmatpush1.bf16.msra.mxu0 %v4334
  %4355 = vmatprep.subr.bf16.mxu0 0
  %4356 = vmatpush1.bf16.msra.mxu0 %v4335
  %4357 = vmatprep.subr.bf16.mxu0 0
  %4358 = vmatpush1.bf16.msra.mxu0 %v4336
  %4359 = vmatprep.subr.bf16.mxu0 0
  %4360 = vmatpush1.bf16.msra.mxu0 %v4337
  %4361 = vmatprep.subr.bf16.mxu0 0
  %4362 = vmatpush1.bf16.msra.mxu0 %v4338
  %4363 = vmatprep.subr.bf16.mxu0 0
  %4364 = vmatpush1.bf16.msra.mxu0 0
  %4365 = vmatprep.subr.bf16.mxu0 0
  %4366 = vmatpush1.bf16.msra.mxu0 0
  %4367 = vmatprep.subr.bf16.mxu0 0
  %4368 = vmatpush1.bf16.msra.mxu0 0
  %4369 = vmatprep.subr.bf16.mxu0 0
  %4370 = vmatpush1.bf16.msra.mxu0 0
  %4371 = vmatprep.subr.bf16.mxu0 0
  %4372 = vmatpush1.bf16.msra.mxu0 0
  %4373 = vmatprep.subr.bf16.mxu0 0
  %4374 = vmatpush1.bf16.msra.mxu0 0
  %4375 = vmatprep.subr.bf16.mxu0 0
  %4376 = vmatpush1.bf16.msra.mxu0 0
  %4377 = vmatprep.subr.bf16.mxu0 0
  %4378 = vmatpush1.bf16.msra.mxu0 0
  %4379 = vmatprep.mubr.bf16.mxu0 0
  %4380 = vmatmul.mubr.bf16.gmra.mrb[0].mxu0 %v4275
  %v4381 = vpop.f32.mrb[0].mxu0
  %v4382 = vadd.f32 %v4298, %v4381
  %v4383 = vpop.f32.mrb[0].mxu0
  %v4384 = vpop.f32.mrb[0].mxu0
  %v4385 = vadd.f32 %v4298, %v4384
  %v4386 = vpop.f32.mrb[0].mxu0
  %4387 = vmatprep.mubr.bf16.mxu0 0
  %4388 = vmatmul.mubr.bf16.gmra.mrb[0].mxu0 %v4276
  %v4389 = vpop.f32.mrb[0].mxu0
  %v4390 = vadd.f32 %v4298, %v4389
  %v4391 = vpop.f32.mrb[0].mxu0
  %v4392 = vpop.f32.mrb[0].mxu0
  %v4393 = vadd.f32 %v4298, %v4392
  %v4394 = vpop.f32.mrb[0].mxu0
  %4395 = vdwg.mxu0
  %v4396 = vadd.f32 %v4382, %v4086
  %v4397 = vadd.f32 %v4385, %v4087
  %v4398 = vadd.f32 %v4390, %v4088
  %v4399 = vadd.f32 %v4393, %v4089
  %v4400 = vld [vmem:[%s2 + $0x2f8] sm:$0x1]
  %v4401 = vld [vmem:[%s2 + $0x2f9] sm:$0x1]
  %v4402 = vsel %vm223, %v4396, 0.0
  %4403 = vadd.xlane.f32.xlu0 %v4402
  %v4404 = vpop.xlane.xlu0 %4403
  %v4405 = vsel %vm223, %v4397, 0.0
  %4406 = vadd.xlane.f32.xlu0 %v4405
  %v4407 = vpop.xlane.xlu0 %4406
  %v4408 = vsel %vm223, %v4398, 0.0
  %4409 = vadd.xlane.f32.xlu0 %v4408
  %v4410 = vpop.xlane.xlu0 %4409
  %v4411 = vsel %vm223, %v4399, 0.0
  %4412 = vadd.xlane.f32.xlu0 %v4411
  %v4413 = vpop.xlane.xlu0 %4412
  %v4414 = vmul.f32 %v4404, %v236
  %v4415 = vmul.f32 %v4407, %v236
  %v4416 = vmul.f32 %v4410, %v236
  %v4417 = vmul.f32 %v4413, %v236
  %v4418 = vsub.f32 %v4396, %v4414
  %v4419 = vsub.f32 %v4397, %v4415
  %v4420 = vsub.f32 %v4398, %v4416
  %v4421 = vsub.f32 %v4399, %v4417
  %v4422 = vmul.f32 %v4418, %v4418
  %v4423 = vmul.f32 %v4419, %v4419
  %v4424 = vmul.f32 %v4420, %v4420
  %v4425 = vmul.f32 %v4421, %v4421
  %v4426 = vsel %vm223, %v4422, 0.0
  %4427 = vadd.xlane.f32.xlu0 %v4426
  %v4428 = vpop.xlane.xlu0 %4427
  %v4429 = vsel %vm223, %v4423, 0.0
  %4430 = vadd.xlane.f32.xlu0 %v4429
  %v4431 = vpop.xlane.xlu0 %4430
  %v4432 = vsel %vm223, %v4424, 0.0
  %4433 = vadd.xlane.f32.xlu0 %v4432
  %v4434 = vpop.xlane.xlu0 %4433
  %v4435 = vsel %vm223, %v4425, 0.0
  %4436 = vadd.xlane.f32.xlu0 %v4435
  %v4437 = vpop.xlane.xlu0 %4436
  %v4438 = vmul.f32 %v4428, %v236
  %v4439 = vmul.f32 %v4431, %v236
  %v4440 = vmul.f32 %v4434, %v236
  %v4441 = vmul.f32 %v4437, %v236
  %v4442 = vadd.f32 %v4438, 1e-05
  %v4443 = vadd.f32 %v4439, 1e-05
  %v4444 = vadd.f32 %v4440, 1e-05
  %v4445 = vadd.f32 %v4441, 1e-05
  %v4446 = vrsqrt.pop %v4442
  %v4447 = vrsqrt.pop %v4443
  %v4448 = vrsqrt.pop %v4444
  %v4449 = vrsqrt.pop %v4445
  %v4450 = vmul.f32 %v4418, %v4446
  %v4451 = vmul.f32 %v4419, %v4447
  %v4452 = vmul.f32 %v4420, %v4448
  %v4453 = vmul.f32 %v4421, %v4449
  %v4454 = vlaneseq
  %v4455 = vshrl.u32 %v4454, 7
  %v4456 = vsub.s32 0, %v4455
  %v4457 = vrot.slane %v4400, %v4456
  %v4458 = vmul.f32 %v4450, %v4457
  %v4459 = vmul.f32 %v4451, %v4457
  %v4460 = vmul.f32 %v4452, %v4457
  %v4461 = vmul.f32 %v4453, %v4457
  %v4462 = vlaneseq
  %v4463 = vshrl.u32 %v4462, 7
  %v4464 = vsub.s32 0, %v4463
  %v4465 = vrot.slane %v4401, %v4464
  %v4466 = vadd.f32 %v4458, %v4465
  %v4467 = vadd.f32 %v4459, %v4465
  %v4468 = vadd.f32 %v4460, %v4465
  %v4469 = vadd.f32 %v4461, %v4465
  %v4470 = vld [vmem:[%s2 + $0x230] sm:$0x3]
  %v4472 = vsel %vm223, %v4470, 0
  %4474 = vmatprep.subr.mxu0 0.0
  %4475 = vmatpush1.msra.mxu0 %v4466
  %4476 = vmatprep.subr.mxu0 0.0
  %4477 = vmatpush1.msra.mxu0 %v4467
  %4478 = vmatprep.subr.mxu0 0.0
  %4479 = vmatpush1.msra.mxu0 %v4468
  %4480 = vmatprep.subr.mxu0 0.0
  %4481 = vmatpush1.msra.mxu0 %v4469
  %4482 = vmatprep.subr.mxu0 0.0
  %4483 = vmatpush1.msra.mxu0 0.0
  %4484 = vmatprep.subr.mxu0 0.0
  %4485 = vmatpush1.msra.mxu0 0.0
  %4486 = vmatprep.subr.mxu0 0.0
  %4487 = vmatpush1.msra.mxu0 0.0
  %4488 = vmatprep.subr.mxu0 0.0
  %4489 = vmatpush1.msra.mxu0 0.0
  %4490 = vmatprep.subr.mxu0 0.0
  %4491 = vmatpush1.msra.mxu0 0.0
  %4492 = vmatprep.subr.mxu0 0.0
  %4493 = vmatpush1.msra.mxu0 0.0
  %4494 = vmatprep.subr.mxu0 0.0
  %4495 = vmatpush1.msra.mxu0 0.0
  %4496 = vmatprep.subr.mxu0 0.0
  %4497 = vmatpush1.msra.mxu0 0.0
  %4498 = vmatprep.subr.mxu0 0.0
  %4499 = vmatpush1.msra.mxu0 0.0
  %4500 = vmatprep.subr.mxu0 0.0
  %4501 = vmatpush1.msra.mxu0 0.0
  %4502 = vmatprep.subr.mxu0 0.0
  %4503 = vmatpush1.msra.mxu0 0.0
  %4504 = vmatprep.subr.mxu0 0.0
  %4505 = vmatpush1.msra.mxu0 0.0
  %4506 = vmatprep.subr.mxu0 0.0
  %4507 = vmatpush1.msra.mxu0 0.0
  %4508 = vmatprep.subr.mxu0 0.0
  %4509 = vmatpush1.msra.mxu0 0.0
  %4510 = vmatprep.subr.mxu0 0.0
  %4511 = vmatpush1.msra.mxu0 0.0
  %4512 = vmatprep.subr.mxu0 0.0
  %4513 = vmatpush1.msra.mxu0 0.0
  %4514 = vmatprep.subr.mxu0 0.0
  %4515 = vmatpush1.msra.mxu0 0.0
  %4516 = vmatprep.subr.mxu0 0.0
  %4517 = vmatpush1.msra.mxu0 0.0
  %4518 = vmatprep.subr.mxu0 0.0
  %4519 = vmatpush1.msra.mxu0 0.0
  %4520 = vmatprep.subr.mxu0 0.0
  %4521 = vmatpush1.msra.mxu0 0.0
  %4522 = vmatprep.subr.mxu0 0.0
  %4523 = vmatpush1.msra.mxu0 0.0
  %4524 = vmatprep.subr.mxu0 0.0
  %4525 = vmatpush1.msra.mxu0 0.0
  %4526 = vmatprep.subr.mxu0 0.0
  %4527 = vmatpush1.msra.mxu0 0.0
  %4528 = vmatprep.subr.mxu0 0.0
  %4529 = vmatpush1.msra.mxu0 0.0
  %4530 = vmatprep.subr.mxu0 0.0
  %4531 = vmatpush1.msra.mxu0 0.0
  %4532 = vmatprep.subr.mxu0 0.0
  %4533 = vmatpush1.msra.mxu0 0.0
  %4534 = vmatprep.subr.mxu0 0.0
  %4535 = vmatpush1.msra.mxu0 0.0
  %4536 = vmatprep.subr.mxu0 0.0
  %4537 = vmatpush1.msra.mxu0 0.0
  %4538 = vmatprep.mubr.f32.mxu0 0.0
  %4539 = vmatmul.mubr.f32.gmra.mrb[0].mxu0 %v4472
  %v4540 = vpop.f32.mrb[0].mxu0
  %v4541 = vadd.f32 0.0, %v4540
  %v4542 = vpop.f32.mrb[0].mxu0
  %4543 = vdwg.mxu0
  %v4544 = vld [vmem:[%s1] sm:$0x3]
  %4546 = vrot.lane.b32.xlu0 %v4544, 32
  %v4547 = vpop.permute.xlu0 %4546
  %v4549 = vsel %vm223, %v4541, %v4547
  %v4550 = vld [vmem:[%s2 + $0x278] sm:$0xff]
  %v4551 = vld [vmem:[%s2 + $0x280] sm:$0xff]
  %v4552 = vld [vmem:[%s2 + $0x288] sm:$0xff]
  %v4553 = vld [vmem:[%s2 + $0x290] sm:$0xff]
  %v4554 = vld [vmem:[%s2 + $0x298] sm:$0xff]
  %v4555 = vld [vmem:[%s2 + $0x2a0] sm:$0xff]
  %v4556 = vld [vmem:[%s2 + $0x2fa] sm:$0x1]
  %v4557 = vlaneseq
  %v4558 = vshrl.u32 %v4557, 7
  %v4559 = vsub.s32 0, %v4558
  %v4560 = vrot.slane %v4556, %v4559
  %vm4561 = vcmask 392192
  %v4563 = vsel %vm4561, %v4549, 0
  %4565 = vmatprep.subr.mxu0 0.0
  %4566 = vmatpush1.msra.mxu0 %v4550
  %4567 = vmatprep.subr.mxu0 0.0
  %4568 = vmatpush1.msra.mxu0 %v4551
  %4569 = vmatprep.subr.mxu0 0.0
  %4570 = vmatpush1.msra.mxu0 %v4552
  %4571 = vmatprep.subr.mxu0 0.0
  %4572 = vmatpush1.msra.mxu0 %v4553
  %4573 = vmatprep.subr.mxu0 0.0
  %4574 = vmatpush1.msra.mxu0 %v4554
  %4575 = vmatprep.subr.mxu0 0.0
  %4576 = vmatpush1.msra.mxu0 %v4555
  %4577 = vmatprep.subr.mxu0 0.0
  %4578 = vmatpush1.msra.mxu0 0.0
  %4579 = vmatprep.subr.mxu0 0.0
  %4580 = vmatpush1.msra.mxu0 0.0
  %4581 = vmatprep.subr.mxu0 0.0
  %4582 = vmatpush1.msra.mxu0 0.0
  %4583 = vmatprep.subr.mxu0 0.0
  %4584 = vmatpush1.msra.mxu0 0.0
  %4585 = vmatprep.subr.mxu0 0.0
  %4586 = vmatpush1.msra.mxu0 0.0
  %4587 = vmatprep.subr.mxu0 0.0
  %4588 = vmatpush1.msra.mxu0 0.0
  %4589 = vmatprep.subr.mxu0 0.0
  %4590 = vmatpush1.msra.mxu0 0.0
  %4591 = vmatprep.subr.mxu0 0.0
  %4592 = vmatpush1.msra.mxu0 0.0
  %4593 = vmatprep.subr.mxu0 0.0
  %4594 = vmatpush1.msra.mxu0 0.0
  %4595 = vmatprep.subr.mxu0 0.0
  %4596 = vmatpush1.msra.mxu0 0.0
  %4597 = vmatprep.subr.mxu0 0.0
  %4598 = vmatpush1.msra.mxu0 0.0
  %4599 = vmatprep.subr.mxu0 0.0
  %4600 = vmatpush1.msra.mxu0 0.0
  %4601 = vmatprep.subr.mxu0 0.0
  %4602 = vmatpush1.msra.mxu0 0.0
  %4603 = vmatprep.subr.mxu0 0.0
  %4604 = vmatpush1.msra.mxu0 0.0
  %4605 = vmatprep.subr.mxu0 0.0
  %4606 = vmatpush1.msra.mxu0 0.0
  %4607 = vmatprep.subr.mxu0 0.0
  %4608 = vmatpush1.msra.mxu0 0.0
  %4609 = vmatprep.subr.mxu0 0.0
  %4610 = vmatpush1.msra.mxu0 0.0
  %4611 = vmatprep.subr.mxu0 0.0
  %4612 = vmatpush1.msra.mxu0 0.0
  %4613 = vmatprep.subr.mxu0 0.0
  %4614 = vmatpush1.msra.mxu0 0.0
  %4615 = vmatprep.subr.mxu0 0.0
  %4616 = vmatpush1.msra.mxu0 0.0
  %4617 = vmatprep.subr.mxu0 0.0
  %4618 = vmatpush1.msra.mxu0 0.0
  %4619 = vmatprep.subr.mxu0 0.0
  %4620 = vmatpush1.msra.mxu0 0.0
  %4621 = vmatprep.subr.mxu0 0.0
  %4622 = vmatpush1.msra.mxu0 0.0
  %4623 = vmatprep.subr.mxu0 0.0
  %4624 = vmatpush1.msra.mxu0 0.0
  %4625 = vmatprep.subr.mxu0 0.0
  %4626 = vmatpush1.msra.mxu0 0.0
  %4627 = vmatprep.subr.mxu0 0.0
  %4628 = vmatpush1.msra.mxu0 0.0
  %4629 = vmatprep.mubr.f32.mxu0 0.0
  %4630 = vmatmul.mubr.f32.gmra.mrb[0].mxu0 %v4563
  %v4631 = vpop.f32.mrb[0].mxu0
  %v4632 = vadd.f32 %v4560, %v4631
  %v4633 = vpop.f32.mrb[0].mxu0
  %4634 = vdwg.mxu0
  %v4635 = vmax.f32 %v4632, 0.0
  %v4636 = vld [vmem:[%s2 + $0x2a8] sm:$0xff]
  %v4637 = vld [vmem:[%s2 + $0x2b0] sm:$0xff]
  %v4638 = vld [vmem:[%s2 + $0x2b8] sm:$0xff]
  %v4639 = vld [vmem:[%s2 + $0x2c0] sm:$0xff]
  %v4640 = vld [vmem:[%s2 + $0x2fb] sm:$0x1]
  %v4641 = vlaneseq
  %v4642 = vshrl.u32 %v4641, 7
  %v4643 = vsub.s32 0, %v4642
  %v4644 = vrot.slane %v4640, %v4643
  %v4646 = vsel %vm223, %v4635, 0
  %4648 = vmatprep.subr.mxu0 0.0
  %4649 = vmatpush1.msra.mxu0 %v4636
  %4650 = vmatprep.subr.mxu0 0.0
  %4651 = vmatpush1.msra.mxu0 %v4637
  %4652 = vmatprep.subr.mxu0 0.0
  %4653 = vmatpush1.msra.mxu0 %v4638
  %4654 = vmatprep.subr.mxu0 0.0
  %4655 = vmatpush1.msra.mxu0 %v4639
  %4656 = vmatprep.subr.mxu0 0.0
  %4657 = vmatpush1.msra.mxu0 0.0
  %4658 = vmatprep.subr.mxu0 0.0
  %4659 = vmatpush1.msra.mxu0 0.0
  %4660 = vmatprep.subr.mxu0 0.0
  %4661 = vmatpush1.msra.mxu0 0.0
  %4662 = vmatprep.subr.mxu0 0.0
  %4663 = vmatpush1.msra.mxu0 0.0
  %4664 = vmatprep.subr.mxu0 0.0
  %4665 = vmatpush1.msra.mxu0 0.0
  %4666 = vmatprep.subr.mxu0 0.0
  %4667 = vmatpush1.msra.mxu0 0.0
  %4668 = vmatprep.subr.mxu0 0.0
  %4669 = vmatpush1.msra.mxu0 0.0
  %4670 = vmatprep.subr.mxu0 0.0
  %4671 = vmatpush1.msra.mxu0 0.0
  %4672 = vmatprep.subr.mxu0 0.0
  %4673 = vmatpush1.msra.mxu0 0.0
  %4674 = vmatprep.subr.mxu0 0.0
  %4675 = vmatpush1.msra.mxu0 0.0
  %4676 = vmatprep.subr.mxu0 0.0
  %4677 = vmatpush1.msra.mxu0 0.0
  %4678 = vmatprep.subr.mxu0 0.0
  %4679 = vmatpush1.msra.mxu0 0.0
  %4680 = vmatprep.subr.mxu0 0.0
  %4681 = vmatpush1.msra.mxu0 0.0
  %4682 = vmatprep.subr.mxu0 0.0
  %4683 = vmatpush1.msra.mxu0 0.0
  %4684 = vmatprep.subr.mxu0 0.0
  %4685 = vmatpush1.msra.mxu0 0.0
  %4686 = vmatprep.subr.mxu0 0.0
  %4687 = vmatpush1.msra.mxu0 0.0
  %4688 = vmatprep.subr.mxu0 0.0
  %4689 = vmatpush1.msra.mxu0 0.0
  %4690 = vmatprep.subr.mxu0 0.0
  %4691 = vmatpush1.msra.mxu0 0.0
  %4692 = vmatprep.subr.mxu0 0.0
  %4693 = vmatpush1.msra.mxu0 0.0
  %4694 = vmatprep.subr.mxu0 0.0
  %4695 = vmatpush1.msra.mxu0 0.0
  %4696 = vmatprep.subr.mxu0 0.0
  %4697 = vmatpush1.msra.mxu0 0.0
  %4698 = vmatprep.subr.mxu0 0.0
  %4699 = vmatpush1.msra.mxu0 0.0
  %4700 = vmatprep.subr.mxu0 0.0
  %4701 = vmatpush1.msra.mxu0 0.0
  %4702 = vmatprep.subr.mxu0 0.0
  %4703 = vmatpush1.msra.mxu0 0.0
  %4704 = vmatprep.subr.mxu0 0.0
  %4705 = vmatpush1.msra.mxu0 0.0
  %4706 = vmatprep.subr.mxu0 0.0
  %4707 = vmatpush1.msra.mxu0 0.0
  %4708 = vmatprep.subr.mxu0 0.0
  %4709 = vmatpush1.msra.mxu0 0.0
  %4710 = vmatprep.subr.mxu0 0.0
  %4711 = vmatpush1.msra.mxu0 0.0
  %4712 = vmatprep.mubr.f32.mxu0 0.0
  %4713 = vmatmul.mubr.f32.gmra.mrb[0].mxu0 %v4646
  %v4714 = vpop.f32.mrb[0].mxu0
  %v4715 = vadd.f32 %v4644, %v4714
  %v4716 = vpop.f32.mrb[0].mxu0
  %4717 = vdwg.mxu0
  %v4718 = vmax.f32 %v4715, 0.0
  %v4719 = vld [vmem:[%s2 + $0x2fc] sm:$0x1]
  %v4720 = vlaneseq
  %v4721 = vshrl.u32 %v4720, 7
  %v4722 = vsub.s32 0, %v4721
  %v4723 = vrot.slane %v4719, %v4722
  %v4724 = vmul.f32 %v4718, %v4723
  %vm4725 = vcmask 254976
  %v4726 = vsel %vm4725, %v4724, 0.0
  %4727 = vadd.xlane.f32.xlu0 %v4726
  %v4728 = vpop.xlane.xlu0 %4727
  %v4729 = vld [vmem:[%s2 + $0x2fd] sm:$0x1]
  %v4730 = vlaneseq
  %v4731 = vshrl.u32 %v4730, 7
  %v4732 = vsub.s32 0, %v4731
  %v4733 = vrot.slane %v4729, %v4732
  %v4734 = vadd.f32 %v4728, %v4733
  %4736 = vset.pattern.permute.xlu0 0
  %4737 = vperm.xlu0 %4736, %v4734
  %v4738 = vpop.permute.xlu0 %4737
  %4740 = vst [vmem:[%s7] sm:$0x3] %v4738
  // Predicated region
  $region30: #{gene_exp_hyena_forward.1} parent=0 // pred_check
    _
  $region31: #{gene_exp_hyena_forward.1} parent=0 // pred_check_branch
    %4742 = sbr.rel (0) target = $region33
  $region32: #{gene_exp_hyena_forward.1} parent=0 // pred_region
    _
  $region33: #{gene_exp_hyena_forward.1} parent=0 // pred_fallthru
    _
  // Predicated region
  $region34: #{gene_exp_hyena_forward.1} parent=0 // pred_check
    _
  $region35: #{gene_exp_hyena_forward.1} parent=0 // pred_check_branch
    %4744 = sbr.rel (0) target = $region37
  $region36: #{gene_exp_hyena_forward.1} parent=0 // pred_region
    _
  $region37: #{gene_exp_hyena_forward.1} parent=0 // pred_fallthru
    _

</llo_original>
